<compile_context>
chip_gen: v7x
topology: tpu7x:2x2x1
jax: 0.10.0
libtpu: 0.0.40
codegen_flags: <defaults>
</compile_context>

<pallas_src>
import functools

import jax
import jax.numpy as jnp
from jax.experimental import pallas as pl
from jax.experimental.pallas import tpu as pltpu

_LANE = 128
_PER_LAYER = 5  # w_gc, w_i, w_h, bias_pack, h0


# ----------------------------------------------------------------------------
# Fused kernel: [DiffusionGraphConv -> GRUCell -> BN(eval)] x num_layers -> FC
# One grid step processes a chunk of whole (independent) timesteps.
# ----------------------------------------------------------------------------
def _dcrnn_fused_kernel(num_layers, t_chunk, n_nodes, hp, *refs):
    n_in = 2 + _PER_LAYER * num_layers + 2
    in_refs = refs[:n_in]
    out_refs = refs[n_in:]

    Tc, N = t_chunk, n_nodes
    R = Tc * N

    x3 = in_refs[0][...]                           # (Tc, N, F_in)
    a = in_refs[1][...]                            # (N, N) normalized adjacency
    # Broadcast the adjacency once; reused by every layer's batched aggregation.
    a3 = jnp.broadcast_to(a[None, :, :], (Tc, N, N))

    idx = 2
    h_t = None
    for layer in range(num_layers):
        w_gc = in_refs[idx + 0][...]               # (F_prev, 2*Hp)  [conv1|conv2]
        w_i = in_refs[idx + 1][...]                # (Hp, 3*Hp)      [r|z|n]
        w_h = in_refs[idx + 2][...]                # (Hp, 3*Hp)      [r|z|n]
        bp_ref = in_refs[idx + 3]                  # (8, 3*Hp) packed biases/BN
        h0 = in_refs[idx + 4][...]                 # (N, Hp)
        idx += _PER_LAYER

        b_i = bp_ref[0:1, :]                       # (1, 3*Hp)
        b_h = bp_ref[1:2, :]                       # (1, 3*Hp)
        b_gc = bp_ref[2:3, :2 * hp]                # (1, 2*Hp)
        bn_scale = bp_ref[2:3, 2 * hp:3 * hp]      # (1, Hp)
        bn_shift = bp_ref[3:4, :hp]                # (1, Hp)

        # --- DiffusionGraphConv ------------------------------------------------
        # Aggregate once per layer (A factored out of both GCN branches):
        #   ax[t] = A_hat @ x[t]   -- batched matmul, no block-diagonal zeros.
        ax3 = jnp.einsum('tnm,tmf->tnf', a3, x3,
                         preferred_element_type=jnp.float32)        # (Tc, N, F)
        ax = ax3.reshape(R, ax3.shape[-1])                           # (R, F)
        # Both GCN branches with a single fused matmul; slice at Hp boundary.
        gpre = jnp.dot(ax, w_gc, preferred_element_type=jnp.float32) + b_gc
        gc = jnp.maximum(gpre[:, :hp], 0.0) + gpre[:, hp:]           # (R, Hp)

        # --- GRUCell (PyTorch gate order r, z, n), fused gate matmuls ----------
        gi = jnp.dot(gc, w_i, preferred_element_type=jnp.float32) + b_i  # (R,3Hp)
        # Hidden path: h0 is identical for every timestep -> compute once on
        # the small (N, Hp) state, then broadcast across time.
        gh = jnp.dot(h0, w_h, preferred_element_type=jnp.float32) + b_h  # (N,3Hp)
        gh_big = jnp.broadcast_to(gh[None], (Tc, N, 3 * hp)).reshape(R, 3 * hp)
        h0_big = jnp.broadcast_to(h0[None], (Tc, N, hp)).reshape(R, hp)

        r = jax.nn.sigmoid(gi[:, :hp] + gh_big[:, :hp])
        z = jax.nn.sigmoid(gi[:, hp:2 * hp] + gh_big[:, hp:2 * hp])
        cand = jnp.tanh(gi[:, 2 * hp:] + r * gh_big[:, 2 * hp:])
        h_t = (1.0 - z) * cand + z * h0_big

        # --- BatchNorm1d (eval, running stats) + Dropout (identity) ------------
        # TODO(synk): training-mode dropout / batch-statistics BN are stochastic
        # and batch-dependent; intentionally implemented in eval mode.
        h_t = h_t * bn_scale + bn_shift

        out_refs[layer][...] = h_t                 # lane-dense (R, Hp) store
        x3 = h_t.reshape(Tc, N, hp)                # input of the next layer

    # --- final Linear; output padded to 128 lanes -> lane-dense store ----------
    fc_w = in_refs[idx][...]                       # (Hp, O_pad)
    fc_b = in_refs[idx + 1][...]                   # (1, O_pad)
    out_refs[num_layers][...] = (
        jnp.dot(h_t, fc_w, preferred_element_type=jnp.float32) + fc_b)


# ----------------------------------------------------------------------------
# Best-effort TensorCore-count detection (2 only on v7x-class chips).
# ----------------------------------------------------------------------------
def _num_tensorcores():
    try:
        info = pltpu.get_tpu_info()
        for attr in ("num_tensorcores", "tensorcores_per_chip", "num_cores"):
            v = getattr(info, attr, None)
            if isinstance(v, int) and v >= 1:
                return min(2, v)
    except Exception:
        pass
    try:
        kind = jax.devices()[0].device_kind.lower()
        if "v7" in kind or "7x" in kind:
            return 2
    except Exception:
        pass
    return 1


# ----------------------------------------------------------------------------
# Wrapper: one pallas_call for the whole stack.
# ----------------------------------------------------------------------------
def dcrnn_forward(x, a_hat, layer_params, fc_params, hidden_dim, output_dim,
                  h=None):
    T, N, F_in = x.shape
    H = hidden_dim
    num_layers = len(layer_params)
    Hp = fc_params["w_pad"].shape[0]      # 128-padded hidden width
    O_pad = fc_params["w_pad"].shape[1]   # 128-padded output width
    TN = T * N

    # Split independent timesteps across TensorCores only when the chip has
    # more than one (v7x); on v5e/v6e the extra grid step is serial overhead.
    n_chunks = 1
    if _num_tensorcores() >= 2 and T % 2 == 0 and ((T // 2) * N) % 8 == 0:
        n_chunks = 2
    t_chunk = T // n_chunks
    TNc = t_chunk * N

    if h is None:
        h = [jnp.zeros((N, H), jnp.float32) for _ in range(num_layers)]
    h_pad = [jnp.pad(hi.astype(jnp.float32), ((0, 0), (0, Hp - H))) for hi in h]

    def full_spec(arr):
        nd = arr.ndim
        return pl.BlockSpec(arr.shape, lambda i, _nd=nd: (0,) * _nd)

    x_spec = pl.BlockSpec((t_chunk, N, F_in), lambda i: (i, 0, 0))
    out_h_spec = pl.BlockSpec((TNc, Hp), lambda i: (i, 0))
    out_o_spec = pl.BlockSpec((TNc, O_pad), lambda i: (i, 0))

    inputs = [x.astype(jnp.float32), a_hat.astype(jnp.float32)]
    in_specs = [x_spec, full_spec(a_hat)]
    for li, p in enumerate(layer_params):
        arrays = [p["w_gc"], p["w_i"], p["w_h"], p["bias_pack"], h_pad[li]]
        inputs.extend(arrays)
        in_specs.extend(full_spec(a) for a in arrays)
    inputs.extend([fc_params["w_pad"], fc_params["b_pad"]])
    in_specs.extend([full_spec(fc_params["w_pad"]),
                     full_spec(fc_params["b_pad"])])

    out_shape = tuple([jax.ShapeDtypeStruct((TN, Hp), jnp.float32)] * num_layers
                      + [jax.ShapeDtypeStruct((TN, O_pad), jnp.float32)])
    out_specs = tuple([out_h_spec] * num_layers + [out_o_spec])

    # Rough cost hint for the XLA scheduler + explicit VMEM budget.
    flops = 0
    f_prev = F_in
    for _ in range(num_layers):
        flops += 2 * T * N * N * f_prev          # batched graph aggregation
        flops += 2 * TN * f_prev * (2 * Hp)      # fused GCN branches
        flops += 2 * TN * Hp * (3 * Hp)          # GRU input path
        flops += 2 * N * Hp * (3 * Hp)           # GRU hidden path (once)
        f_prev = Hp
    flops += 2 * TN * Hp * O_pad                 # final FC
    in_bytes = sum(int(a.size) * 4 for a in inputs)
    out_bytes = num_layers * TN * Hp * 4 + TN * O_pad * 4
    cost = pl.CostEstimate(flops=int(flops),
                           transcendentals=int(3 * TN * Hp * num_layers),
                           bytes_accessed=int(in_bytes + out_bytes))
    vmem_budget = int(min(64 * 1024 * 1024,
                          max(16 * 1024 * 1024,
                              2 * (in_bytes + out_bytes) + (2 << 20))))

    outs = pl.pallas_call(
        functools.partial(_dcrnn_fused_kernel, num_layers, t_chunk, N, Hp),
        out_shape=out_shape,
        grid=(n_chunks,),
        in_specs=in_specs,
        out_specs=out_specs,
        compiler_params=pltpu.CompilerParams(
            dimension_semantics=("parallel",),
            vmem_limit_bytes=vmem_budget),
        cost_estimate=cost,
    )(*inputs)

    h_out = [o.reshape(T, N, Hp)[:, :, :H] for o in outs[:num_layers]]
    out = outs[num_layers][:, :output_dim].reshape(T, N, output_dim)
    return out, h_out


# ----------------------------------------------------------------------------
# Glue: dense GCN-normalized adjacency (A+I with symmetric D^-1/2 normalization)
# Static graph -> compute once, outside the forward path.
# ----------------------------------------------------------------------------
def build_norm_adj(edge_index, num_nodes):
    src, dst = edge_index[0], edge_index[1]
    a = jnp.zeros((num_nodes, num_nodes), jnp.float32)
    a = a.at[dst, src].add(1.0)                         # message src -> dst
    a = a + jnp.eye(num_nodes, dtype=jnp.float32)       # add self loops
    deg = a.sum(axis=1)
    dinv = jnp.where(deg > 0, 1.0 / jnp.sqrt(deg), 0.0)
    return dinv[:, None] * a * dinv[None, :]


def init_params(key, input_dim, hidden_dim, output_dim, num_layers):
    H = hidden_dim
    Hp = ((H + _LANE - 1) // _LANE) * _LANE
    Hp = max(_LANE, Hp)
    O = output_dim
    O_pad = max(_LANE, ((O + _LANE - 1) // _LANE) * _LANE)

    def u(k, shape, s):
        return jax.random.uniform(k, shape, jnp.float32, -s, s)

    def pad2(arr, rows, cols):
        return jnp.pad(arr, ((0, rows - arr.shape[0]), (0, cols - arr.shape[1])))

    layers = []
    for i in range(num_layers):
        f_in = input_dim if i == 0 else H
        f_in_pad = input_dim if i == 0 else Hp   # layer>0 input arrives Hp-wide
        key, *ks = jax.random.split(key, 15)
        s_gc = 1.0 / (f_in ** 0.5)
        s_g = 1.0 / (H ** 0.5)

        # GCN weights pre-transposed (f_in, H); fused [conv1 | conv2]; zero-padded.
        w1 = pad2(u(ks[0], (f_in, H), s_gc), f_in_pad, Hp)
        w2 = pad2(u(ks[1], (f_in, H), s_gc), f_in_pad, Hp)
        w_gc = jnp.concatenate([w1, w2], axis=1)                     # (f_in_pad, 2Hp)
        b_gc = jnp.zeros((1, 2 * Hp), jnp.float32)                   # GCNConv bias=0

        # GRU gates (r, z, n) pre-transposed, each padded to (Hp, Hp), re-fused
        # along lanes at 128-aligned boundaries.
        w_i = jnp.concatenate([pad2(u(ks[2 + g], (H, H), s_g), Hp, Hp)
                               for g in range(3)], axis=1)           # (Hp, 3Hp)
        w_h = jnp.concatenate([pad2(u(ks[5 + g], (H, H), s_g), Hp, Hp)
                               for g in range(3)], axis=1)           # (Hp, 3Hp)
        b_i = jnp.concatenate([pad2(u(ks[8 + g], (1, H), s_g), 1, Hp)
                               for g in range(3)], axis=1)           # (1, 3Hp)
        b_h = jnp.concatenate([pad2(u(ks[11 + g], (1, H), s_g), 1, Hp)
                               for g in range(3)], axis=1)           # (1, 3Hp)

        # BatchNorm1d eval with fresh running stats: y = x / sqrt(1 + eps)
        bn_scale = pad2(jnp.full((1, H), (1.0 + 1e-5) ** -0.5, jnp.float32), 1, Hp)
        bn_shift = jnp.zeros((1, Hp), jnp.float32)

        # Pack every small per-layer vector into ONE (8, 3*Hp) array:
        #   row 0: b_i, row 1: b_h, row 2: [b_gc | bn_scale], row 3: [bn_shift|0|0]
        row2 = jnp.concatenate([b_gc, bn_scale], axis=1)
        row3 = jnp.concatenate([bn_shift, jnp.zeros((1, 2 * Hp), jnp.float32)],
                               axis=1)
        bias_pack = jnp.concatenate(
            [b_i, b_h, row2, row3, jnp.zeros((4, 3 * Hp), jnp.float32)], axis=0)

        layers.append(dict(w_gc=w_gc, w_i=w_i, w_h=w_h, bias_pack=bias_pack))

    key, kw, kb = jax.random.split(key, 3)
    s_fc = 1.0 / (H ** 0.5)
    fc = dict(w_pad=pad2(u(kw, (H, O), s_fc), Hp, O_pad),   # (Hp, O_pad)
              b_pad=pad2(u(kb, (1, O), s_fc), 1, O_pad))    # (1, O_pad)
    return layers, fc


if __name__ == "__main__":
    T, N = 8, 16
    input_dim, hidden_dim, output_dim, num_layers = 4, 32, 8, 2

    key = jax.random.PRNGKey(0)
    kx, kp = jax.random.split(key)
    x = jax.random.normal(kx, (T, N, input_dim), jnp.float32)

    # undirected ring graph as edge_index (2, E)
    src = jnp.arange(N, dtype=jnp.int32)
    dst = (src + 1) % N
    edge_index = jnp.stack([jnp.concatenate([src, dst]),
                            jnp.concatenate([dst, src])], axis=0)

    layer_params, fc_params = init_params(kp, input_dim, hidden_dim,
                                          output_dim, num_layers)

    # static graph: compute the normalized adjacency once, outside the forward
    a_hat = build_norm_adj(edge_index, N)

    out, h = dcrnn_forward(x, a_hat, layer_params, fc_params,
                           hidden_dim, output_dim)
    jax.block_until_ready(out)
    assert out.shape == (T, N, output_dim)
    assert all(hi.shape == (T, N, hidden_dim) for hi in h)
    print("KERNEL_OK")
</pallas_src>

<mosaic_0001>
module attributes {stable_mosaic.version = 11 : i64} {
  func.func @_dcrnn_fused_kernel(%arg0: i32, %arg1: memref<8x16x4xf32, #tpu.memory_space<vmem>>, %arg2: memref<16x16xf32, #tpu.memory_space<vmem>>, %arg3: memref<4x256xf32, #tpu.memory_space<vmem>>, %arg4: memref<128x384xf32, #tpu.memory_space<vmem>>, %arg5: memref<128x384xf32, #tpu.memory_space<vmem>>, %arg6: memref<8x384xf32, #tpu.memory_space<vmem>>, %arg7: memref<16x128xf32, #tpu.memory_space<vmem>>, %arg8: memref<128x256xf32, #tpu.memory_space<vmem>>, %arg9: memref<128x384xf32, #tpu.memory_space<vmem>>, %arg10: memref<128x384xf32, #tpu.memory_space<vmem>>, %arg11: memref<8x384xf32, #tpu.memory_space<vmem>>, %arg12: memref<16x128xf32, #tpu.memory_space<vmem>>, %arg13: memref<128x128xf32, #tpu.memory_space<vmem>>, %arg14: memref<1x128xf32, #tpu.memory_space<vmem>>, %arg15: memref<128x128xf32, #tpu.memory_space<vmem>>, %arg16: memref<128x128xf32, #tpu.memory_space<vmem>>, %arg17: memref<128x128xf32, #tpu.memory_space<vmem>>) attributes {dimension_semantics = [#tpu.dimension_semantics<parallel>], iteration_bounds = array<i64: 1>, scalar_prefetch = 0 : i64, scratch_operands = 0 : i64, tpu.core_type = #tpu.core_type<tc>, window_params = [{transform_indices = @transform_0, window_bounds = array<i64: 8, 16, 4>}, {pipeline_mode = #tpu.pipeline_mode<synchronous>, transform_indices = @transform_1, window_bounds = array<i64: 16, 16>}, {pipeline_mode = #tpu.pipeline_mode<synchronous>, transform_indices = @transform_2, window_bounds = array<i64: 4, 256>}, {pipeline_mode = #tpu.pipeline_mode<synchronous>, transform_indices = @transform_3, window_bounds = array<i64: 128, 384>}, {pipeline_mode = #tpu.pipeline_mode<synchronous>, transform_indices = @transform_4, window_bounds = array<i64: 128, 384>}, {pipeline_mode = #tpu.pipeline_mode<synchronous>, transform_indices = @transform_5, window_bounds = array<i64: 8, 384>}, {pipeline_mode = #tpu.pipeline_mode<synchronous>, transform_indices = @transform_6, window_bounds = array<i64: 16, 128>}, {pipeline_mode = #tpu.pipeline_mode<synchronous>, transform_indices = @transform_7, window_bounds = array<i64: 128, 256>}, {pipeline_mode = #tpu.pipeline_mode<synchronous>, transform_indices = @transform_8, window_bounds = array<i64: 128, 384>}, {pipeline_mode = #tpu.pipeline_mode<synchronous>, transform_indices = @transform_9, window_bounds = array<i64: 128, 384>}, {pipeline_mode = #tpu.pipeline_mode<synchronous>, transform_indices = @transform_10, window_bounds = array<i64: 8, 384>}, {pipeline_mode = #tpu.pipeline_mode<synchronous>, transform_indices = @transform_11, window_bounds = array<i64: 16, 128>}, {pipeline_mode = #tpu.pipeline_mode<synchronous>, transform_indices = @transform_12, window_bounds = array<i64: 128, 128>}, {pipeline_mode = #tpu.pipeline_mode<synchronous>, transform_indices = @transform_13, window_bounds = array<i64: 1, 128>}, {transform_indices = @transform_14, window_bounds = array<i64: 128, 128>}, {transform_indices = @transform_15, window_bounds = array<i64: 128, 128>}, {transform_indices = @transform_16, window_bounds = array<i64: 128, 128>}]} {
    %c0 = arith.constant 0 : index
    %c0_0 = arith.constant 0 : index
    %c0_1 = arith.constant 0 : index
    %0 = vector.load %arg1[%c0, %c0_0, %c0_1] : memref<8x16x4xf32, #tpu.memory_space<vmem>>, vector<8x16x4xf32>
    %c0_2 = arith.constant 0 : index
    %c0_3 = arith.constant 0 : index
    %1 = vector.load %arg2[%c0_2, %c0_3] : memref<16x16xf32, #tpu.memory_space<vmem>>, vector<16x16xf32>
    %2 = vector.shape_cast %1 : vector<16x16xf32> to vector<1x16x16xf32>
    %3 = vector.shape_cast %2 : vector<1x16x16xf32> to vector<1x16x16xf32>
    %4 = vector.broadcast %3 : vector<1x16x16xf32> to vector<8x16x16xf32>
    %c0_4 = arith.constant 0 : index
    %c0_5 = arith.constant 0 : index
    %5 = vector.load %arg3[%c0_4, %c0_5] : memref<4x256xf32, #tpu.memory_space<vmem>>, vector<4x256xf32>
    %c0_6 = arith.constant 0 : index
    %c0_7 = arith.constant 0 : index
    %6 = vector.load %arg4[%c0_6, %c0_7] : memref<128x384xf32, #tpu.memory_space<vmem>>, vector<128x384xf32>
    %c0_8 = arith.constant 0 : index
    %c0_9 = arith.constant 0 : index
    %7 = vector.load %arg5[%c0_8, %c0_9] : memref<128x384xf32, #tpu.memory_space<vmem>>, vector<128x384xf32>
    %c0_10 = arith.constant 0 : index
    %c0_11 = arith.constant 0 : index
    %8 = vector.load %arg7[%c0_10, %c0_11] : memref<16x128xf32, #tpu.memory_space<vmem>>, vector<16x128xf32>
    %c0_12 = arith.constant 0 : index
    %c0_13 = arith.constant 0 : index
    %9 = vector.load %arg6[%c0_12, %c0_13] : memref<8x384xf32, #tpu.memory_space<vmem>>, vector<1x384xf32>
    %c1 = arith.constant 1 : index
    %c0_14 = arith.constant 0 : index
    %10 = vector.load %arg6[%c1, %c0_14] : memref<8x384xf32, #tpu.memory_space<vmem>>, vector<1x384xf32>
    %c2 = arith.constant 2 : index
    %c0_15 = arith.constant 0 : index
    %11 = vector.load %arg6[%c2, %c0_15] : memref<8x384xf32, #tpu.memory_space<vmem>>, vector<1x256xf32>
    %c2_16 = arith.constant 2 : index
    %c256 = arith.constant 256 : index
    %12 = vector.load %arg6[%c2_16, %c256] : memref<8x384xf32, #tpu.memory_space<vmem>>, vector<1x128xf32>
    %c3 = arith.constant 3 : index
    %c0_17 = arith.constant 0 : index
    %13 = vector.load %arg6[%c3, %c0_17] : memref<8x384xf32, #tpu.memory_space<vmem>>, vector<1x128xf32>
    "tpu.trace_start"() <{level = 10 : i32, message = "tnm,tmf->tnf"}> : () -> ()
    %cst = arith.constant dense<0.000000e+00> : vector<8x16x4xf32>
    %14 = tpu.matmul %4, %0, %cst {dimension_numbers = #tpu.dot_dimension_numbers<[2], [1], [1], [2], [0, 0, 0, 1, 1, 2], [0], [0]>} : vector<8x16x16xf32>, vector<8x16x4xf32>, vector<8x16x4xf32> -> vector<8x16x4xf32>
    "tpu.trace_stop"() : () -> ()
    %15 = vector.shape_cast %14 : vector<8x16x4xf32> to vector<128x4xf32>
    %cst_18 = arith.constant dense<0.000000e+00> : vector<128x256xf32>
    %16 = tpu.matmul %15, %5, %cst_18 {dimension_numbers = #tpu.dot_dimension_numbers<[1], [0], [0], [1], [0, 0, 1, 1], [], []>} : vector<128x4xf32>, vector<4x256xf32>, vector<128x256xf32> -> vector<128x256xf32>
    %17 = vector.broadcast %11 : vector<1x256xf32> to vector<128x256xf32>
    %18 = arith.addf %16, %17 : vector<128x256xf32>
    %19 = vector.extract_strided_slice %18 {offsets = [0, 0], sizes = [128, 128], strides = [1, 1]} : vector<128x256xf32> to vector<128x128xf32>
    %cst_19 = arith.constant 0.000000e+00 : f32
    %20 = vector.broadcast %cst_19 : f32 to vector<128x128xf32>
    %21 = arith.maximumf %19, %20 : vector<128x128xf32>
    %22 = vector.extract_strided_slice %18 {offsets = [0, 128], sizes = [128, 128], strides = [1, 1]} : vector<128x256xf32> to vector<128x128xf32>
    %23 = arith.addf %21, %22 : vector<128x128xf32>
    %cst_20 = arith.constant dense<0.000000e+00> : vector<128x384xf32>
    %24 = tpu.matmul %23, %6, %cst_20 {dimension_numbers = #tpu.dot_dimension_numbers<[1], [0], [0], [1], [0, 0, 1, 1], [], []>} : vector<128x128xf32>, vector<128x384xf32>, vector<128x384xf32> -> vector<128x384xf32>
    %25 = vector.broadcast %9 : vector<1x384xf32> to vector<128x384xf32>
    %26 = arith.addf %24, %25 : vector<128x384xf32>
    %cst_21 = arith.constant dense<0.000000e+00> : vector<16x384xf32>
    %27 = tpu.matmul %8, %7, %cst_21 {dimension_numbers = #tpu.dot_dimension_numbers<[1], [0], [0], [1], [0, 0, 1, 1], [], []>} : vector<16x128xf32>, vector<128x384xf32>, vector<16x384xf32> -> vector<16x384xf32>
    %28 = vector.broadcast %10 : vector<1x384xf32> to vector<16x384xf32>
    %29 = arith.addf %27, %28 : vector<16x384xf32>
    %30 = vector.shape_cast %29 : vector<16x384xf32> to vector<1x16x384xf32>
    %31 = vector.shape_cast %30 : vector<1x16x384xf32> to vector<1x16x384xf32>
    %32 = vector.broadcast %31 : vector<1x16x384xf32> to vector<8x16x384xf32>
    %33 = vector.shape_cast %32 : vector<8x16x384xf32> to vector<128x384xf32>
    %34 = vector.shape_cast %8 : vector<16x128xf32> to vector<1x16x128xf32>
    %35 = vector.shape_cast %34 : vector<1x16x128xf32> to vector<1x16x128xf32>
    %36 = vector.broadcast %35 : vector<1x16x128xf32> to vector<8x16x128xf32>
    %37 = vector.shape_cast %36 : vector<8x16x128xf32> to vector<128x128xf32>
    %38 = vector.extract_strided_slice %26 {offsets = [0, 0], sizes = [128, 128], strides = [1, 1]} : vector<128x384xf32> to vector<128x128xf32>
    %39 = vector.extract_strided_slice %33 {offsets = [0, 0], sizes = [128, 128], strides = [1, 1]} : vector<128x384xf32> to vector<128x128xf32>
    %40 = arith.addf %38, %39 : vector<128x128xf32>
    %41 = arith.negf %40 : vector<128x128xf32>
    %42 = math.exp %41 : vector<128x128xf32>
    %cst_22 = arith.constant 1.000000e+00 : f32
    %43 = vector.broadcast %cst_22 : f32 to vector<128x128xf32>
    %44 = arith.addf %43, %42 : vector<128x128xf32>
    %45 = arith.divf %43, %44 : vector<128x128xf32>
    %46 = vector.extract_strided_slice %26 {offsets = [0, 128], sizes = [128, 128], strides = [1, 1]} : vector<128x384xf32> to vector<128x128xf32>
    %47 = vector.extract_strided_slice %33 {offsets = [0, 128], sizes = [128, 128], strides = [1, 1]} : vector<128x384xf32> to vector<128x128xf32>
    %48 = arith.addf %46, %47 : vector<128x128xf32>
    %49 = arith.negf %48 : vector<128x128xf32>
    %50 = math.exp %49 : vector<128x128xf32>
    %cst_23 = arith.constant 1.000000e+00 : f32
    %51 = vector.broadcast %cst_23 : f32 to vector<128x128xf32>
    %52 = arith.addf %51, %50 : vector<128x128xf32>
    %53 = arith.divf %51, %52 : vector<128x128xf32>
    %54 = vector.extract_strided_slice %26 {offsets = [0, 256], sizes = [128, 128], strides = [1, 1]} : vector<128x384xf32> to vector<128x128xf32>
    %55 = vector.extract_strided_slice %33 {offsets = [0, 256], sizes = [128, 128], strides = [1, 1]} : vector<128x384xf32> to vector<128x128xf32>
    %56 = arith.mulf %45, %55 : vector<128x128xf32>
    %57 = arith.addf %54, %56 : vector<128x128xf32>
    %58 = math.tanh %57 : vector<128x128xf32>
    %cst_24 = arith.constant 1.000000e+00 : f32
    %59 = vector.broadcast %cst_24 : f32 to vector<128x128xf32>
    %60 = arith.subf %59, %53 : vector<128x128xf32>
    %61 = arith.mulf %60, %58 : vector<128x128xf32>
    %62 = arith.mulf %53, %37 : vector<128x128xf32>
    %63 = arith.addf %61, %62 : vector<128x128xf32>
    %64 = vector.broadcast %12 : vector<1x128xf32> to vector<128x128xf32>
    %65 = arith.mulf %63, %64 : vector<128x128xf32>
    %66 = vector.broadcast %13 : vector<1x128xf32> to vector<128x128xf32>
    %67 = arith.addf %65, %66 : vector<128x128xf32>
    %c0_25 = arith.constant 0 : index
    %c0_26 = arith.constant 0 : index
    %68 = vector.load %arg15[%c0_25, %c0_26] : memref<128x128xf32, #tpu.memory_space<vmem>>, vector<128x128xf32>
    tpu.vector_store %arg15[%c0_25, %c0_26], %67 {strides = array<i32>} : memref<128x128xf32, #tpu.memory_space<vmem>>, vector<128x128xf32>,
    %69 = vector.shape_cast %67 : vector<128x128xf32> to vector<8x16x128xf32>
    %c0_27 = arith.constant 0 : index
    %c0_28 = arith.constant 0 : index
    %70 = vector.load %arg8[%c0_27, %c0_28] : memref<128x256xf32, #tpu.memory_space<vmem>>, vector<128x256xf32>
    %c0_29 = arith.constant 0 : index
    %c0_30 = arith.constant 0 : index
    %71 = vector.load %arg9[%c0_29, %c0_30] : memref<128x384xf32, #tpu.memory_space<vmem>>, vector<128x384xf32>
    %c0_31 = arith.constant 0 : index
    %c0_32 = arith.constant 0 : index
    %72 = vector.load %arg10[%c0_31, %c0_32] : memref<128x384xf32, #tpu.memory_space<vmem>>, vector<128x384xf32>
    %c0_33 = arith.constant 0 : index
    %c0_34 = arith.constant 0 : index
    %73 = vector.load %arg12[%c0_33, %c0_34] : memref<16x128xf32, #tpu.memory_space<vmem>>, vector<16x128xf32>
    %c0_35 = arith.constant 0 : index
    %c0_36 = arith.constant 0 : index
    %74 = vector.load %arg11[%c0_35, %c0_36] : memref<8x384xf32, #tpu.memory_space<vmem>>, vector<1x384xf32>
    %c1_37 = arith.constant 1 : index
    %c0_38 = arith.constant 0 : index
    %75 = vector.load %arg11[%c1_37, %c0_38] : memref<8x384xf32, #tpu.memory_space<vmem>>, vector<1x384xf32>
    %c2_39 = arith.constant 2 : index
    %c0_40 = arith.constant 0 : index
    %76 = vector.load %arg11[%c2_39, %c0_40] : memref<8x384xf32, #tpu.memory_space<vmem>>, vector<1x256xf32>
    %c2_41 = arith.constant 2 : index
    %c256_42 = arith.constant 256 : index
    %77 = vector.load %arg11[%c2_41, %c256_42] : memref<8x384xf32, #tpu.memory_space<vmem>>, vector<1x128xf32>
    %c3_43 = arith.constant 3 : index
    %c0_44 = arith.constant 0 : index
    %78 = vector.load %arg11[%c3_43, %c0_44] : memref<8x384xf32, #tpu.memory_space<vmem>>, vector<1x128xf32>
    "tpu.trace_start"() <{level = 10 : i32, message = "tnm,tmf->tnf"}> : () -> ()
    %cst_45 = arith.constant dense<0.000000e+00> : vector<8x16x128xf32>
    %79 = tpu.matmul %4, %69, %cst_45 {dimension_numbers = #tpu.dot_dimension_numbers<[2], [1], [1], [2], [0, 0, 0, 1, 1, 2], [0], [0]>} : vector<8x16x16xf32>, vector<8x16x128xf32>, vector<8x16x128xf32> -> vector<8x16x128xf32>
    "tpu.trace_stop"() : () -> ()
    %80 = vector.shape_cast %79 : vector<8x16x128xf32> to vector<128x128xf32>
    %cst_46 = arith.constant dense<0.000000e+00> : vector<128x256xf32>
    %81 = tpu.matmul %80, %70, %cst_46 {dimension_numbers = #tpu.dot_dimension_numbers<[1], [0], [0], [1], [0, 0, 1, 1], [], []>} : vector<128x128xf32>, vector<128x256xf32>, vector<128x256xf32> -> vector<128x256xf32>
    %82 = vector.broadcast %76 : vector<1x256xf32> to vector<128x256xf32>
    %83 = arith.addf %81, %82 : vector<128x256xf32>
    %84 = vector.extract_strided_slice %83 {offsets = [0, 0], sizes = [128, 128], strides = [1, 1]} : vector<128x256xf32> to vector<128x128xf32>
    %cst_47 = arith.constant 0.000000e+00 : f32
    %85 = vector.broadcast %cst_47 : f32 to vector<128x128xf32>
    %86 = arith.maximumf %84, %85 : vector<128x128xf32>
    %87 = vector.extract_strided_slice %83 {offsets = [0, 128], sizes = [128, 128], strides = [1, 1]} : vector<128x256xf32> to vector<128x128xf32>
    %88 = arith.addf %86, %87 : vector<128x128xf32>
    %cst_48 = arith.constant dense<0.000000e+00> : vector<128x384xf32>
    %89 = tpu.matmul %88, %71, %cst_48 {dimension_numbers = #tpu.dot_dimension_numbers<[1], [0], [0], [1], [0, 0, 1, 1], [], []>} : vector<128x128xf32>, vector<128x384xf32>, vector<128x384xf32> -> vector<128x384xf32>
    %90 = vector.broadcast %74 : vector<1x384xf32> to vector<128x384xf32>
    %91 = arith.addf %89, %90 : vector<128x384xf32>
    %cst_49 = arith.constant dense<0.000000e+00> : vector<16x384xf32>
    %92 = tpu.matmul %73, %72, %cst_49 {dimension_numbers = #tpu.dot_dimension_numbers<[1], [0], [0], [1], [0, 0, 1, 1], [], []>} : vector<16x128xf32>, vector<128x384xf32>, vector<16x384xf32> -> vector<16x384xf32>
    %93 = vector.broadcast %75 : vector<1x384xf32> to vector<16x384xf32>
    %94 = arith.addf %92, %93 : vector<16x384xf32>
    %95 = vector.shape_cast %94 : vector<16x384xf32> to vector<1x16x384xf32>
    %96 = vector.shape_cast %95 : vector<1x16x384xf32> to vector<1x16x384xf32>
    %97 = vector.broadcast %96 : vector<1x16x384xf32> to vector<8x16x384xf32>
    %98 = vector.shape_cast %97 : vector<8x16x384xf32> to vector<128x384xf32>
    %99 = vector.shape_cast %73 : vector<16x128xf32> to vector<1x16x128xf32>
    %100 = vector.shape_cast %99 : vector<1x16x128xf32> to vector<1x16x128xf32>
    %101 = vector.broadcast %100 : vector<1x16x128xf32> to vector<8x16x128xf32>
    %102 = vector.shape_cast %101 : vector<8x16x128xf32> to vector<128x128xf32>
    %103 = vector.extract_strided_slice %91 {offsets = [0, 0], sizes = [128, 128], strides = [1, 1]} : vector<128x384xf32> to vector<128x128xf32>
    %104 = vector.extract_strided_slice %98 {offsets = [0, 0], sizes = [128, 128], strides = [1, 1]} : vector<128x384xf32> to vector<128x128xf32>
    %105 = arith.addf %103, %104 : vector<128x128xf32>
    %106 = arith.negf %105 : vector<128x128xf32>
    %107 = math.exp %106 : vector<128x128xf32>
    %cst_50 = arith.constant 1.000000e+00 : f32
    %108 = vector.broadcast %cst_50 : f32 to vector<128x128xf32>
    %109 = arith.addf %108, %107 : vector<128x128xf32>
    %110 = arith.divf %108, %109 : vector<128x128xf32>
    %111 = vector.extract_strided_slice %91 {offsets = [0, 128], sizes = [128, 128], strides = [1, 1]} : vector<128x384xf32> to vector<128x128xf32>
    %112 = vector.extract_strided_slice %98 {offsets = [0, 128], sizes = [128, 128], strides = [1, 1]} : vector<128x384xf32> to vector<128x128xf32>
    %113 = arith.addf %111, %112 : vector<128x128xf32>
    %114 = arith.negf %113 : vector<128x128xf32>
    %115 = math.exp %114 : vector<128x128xf32>
    %cst_51 = arith.constant 1.000000e+00 : f32
    %116 = vector.broadcast %cst_51 : f32 to vector<128x128xf32>
    %117 = arith.addf %116, %115 : vector<128x128xf32>
    %118 = arith.divf %116, %117 : vector<128x128xf32>
    %119 = vector.extract_strided_slice %91 {offsets = [0, 256], sizes = [128, 128], strides = [1, 1]} : vector<128x384xf32> to vector<128x128xf32>
    %120 = vector.extract_strided_slice %98 {offsets = [0, 256], sizes = [128, 128], strides = [1, 1]} : vector<128x384xf32> to vector<128x128xf32>
    %121 = arith.mulf %110, %120 : vector<128x128xf32>
    %122 = arith.addf %119, %121 : vector<128x128xf32>
    %123 = math.tanh %122 : vector<128x128xf32>
    %cst_52 = arith.constant 1.000000e+00 : f32
    %124 = vector.broadcast %cst_52 : f32 to vector<128x128xf32>
    %125 = arith.subf %124, %118 : vector<128x128xf32>
    %126 = arith.mulf %125, %123 : vector<128x128xf32>
    %127 = arith.mulf %118, %102 : vector<128x128xf32>
    %128 = arith.addf %126, %127 : vector<128x128xf32>
    %129 = vector.broadcast %77 : vector<1x128xf32> to vector<128x128xf32>
    %130 = arith.mulf %128, %129 : vector<128x128xf32>
    %131 = vector.broadcast %78 : vector<1x128xf32> to vector<128x128xf32>
    %132 = arith.addf %130, %131 : vector<128x128xf32>
    %c0_53 = arith.constant 0 : index
    %c0_54 = arith.constant 0 : index
    %133 = vector.load %arg16[%c0_53, %c0_54] : memref<128x128xf32, #tpu.memory_space<vmem>>, vector<128x128xf32>
    tpu.vector_store %arg16[%c0_53, %c0_54], %132 {strides = array<i32>} : memref<128x128xf32, #tpu.memory_space<vmem>>, vector<128x128xf32>,
    %c0_55 = arith.constant 0 : index
    %c0_56 = arith.constant 0 : index
    %134 = vector.load %arg13[%c0_55, %c0_56] : memref<128x128xf32, #tpu.memory_space<vmem>>, vector<128x128xf32>
    %c0_57 = arith.constant 0 : index
    %c0_58 = arith.constant 0 : index
    %135 = vector.load %arg14[%c0_57, %c0_58] : memref<1x128xf32, #tpu.memory_space<vmem>>, vector<1x128xf32>
    %cst_59 = arith.constant dense<0.000000e+00> : vector<128x128xf32>
    %136 = tpu.matmul %132, %134, %cst_59 {dimension_numbers = #tpu.dot_dimension_numbers<[1], [0], [0], [1], [0, 0, 1, 1], [], []>} : vector<128x128xf32>, vector<128x128xf32>, vector<128x128xf32> -> vector<128x128xf32>
    %137 = vector.broadcast %135 : vector<1x128xf32> to vector<128x128xf32>
    %138 = arith.addf %136, %137 : vector<128x128xf32>
    %c0_60 = arith.constant 0 : index
    %c0_61 = arith.constant 0 : index
    %139 = vector.load %arg17[%c0_60, %c0_61] : memref<128x128xf32, #tpu.memory_space<vmem>>, vector<128x128xf32>
    tpu.vector_store %arg17[%c0_60, %c0_61], %138 {strides = array<i32>} : memref<128x128xf32, #tpu.memory_space<vmem>>, vector<128x128xf32>,
    return
  }
  func.func @transform_0(%arg0: i32) -> (i32, i32, i32) {
    %c0_i32 = arith.constant 0 : i32
    %c0_i32_0 = arith.constant 0 : i32
    %c0_i32_1 = arith.constant 0 : i32
    return %arg0, %c0_i32, %c0_i32_0 : i32, i32, i32
  }
  func.func @transform_1(%arg0: i32) -> (i32, i32) {
    %c0_i32 = arith.constant 0 : i32
    %c0_i32_0 = arith.constant 0 : i32
    %c0_i32_1 = arith.constant 0 : i32
    return %c0_i32, %c0_i32_0 : i32, i32
  }
  func.func @transform_2(%arg0: i32) -> (i32, i32) {
    %c0_i32 = arith.constant 0 : i32
    %c0_i32_0 = arith.constant 0 : i32
    %c0_i32_1 = arith.constant 0 : i32
    return %c0_i32, %c0_i32_0 : i32, i32
  }
  func.func @transform_3(%arg0: i32) -> (i32, i32) {
    %c0_i32 = arith.constant 0 : i32
    %c0_i32_0 = arith.constant 0 : i32
    %c0_i32_1 = arith.constant 0 : i32
    return %c0_i32, %c0_i32_0 : i32, i32
  }
  func.func @transform_4(%arg0: i32) -> (i32, i32) {
    %c0_i32 = arith.constant 0 : i32
    %c0_i32_0 = arith.constant 0 : i32
    %c0_i32_1 = arith.constant 0 : i32
    return %c0_i32, %c0_i32_0 : i32, i32
  }
  func.func @transform_5(%arg0: i32) -> (i32, i32) {
    %c0_i32 = arith.constant 0 : i32
    %c0_i32_0 = arith.constant 0 : i32
    %c0_i32_1 = arith.constant 0 : i32
    return %c0_i32, %c0_i32_0 : i32, i32
  }
  func.func @transform_6(%arg0: i32) -> (i32, i32) {
    %c0_i32 = arith.constant 0 : i32
    %c0_i32_0 = arith.constant 0 : i32
    %c0_i32_1 = arith.constant 0 : i32
    return %c0_i32, %c0_i32_0 : i32, i32
  }
  func.func @transform_7(%arg0: i32) -> (i32, i32) {
    %c0_i32 = arith.constant 0 : i32
    %c0_i32_0 = arith.constant 0 : i32
    %c0_i32_1 = arith.constant 0 : i32
    return %c0_i32, %c0_i32_0 : i32, i32
  }
  func.func @transform_8(%arg0: i32) -> (i32, i32) {
    %c0_i32 = arith.constant 0 : i32
    %c0_i32_0 = arith.constant 0 : i32
    %c0_i32_1 = arith.constant 0 : i32
    return %c0_i32, %c0_i32_0 : i32, i32
  }
  func.func @transform_9(%arg0: i32) -> (i32, i32) {
    %c0_i32 = arith.constant 0 : i32
    %c0_i32_0 = arith.constant 0 : i32
    %c0_i32_1 = arith.constant 0 : i32
    return %c0_i32, %c0_i32_0 : i32, i32
  }
  func.func @transform_10(%arg0: i32) -> (i32, i32) {
    %c0_i32 = arith.constant 0 : i32
    %c0_i32_0 = arith.constant 0 : i32
    %c0_i32_1 = arith.constant 0 : i32
    return %c0_i32, %c0_i32_0 : i32, i32
  }
  func.func @transform_11(%arg0: i32) -> (i32, i32) {
    %c0_i32 = arith.constant 0 : i32
    %c0_i32_0 = arith.constant 0 : i32
    %c0_i32_1 = arith.constant 0 : i32
    return %c0_i32, %c0_i32_0 : i32, i32
  }
  func.func @transform_12(%arg0: i32) -> (i32, i32) {
    %c0_i32 = arith.constant 0 : i32
    %c0_i32_0 = arith.constant 0 : i32
    %c0_i32_1 = arith.constant 0 : i32
    return %c0_i32, %c0_i32_0 : i32, i32
  }
  func.func @transform_13(%arg0: i32) -> (i32, i32) {
    %c0_i32 = arith.constant 0 : i32
    %c0_i32_0 = arith.constant 0 : i32
    %c0_i32_1 = arith.constant 0 : i32
    return %c0_i32, %c0_i32_0 : i32, i32
  }
  func.func @transform_14(%arg0: i32) -> (i32, i32) {
    %c0_i32 = arith.constant 0 : i32
    %c0_i32_0 = arith.constant 0 : i32
    return %arg0, %c0_i32 : i32, i32
  }
  func.func @transform_15(%arg0: i32) -> (i32, i32) {
    %c0_i32 = arith.constant 0 : i32
    %c0_i32_0 = arith.constant 0 : i32
    return %arg0, %c0_i32 : i32, i32
  }
  func.func @transform_16(%arg0: i32) -> (i32, i32) {
    %c0_i32 = arith.constant 0 : i32
    %c0_i32_0 = arith.constant 0 : i32
    return %arg0, %c0_i32 : i32, i32
  }
}

</mosaic_0001>

<llo_original>
// kernel: tpu_custom_call.1
$region0: #{tpu_custom_call.1}
  #allocation0 [shape = 'u32[]', space=smem, size = 0x4, offset = 0x4, fixed_abs, tag = 'smem constant byte address 0x4 - core index']
  #allocation1 [shape = 'u32[144,128]{1,0:T(1,128)}', space=vmem, size = 0x12000, scoped, tag = 'internal scratch']
  %s0 = inlined_call_operand.vmem [shape: f32[8,16,4], index: 0, kind: input, shape index: {}]
  %s1 = inlined_call_operand.vmem [shape: f32[16,16], index: 1, kind: input, shape index: {}]
  %s2 = inlined_call_operand.vmem [shape: f32[4,256], index: 2, kind: input, shape index: {}]
  %s3 = inlined_call_operand.hbm [shape: f32[128,384], index: 3, kind: input, shape index: {}]
  %s4 = inlined_call_operand.hbm [shape: f32[128,384], index: 4, kind: input, shape index: {}]
  %s5 = inlined_call_operand.vmem [shape: f32[8,384], index: 5, kind: input, shape index: {}]
  %s6 = inlined_call_operand.hbm [shape: f32[16,128], index: 6, kind: input, shape index: {}]
  %s7 = inlined_call_operand.hbm [shape: f32[128,256], index: 7, kind: input, shape index: {}]
  %s8 = inlined_call_operand.hbm [shape: f32[128,384], index: 8, kind: input, shape index: {}]
  %s9 = inlined_call_operand.hbm [shape: f32[128,384], index: 9, kind: input, shape index: {}]
  %s10 = inlined_call_operand.vmem [shape: f32[8,384], index: 10, kind: input, shape index: {}]
  %s11 = inlined_call_operand.hbm [shape: f32[16,128], index: 11, kind: input, shape index: {}]
  %s12 = inlined_call_operand.vmem [shape: f32[128,128], index: 12, kind: input, shape index: {}]
  %s13 = inlined_call_operand.vmem [shape: f32[1,128], index: 13, kind: input, shape index: {}]
  %s14 = inlined_call_operand.hbm [shape: f32[128,128], index: 14, kind: output, shape index: {0}]
  %s15 = inlined_call_operand.hbm [shape: f32[128,128], index: 15, kind: output, shape index: {1}]
  %s16 = inlined_call_operand.hbm [shape: f32[128,128], index: 16, kind: output, shape index: {2}]
  %17 = xla_tuple %s14, %s15, %s16
  %s18 = sld [smem:[#allocation0]]
  $region110: #{tpu_custom_call.1} parent=0
    _
  %s20 = ssub.s32 1, %s18
  %s21 = scalar_select 0, %s20, %s18
  $region1: #{tpu_custom_call.1} parent=0
    #allocation2 [shape = 'u8[196608]{0}', space=vmem, size = 0x30000, scoped, tag = 'input window, operand 3, single buffered']
    #allocation3 [shape = 's32[1]{0}', space=sflag, size = 0x4, scoped, tag = 'scoped memory for tpu_custom_call.1']
    #allocation4 [shape = 's32[1]{0}', space=sflag, size = 0x4, scoped, tag = 'scoped memory for tpu_custom_call.1']
    #allocation5 [shape = 'u8[196608]{0}', space=vmem, size = 0x30000, scoped, tag = 'input window, operand 4, single buffered']
    #allocation6 [shape = 's32[1]{0}', space=sflag, size = 0x4, scoped, tag = 'scoped memory for tpu_custom_call.1']
    #allocation7 [shape = 'u8[8192]{0}', space=vmem, size = 0x2000, scoped, tag = 'input window, operand 6, single buffered']
    #allocation8 [shape = 'u8[131072]{0}', space=vmem, size = 0x20000, scoped, tag = 'input window, operand 7, single buffered']
    #allocation9 [shape = 's32[1]{0}', space=sflag, size = 0x4, scoped, tag = 'scoped memory for tpu_custom_call.1']
    #allocation10 [shape = 'u8[196608]{0}', space=vmem, size = 0x30000, scoped, tag = 'input window, operand 8, single buffered']
    #allocation11 [shape = 'u8[196608]{0}', space=vmem, size = 0x30000, scoped, tag = 'input window, operand 9, single buffered']
    #allocation12 [shape = 's32[1]{0}', space=sflag, size = 0x4, scoped, tag = 'scoped memory for tpu_custom_call.1']
    #allocation13 [shape = 'u8[8192]{0}', space=vmem, size = 0x2000, scoped, tag = 'input window, operand 11, single buffered']
    #allocation14 [shape = 'u8[65536]{0}', space=vmem, size = 0x10000, scoped, tag = 'output window, operand 0, single buffered']
    #allocation15 [shape = 'u8[65536]{0}', space=vmem, size = 0x10000, scoped, tag = 'output window, operand 1, single buffered']
    #allocation16 [shape = 's32[1]{0}', space=sflag, size = 0x4, scoped, tag = 'scoped memory for tpu_custom_call.1']
    #allocation17 [shape = 'u8[65536]{0}', space=vmem, size = 0x10000, scoped, tag = 'output window, operand 2, single buffered']
    %22 = vsyncpa [#allocation3], 0
    %23 = vsyncpa [#allocation6], 0
    %24 = vsyncpa [#allocation9], 0
    %25 = vsyncpa [#allocation12], 0
    %26 = vsyncpa [#allocation4], 0
    %27 = vsyncpa [#allocation16], 0
    // Predicated region
    $region2: #{tpu_custom_call.1} parent=1 // pred_check
      _
    $region3: #{tpu_custom_call.1} parent=1 // pred_check_branch
      %29 = sbr.rel (0) target = $region5
    $region4: #{tpu_custom_call.1} parent=1 // pred_region
      _
    $region5: #{tpu_custom_call.1} parent=1 // pred_fallthru
      _
    // Predicated region
    $region6: #{tpu_custom_call.1} parent=1 // pred_check
      _
    $region7: #{tpu_custom_call.1} parent=1 // pred_check_branch
      %31 = sbr.rel (0) target = $region9
    $region8: #{tpu_custom_call.1} parent=1 // pred_region
      _
    $region9: #{tpu_custom_call.1} parent=1 // pred_fallthru
      _
    // Predicated region
    $region10: #{tpu_custom_call.1} parent=1 // pred_check
      _
    $region11: #{tpu_custom_call.1} parent=1 // pred_check_branch
      %33 = sbr.rel (0) target = $region13
    $region12: #{tpu_custom_call.1} parent=1 // pred_region
      _
    $region13: #{tpu_custom_call.1} parent=1 // pred_fallthru
      _
    // Predicated region
    $region14: #{tpu_custom_call.1} parent=1 // pred_check
      _
    $region15: #{tpu_custom_call.1} parent=1 // pred_check_branch
      %35 = sbr.rel (0) target = $region17
    $region16: #{tpu_custom_call.1} parent=1 // pred_region
      %s37 = ssub.s32 6144, 6144
      %38 = vsyncadd [#allocation3], %s37
      %s39 = sshll.u32 [#allocation2], 4
      %s40 = int_to_ptr.vmem [resolvable:$true] %s39
      %45 = dma.hbm_to_vmem [thread:$0]  %s3, 6144, %s40, [#allocation3], 384, 384, 24
    $region17: #{tpu_custom_call.1} parent=1 // pred_fallthru
      _
    // Predicated region
    $region18: #{tpu_custom_call.1} parent=1 // pred_check
      _
    $region19: #{tpu_custom_call.1} parent=1 // pred_check_branch
      %47 = sbr.rel (0) target = $region21
    $region20: #{tpu_custom_call.1} parent=1 // pred_region
      %s49 = ssub.s32 6144, 6144
      %50 = vsyncadd [#allocation6], %s49
      %s51 = sshll.u32 [#allocation5], 4
      %s52 = int_to_ptr.vmem [resolvable:$true] %s51
      %57 = dma.hbm_to_vmem [thread:$0]  %s4, 6144, %s52, [#allocation6], 384, 384, 24
    $region21: #{tpu_custom_call.1} parent=1 // pred_fallthru
      _
    // Predicated region
    $region22: #{tpu_custom_call.1} parent=1 // pred_check
      _
    $region23: #{tpu_custom_call.1} parent=1 // pred_check_branch
      %59 = sbr.rel (0) target = $region25
    $region24: #{tpu_custom_call.1} parent=1 // pred_region
      _
    $region25: #{tpu_custom_call.1} parent=1 // pred_fallthru
      _
    // Predicated region
    $region26: #{tpu_custom_call.1} parent=1 // pred_check
      _
    $region27: #{tpu_custom_call.1} parent=1 // pred_check_branch
      %61 = sbr.rel (0) target = $region29
    $region28: #{tpu_custom_call.1} parent=1 // pred_region
      %s63 = ssub.s32 256, 256
      %64 = vsyncadd [#allocation6], %s63
      %s65 = sshll.u32 [#allocation7], 4
      %s66 = int_to_ptr.vmem [resolvable:$true] %s65
      %71 = dma.hbm_to_vmem [thread:$0]  %s6, 256, %s66, [#allocation6], 128, 128, 8
    $region29: #{tpu_custom_call.1} parent=1 // pred_fallthru
      _
    // Predicated region
    $region30: #{tpu_custom_call.1} parent=1 // pred_check
      _
    $region31: #{tpu_custom_call.1} parent=1 // pred_check_branch
      %73 = sbr.rel (0) target = $region33
    $region32: #{tpu_custom_call.1} parent=1 // pred_region
      %s75 = ssub.s32 4096, 4096
      %76 = vsyncadd [#allocation9], %s75
      %s77 = sshll.u32 [#allocation8], 4
      %s78 = int_to_ptr.vmem [resolvable:$true] %s77
      %83 = dma.hbm_to_vmem [thread:$0]  %s7, 4096, %s78, [#allocation9], 256, 256, 16
    $region33: #{tpu_custom_call.1} parent=1 // pred_fallthru
      _
    // Predicated region
    $region34: #{tpu_custom_call.1} parent=1 // pred_check
      _
    $region35: #{tpu_custom_call.1} parent=1 // pred_check_branch
      %85 = sbr.rel (0) target = $region37
    $region36: #{tpu_custom_call.1} parent=1 // pred_region
      %s87 = ssub.s32 6144, 6144
      %88 = vsyncadd [#allocation9], %s87
      %s89 = sshll.u32 [#allocation10], 4
      %s90 = int_to_ptr.vmem [resolvable:$true] %s89
      %95 = dma.hbm_to_vmem [thread:$0]  %s8, 6144, %s90, [#allocation9], 384, 384, 24
    $region37: #{tpu_custom_call.1} parent=1 // pred_fallthru
      _
    // Predicated region
    $region38: #{tpu_custom_call.1} parent=1 // pred_check
      _
    $region39: #{tpu_custom_call.1} parent=1 // pred_check_branch
      %97 = sbr.rel (0) target = $region41
    $region40: #{tpu_custom_call.1} parent=1 // pred_region
      %s99 = ssub.s32 6144, 6144
      %100 = vsyncadd [#allocation12], %s99
      %s101 = sshll.u32 [#allocation11], 4
      %s102 = int_to_ptr.vmem [resolvable:$true] %s101
      %107 = dma.hbm_to_vmem [thread:$0]  %s9, 6144, %s102, [#allocation12], 384, 384, 24
    $region41: #{tpu_custom_call.1} parent=1 // pred_fallthru
      _
    // Predicated region
    $region42: #{tpu_custom_call.1} parent=1 // pred_check
      _
    $region43: #{tpu_custom_call.1} parent=1 // pred_check_branch
      %109 = sbr.rel (0) target = $region45
    $region44: #{tpu_custom_call.1} parent=1 // pred_region
      _
    $region45: #{tpu_custom_call.1} parent=1 // pred_fallthru
      _
    // Predicated region
    $region46: #{tpu_custom_call.1} parent=1 // pred_check
      _
    $region47: #{tpu_custom_call.1} parent=1 // pred_check_branch
      %111 = sbr.rel (0) target = $region49
    $region48: #{tpu_custom_call.1} parent=1 // pred_region
      %s113 = ssub.s32 256, 256
      %114 = vsyncadd [#allocation12], %s113
      %s115 = sshll.u32 [#allocation13], 4
      %s116 = int_to_ptr.vmem [resolvable:$true] %s115
      %121 = dma.hbm_to_vmem [thread:$0]  %s11, 256, %s116, [#allocation12], 128, 128, 8
    $region49: #{tpu_custom_call.1} parent=1 // pred_fallthru
      _
    // Predicated region
    $region50: #{tpu_custom_call.1} parent=1 // pred_check
      _
    $region51: #{tpu_custom_call.1} parent=1 // pred_check_branch
      %123 = sbr.rel (0) target = $region53
    $region52: #{tpu_custom_call.1} parent=1 // pred_region
      _
    $region53: #{tpu_custom_call.1} parent=1 // pred_fallthru
      _
    // Predicated region
    $region54: #{tpu_custom_call.1} parent=1 // pred_check
      _
    $region55: #{tpu_custom_call.1} parent=1 // pred_check_branch
      %125 = sbr.rel (0) target = $region57
    $region56: #{tpu_custom_call.1} parent=1 // pred_region
      _
    $region57: #{tpu_custom_call.1} parent=1 // pred_fallthru
      _
    // Predicated region
    $region58: #{tpu_custom_call.1} parent=1 // pred_check
      _
    $region59: #{tpu_custom_call.1} parent=1 // pred_check_branch
      %127 = sbr.rel (0) target = $region61
    $region60: #{tpu_custom_call.1} parent=1 // pred_region
      %128 = dma.done [#allocation3], 6144
    $region61: #{tpu_custom_call.1} parent=1 // pred_fallthru
      _
    // Predicated region
    $region62: #{tpu_custom_call.1} parent=1 // pred_check
      _
    $region63: #{tpu_custom_call.1} parent=1 // pred_check_branch
      %130 = sbr.rel (0) target = $region65
    $region64: #{tpu_custom_call.1} parent=1 // pred_region
      %131 = dma.done [#allocation6], 6144
    $region65: #{tpu_custom_call.1} parent=1 // pred_fallthru
      _
    // Predicated region
    $region66: #{tpu_custom_call.1} parent=1 // pred_check
      _
    $region67: #{tpu_custom_call.1} parent=1 // pred_check_branch
      %133 = sbr.rel (0) target = $region69
    $region68: #{tpu_custom_call.1} parent=1 // pred_region
      %134 = dma.done [#allocation6], 256
    $region69: #{tpu_custom_call.1} parent=1 // pred_fallthru
      _
    // Predicated region
    $region70: #{tpu_custom_call.1} parent=1 // pred_check
      _
    $region71: #{tpu_custom_call.1} parent=1 // pred_check_branch
      %136 = sbr.rel (0) target = $region73
    $region72: #{tpu_custom_call.1} parent=1 // pred_region
      %137 = dma.done [#allocation9], 4096
    $region73: #{tpu_custom_call.1} parent=1 // pred_fallthru
      _
    // Predicated region
    $region74: #{tpu_custom_call.1} parent=1 // pred_check
      _
    $region75: #{tpu_custom_call.1} parent=1 // pred_check_branch
      %139 = sbr.rel (0) target = $region77
    $region76: #{tpu_custom_call.1} parent=1 // pred_region
      %140 = dma.done [#allocation9], 6144
    $region77: #{tpu_custom_call.1} parent=1 // pred_fallthru
      _
    // Predicated region
    $region78: #{tpu_custom_call.1} parent=1 // pred_check
      _
    $region79: #{tpu_custom_call.1} parent=1 // pred_check_branch
      %142 = sbr.rel (0) target = $region81
    $region80: #{tpu_custom_call.1} parent=1 // pred_region
      %143 = dma.done [#allocation12], 6144
    $region81: #{tpu_custom_call.1} parent=1 // pred_fallthru
      _
    // Predicated region
    $region82: #{tpu_custom_call.1} parent=1 // pred_check
      _
    $region83: #{tpu_custom_call.1} parent=1 // pred_check_branch
      %145 = sbr.rel (0) target = $region85
    $region84: #{tpu_custom_call.1} parent=1 // pred_region
      %146 = dma.done [#allocation12], 256
    $region85: #{tpu_custom_call.1} parent=1 // pred_fallthru
      _
    %v147 = vld [vmem:[%s0] sm:$0xff]
    %v148 = vld [vmem:[%s0 + $0x8] sm:$0xff]
    %v149 = vld [vmem:[%s0 + $0x10] sm:$0xff]
    %v150 = vld [vmem:[%s0 + $0x18] sm:$0xff]
    %v151 = vld [vmem:[%s0 + $0x20] sm:$0xff]
    %v152 = vld [vmem:[%s0 + $0x28] sm:$0xff]
    %v153 = vld [vmem:[%s0 + $0x30] sm:$0xff]
    %v154 = vld [vmem:[%s0 + $0x38] sm:$0xff]
    %v155 = vld [vmem:[%s0 + $0x40] sm:$0xff]
    %v156 = vld [vmem:[%s0 + $0x48] sm:$0xff]
    %v157 = vld [vmem:[%s0 + $0x50] sm:$0xff]
    %v158 = vld [vmem:[%s0 + $0x58] sm:$0xff]
    %v159 = vld [vmem:[%s0 + $0x60] sm:$0xff]
    %v160 = vld [vmem:[%s0 + $0x68] sm:$0xff]
    %v161 = vld [vmem:[%s0 + $0x70] sm:$0xff]
    %v162 = vld [vmem:[%s0 + $0x78] sm:$0xff]
    %v163 = vld [vmem:[%s1] sm:$0xff]
    %v164 = vld [vmem:[%s1 + $0x8] sm:$0xff]
    %v165 = vld [vmem:[%s2] sm:$0xff]
    %v166 = vld [vmem:[#allocation2] sm:$0xff]
    %v167 = vld [vmem:[#allocation2 + $0x8] sm:$0xff]
    %v168 = vld [vmem:[#allocation2 + $0x10] sm:$0xff]
    %v169 = vld [vmem:[#allocation2 + $0x18] sm:$0xff]
    %v170 = vld [vmem:[#allocation2 + $0x20] sm:$0xff]
    %v171 = vld [vmem:[#allocation2 + $0x28] sm:$0xff]
    %v172 = vld [vmem:[#allocation2 + $0x30] sm:$0xff]
    %v173 = vld [vmem:[#allocation2 + $0x38] sm:$0xff]
    %v174 = vld [vmem:[#allocation2 + $0x40] sm:$0xff]
    %v175 = vld [vmem:[#allocation2 + $0x48] sm:$0xff]
    %v176 = vld [vmem:[#allocation2 + $0x50] sm:$0xff]
    %v177 = vld [vmem:[#allocation2 + $0x58] sm:$0xff]
    %v178 = vld [vmem:[#allocation2 + $0x60] sm:$0xff]
    %v179 = vld [vmem:[#allocation2 + $0x68] sm:$0xff]
    %v180 = vld [vmem:[#allocation2 + $0x70] sm:$0xff]
    %v181 = vld [vmem:[#allocation2 + $0x78] sm:$0xff]
    %v182 = vld [vmem:[#allocation2 + $0x80] sm:$0xff]
    %v183 = vld [vmem:[#allocation2 + $0x88] sm:$0xff]
    %v184 = vld [vmem:[#allocation2 + $0x90] sm:$0xff]
    %v185 = vld [vmem:[#allocation2 + $0x98] sm:$0xff]
    %v186 = vld [vmem:[#allocation2 + $0xa0] sm:$0xff]
    %v187 = vld [vmem:[#allocation2 + $0xa8] sm:$0xff]
    %v188 = vld [vmem:[#allocation2 + $0xb0] sm:$0xff]
    %v189 = vld [vmem:[#allocation2 + $0xb8] sm:$0xff]
    %v190 = vld [vmem:[#allocation2 + $0xc0] sm:$0xff]
    %v191 = vld [vmem:[#allocation2 + $0xc8] sm:$0xff]
    %v192 = vld [vmem:[#allocation2 + $0xd0] sm:$0xff]
    %v193 = vld [vmem:[#allocation2 + $0xd8] sm:$0xff]
    %v194 = vld [vmem:[#allocation2 + $0xe0] sm:$0xff]
    %v195 = vld [vmem:[#allocation2 + $0xe8] sm:$0xff]
    %v196 = vld [vmem:[#allocation2 + $0xf0] sm:$0xff]
    %v197 = vld [vmem:[#allocation2 + $0xf8] sm:$0xff]
    %v198 = vld [vmem:[#allocation2 + $0x100] sm:$0xff]
    %v199 = vld [vmem:[#allocation2 + $0x108] sm:$0xff]
    %v200 = vld [vmem:[#allocation2 + $0x110] sm:$0xff]
    %v201 = vld [vmem:[#allocation2 + $0x118] sm:$0xff]
    %v202 = vld [vmem:[#allocation2 + $0x120] sm:$0xff]
    %v203 = vld [vmem:[#allocation2 + $0x128] sm:$0xff]
    %v204 = vld [vmem:[#allocation2 + $0x130] sm:$0xff]
    %v205 = vld [vmem:[#allocation2 + $0x138] sm:$0xff]
    %v206 = vld [vmem:[#allocation2 + $0x140] sm:$0xff]
    %v207 = vld [vmem:[#allocation2 + $0x148] sm:$0xff]
    %v208 = vld [vmem:[#allocation2 + $0x150] sm:$0xff]
    %v209 = vld [vmem:[#allocation2 + $0x158] sm:$0xff]
    %v210 = vld [vmem:[#allocation2 + $0x160] sm:$0xff]
    %v211 = vld [vmem:[#allocation2 + $0x168] sm:$0xff]
    %v212 = vld [vmem:[#allocation2 + $0x170] sm:$0xff]
    %v213 = vld [vmem:[#allocation2 + $0x178] sm:$0xff]
    %v214 = vld [vmem:[#allocation5] sm:$0xff]
    %v215 = vld [vmem:[#allocation5 + $0x8] sm:$0xff]
    %v216 = vld [vmem:[#allocation5 + $0x10] sm:$0xff]
    %v217 = vld [vmem:[#allocation5 + $0x18] sm:$0xff]
    %v218 = vld [vmem:[#allocation5 + $0x20] sm:$0xff]
    %v219 = vld [vmem:[#allocation5 + $0x28] sm:$0xff]
    %v220 = vld [vmem:[#allocation5 + $0x30] sm:$0xff]
    %v221 = vld [vmem:[#allocation5 + $0x38] sm:$0xff]
    %v222 = vld [vmem:[#allocation5 + $0x40] sm:$0xff]
    %v223 = vld [vmem:[#allocation5 + $0x48] sm:$0xff]
    %v224 = vld [vmem:[#allocation5 + $0x50] sm:$0xff]
    %v225 = vld [vmem:[#allocation5 + $0x58] sm:$0xff]
    %v226 = vld [vmem:[#allocation5 + $0x60] sm:$0xff]
    %v227 = vld [vmem:[#allocation5 + $0x68] sm:$0xff]
    %v228 = vld [vmem:[#allocation5 + $0x70] sm:$0xff]
    %v229 = vld [vmem:[#allocation5 + $0x78] sm:$0xff]
    %v230 = vld [vmem:[#allocation5 + $0x80] sm:$0xff]
    %v231 = vld [vmem:[#allocation5 + $0x88] sm:$0xff]
    %v232 = vld [vmem:[#allocation5 + $0x90] sm:$0xff]
    %v233 = vld [vmem:[#allocation5 + $0x98] sm:$0xff]
    %v234 = vld [vmem:[#allocation5 + $0xa0] sm:$0xff]
    %v235 = vld [vmem:[#allocation5 + $0xa8] sm:$0xff]
    %v236 = vld [vmem:[#allocation5 + $0xb0] sm:$0xff]
    %v237 = vld [vmem:[#allocation5 + $0xb8] sm:$0xff]
    %v238 = vld [vmem:[#allocation5 + $0xc0] sm:$0xff]
    %v239 = vld [vmem:[#allocation5 + $0xc8] sm:$0xff]
    %v240 = vld [vmem:[#allocation5 + $0xd0] sm:$0xff]
    %v241 = vld [vmem:[#allocation5 + $0xd8] sm:$0xff]
    %v242 = vld [vmem:[#allocation5 + $0xe0] sm:$0xff]
    %v243 = vld [vmem:[#allocation5 + $0xe8] sm:$0xff]
    %v244 = vld [vmem:[#allocation5 + $0xf0] sm:$0xff]
    %v245 = vld [vmem:[#allocation5 + $0xf8] sm:$0xff]
    %v246 = vld [vmem:[#allocation5 + $0x100] sm:$0xff]
    %v247 = vld [vmem:[#allocation5 + $0x108] sm:$0xff]
    %v248 = vld [vmem:[#allocation5 + $0x110] sm:$0xff]
    %v249 = vld [vmem:[#allocation5 + $0x118] sm:$0xff]
    %v250 = vld [vmem:[#allocation5 + $0x120] sm:$0xff]
    %v251 = vld [vmem:[#allocation5 + $0x128] sm:$0xff]
    %v252 = vld [vmem:[#allocation5 + $0x130] sm:$0xff]
    %v253 = vld [vmem:[#allocation5 + $0x138] sm:$0xff]
    %v254 = vld [vmem:[#allocation5 + $0x140] sm:$0xff]
    %v255 = vld [vmem:[#allocation5 + $0x148] sm:$0xff]
    %v256 = vld [vmem:[#allocation5 + $0x150] sm:$0xff]
    %v257 = vld [vmem:[#allocation5 + $0x158] sm:$0xff]
    %v258 = vld [vmem:[#allocation5 + $0x160] sm:$0xff]
    %v259 = vld [vmem:[#allocation5 + $0x168] sm:$0xff]
    %v260 = vld [vmem:[#allocation5 + $0x170] sm:$0xff]
    %v261 = vld [vmem:[#allocation5 + $0x178] sm:$0xff]
    %v262 = vld [vmem:[#allocation7] sm:$0xff]
    %v263 = vld [vmem:[#allocation7 + $0x8] sm:$0xff]
    %v264 = vld [vmem:[%s5] ss:$8 sm:$0x7]
    %s265 = scalar_lea.vmem %s5, 1
    %v266 = vld [vmem:[%s265] ss:$8 sm:$0x7]
    %s267 = scalar_lea.vmem %s5, 2
    %v268 = vld [vmem:[%s267] ss:$8 sm:$0x3]
    %v269 = vld [vmem:[%s5 + $0x12] ss:$0 sm:$0xff]
    %v270 = vld [vmem:[%s5 + $0x3] ss:$0 sm:$0xff]
    %vm271 = vcmask 130048
    %v273 = vsel %vm271, %v163, 0
    %v276 = vsel %vm271, %v164, 0
    %278 = vmatprep.subr.mxu0 0.0
    %279 = vmatpush1.msra.mxu0 %v147
    %280 = vmatprep.subr.mxu0 0.0
    %281 = vmatpush1.msra.mxu0 %v148
    %282 = vmatprep.subr.mxu0 0.0
    %283 = vmatpush1.msra.mxu0 0.0
    %284 = vmatprep.subr.mxu0 0.0
    %285 = vmatpush1.msra.mxu0 0.0
    %286 = vmatprep.subr.mxu0 0.0
    %287 = vmatpush1.msra.mxu0 0.0
    %288 = vmatprep.subr.mxu0 0.0
    %289 = vmatpush1.msra.mxu0 0.0
    %290 = vmatprep.subr.mxu0 0.0
    %291 = vmatpush1.msra.mxu0 0.0
    %292 = vmatprep.subr.mxu0 0.0
    %293 = vmatpush1.msra.mxu0 0.0
    %294 = vmatprep.subr.mxu0 0.0
    %295 = vmatpush1.msra.mxu0 0.0
    %296 = vmatprep.subr.mxu0 0.0
    %297 = vmatpush1.msra.mxu0 0.0
    %298 = vmatprep.subr.mxu0 0.0
    %299 = vmatpush1.msra.mxu0 0.0
    %300 = vmatprep.subr.mxu0 0.0
    %301 = vmatpush1.msra.mxu0 0.0
    %302 = vmatprep.subr.mxu0 0.0
    %303 = vmatpush1.msra.mxu0 0.0
    %304 = vmatprep.subr.mxu0 0.0
    %305 = vmatpush1.msra.mxu0 0.0
    %306 = vmatprep.subr.mxu0 0.0
    %307 = vmatpush1.msra.mxu0 0.0
    %308 = vmatprep.subr.mxu0 0.0
    %309 = vmatpush1.msra.mxu0 0.0
    %310 = vmatprep.subr.mxu0 0.0
    %311 = vmatpush1.msra.mxu0 0.0
    %312 = vmatprep.subr.mxu0 0.0
    %313 = vmatpush1.msra.mxu0 0.0
    %314 = vmatprep.subr.mxu0 0.0
    %315 = vmatpush1.msra.mxu0 0.0
    %316 = vmatprep.subr.mxu0 0.0
    %317 = vmatpush1.msra.mxu0 0.0
    %318 = vmatprep.subr.mxu0 0.0
    %319 = vmatpush1.msra.mxu0 0.0
    %320 = vmatprep.subr.mxu0 0.0
    %321 = vmatpush1.msra.mxu0 0.0
    %322 = vmatprep.subr.mxu0 0.0
    %323 = vmatpush1.msra.mxu0 0.0
    %324 = vmatprep.subr.mxu0 0.0
    %325 = vmatpush1.msra.mxu0 0.0
    %326 = vmatprep.subr.mxu0 0.0
    %327 = vmatpush1.msra.mxu0 0.0
    %328 = vmatprep.subr.mxu0 0.0
    %329 = vmatpush1.msra.mxu0 0.0
    %330 = vmatprep.subr.mxu0 0.0
    %331 = vmatpush1.msra.mxu0 0.0
    %332 = vmatprep.subr.mxu0 0.0
    %333 = vmatpush1.msra.mxu0 0.0
    %334 = vmatprep.subr.mxu0 0.0
    %335 = vmatpush1.msra.mxu0 0.0
    %336 = vmatprep.subr.mxu0 0.0
    %337 = vmatpush1.msra.mxu0 0.0
    %338 = vmatprep.subr.mxu0 0.0
    %339 = vmatpush1.msra.mxu0 0.0
    %340 = vmatprep.subr.mxu0 0.0
    %341 = vmatpush1.msra.mxu0 0.0
    %342 = vmatprep.mubr.f32.mxu0 0.0
    %343 = vmatmul.mubr.f32.gmra.mrb[0].mxu0 %v273
    %v344 = vpop.f32.mrb[0].mxu0
    %v345 = vadd.f32 0.0, %v344
    %v346 = vpop.f32.mrb[0].mxu0
    %347 = vmatprep.mubr.f32.mxu0 0.0
    %348 = vmatmul.mubr.f32.gmra.mrb[0].mxu0 %v276
    %v349 = vpop.f32.mrb[0].mxu0
    %v350 = vadd.f32 0.0, %v349
    %v351 = vpop.f32.mrb[0].mxu0
    %352 = vdwg.mxu0
    %353 = vmatprep.subr.mxu0 0.0
    %354 = vmatpush1.msra.mxu0 %v149
    %355 = vmatprep.subr.mxu0 0.0
    %356 = vmatpush1.msra.mxu0 %v150
    %357 = vmatprep.subr.mxu0 0.0
    %358 = vmatpush1.msra.mxu0 0.0
    %359 = vmatprep.subr.mxu0 0.0
    %360 = vmatpush1.msra.mxu0 0.0
    %361 = vmatprep.subr.mxu0 0.0
    %362 = vmatpush1.msra.mxu0 0.0
    %363 = vmatprep.subr.mxu0 0.0
    %364 = vmatpush1.msra.mxu0 0.0
    %365 = vmatprep.subr.mxu0 0.0
    %366 = vmatpush1.msra.mxu0 0.0
    %367 = vmatprep.subr.mxu0 0.0
    %368 = vmatpush1.msra.mxu0 0.0
    %369 = vmatprep.subr.mxu0 0.0
    %370 = vmatpush1.msra.mxu0 0.0
    %371 = vmatprep.subr.mxu0 0.0
    %372 = vmatpush1.msra.mxu0 0.0
    %373 = vmatprep.subr.mxu0 0.0
    %374 = vmatpush1.msra.mxu0 0.0
    %375 = vmatprep.subr.mxu0 0.0
    %376 = vmatpush1.msra.mxu0 0.0
    %377 = vmatprep.subr.mxu0 0.0
    %378 = vmatpush1.msra.mxu0 0.0
    %379 = vmatprep.subr.mxu0 0.0
    %380 = vmatpush1.msra.mxu0 0.0
    %381 = vmatprep.subr.mxu0 0.0
    %382 = vmatpush1.msra.mxu0 0.0
    %383 = vmatprep.subr.mxu0 0.0
    %384 = vmatpush1.msra.mxu0 0.0
    %385 = vmatprep.subr.mxu0 0.0
    %386 = vmatpush1.msra.mxu0 0.0
    %387 = vmatprep.subr.mxu0 0.0
    %388 = vmatpush1.msra.mxu0 0.0
    %389 = vmatprep.subr.mxu0 0.0
    %390 = vmatpush1.msra.mxu0 0.0
    %391 = vmatprep.subr.mxu0 0.0
    %392 = vmatpush1.msra.mxu0 0.0
    %393 = vmatprep.subr.mxu0 0.0
    %394 = vmatpush1.msra.mxu0 0.0
    %395 = vmatprep.subr.mxu0 0.0
    %396 = vmatpush1.msra.mxu0 0.0
    %397 = vmatprep.subr.mxu0 0.0
    %398 = vmatpush1.msra.mxu0 0.0
    %399 = vmatprep.subr.mxu0 0.0
    %400 = vmatpush1.msra.mxu0 0.0
    %401 = vmatprep.subr.mxu0 0.0
    %402 = vmatpush1.msra.mxu0 0.0
    %403 = vmatprep.subr.mxu0 0.0
    %404 = vmatpush1.msra.mxu0 0.0
    %405 = vmatprep.subr.mxu0 0.0
    %406 = vmatpush1.msra.mxu0 0.0
    %407 = vmatprep.subr.mxu0 0.0
    %408 = vmatpush1.msra.mxu0 0.0
    %409 = vmatprep.subr.mxu0 0.0
    %410 = vmatpush1.msra.mxu0 0.0
    %411 = vmatprep.subr.mxu0 0.0
    %412 = vmatpush1.msra.mxu0 0.0
    %413 = vmatprep.subr.mxu0 0.0
    %414 = vmatpush1.msra.mxu0 0.0
    %415 = vmatprep.subr.mxu0 0.0
    %416 = vmatpush1.msra.mxu0 0.0
    %417 = vmatprep.mubr.f32.mxu0 0.0
    %418 = vmatmul.mubr.f32.gmra.mrb[0].mxu0 %v273
    %v419 = vpop.f32.mrb[0].mxu0
    %v420 = vadd.f32 0.0, %v419
    %v421 = vpop.f32.mrb[0].mxu0
    %422 = vmatprep.mubr.f32.mxu0 0.0
    %423 = vmatmul.mubr.f32.gmra.mrb[0].mxu0 %v276
    %v424 = vpop.f32.mrb[0].mxu0
    %v425 = vadd.f32 0.0, %v424
    %v426 = vpop.f32.mrb[0].mxu0
    %427 = vdwg.mxu0
    %428 = vmatprep.subr.mxu0 0.0
    %429 = vmatpush1.msra.mxu0 %v151
    %430 = vmatprep.subr.mxu0 0.0
    %431 = vmatpush1.msra.mxu0 %v152
    %432 = vmatprep.subr.mxu0 0.0
    %433 = vmatpush1.msra.mxu0 0.0
    %434 = vmatprep.subr.mxu0 0.0
    %435 = vmatpush1.msra.mxu0 0.0
    %436 = vmatprep.subr.mxu0 0.0
    %437 = vmatpush1.msra.mxu0 0.0
    %438 = vmatprep.subr.mxu0 0.0
    %439 = vmatpush1.msra.mxu0 0.0
    %440 = vmatprep.subr.mxu0 0.0
    %441 = vmatpush1.msra.mxu0 0.0
    %442 = vmatprep.subr.mxu0 0.0
    %443 = vmatpush1.msra.mxu0 0.0
    %444 = vmatprep.subr.mxu0 0.0
    %445 = vmatpush1.msra.mxu0 0.0
    %446 = vmatprep.subr.mxu0 0.0
    %447 = vmatpush1.msra.mxu0 0.0
    %448 = vmatprep.subr.mxu0 0.0
    %449 = vmatpush1.msra.mxu0 0.0
    %450 = vmatprep.subr.mxu0 0.0
    %451 = vmatpush1.msra.mxu0 0.0
    %452 = vmatprep.subr.mxu0 0.0
    %453 = vmatpush1.msra.mxu0 0.0
    %454 = vmatprep.subr.mxu0 0.0
    %455 = vmatpush1.msra.mxu0 0.0
    %456 = vmatprep.subr.mxu0 0.0
    %457 = vmatpush1.msra.mxu0 0.0
    %458 = vmatprep.subr.mxu0 0.0
    %459 = vmatpush1.msra.mxu0 0.0
    %460 = vmatprep.subr.mxu0 0.0
    %461 = vmatpush1.msra.mxu0 0.0
    %462 = vmatprep.subr.mxu0 0.0
    %463 = vmatpush1.msra.mxu0 0.0
    %464 = vmatprep.subr.mxu0 0.0
    %465 = vmatpush1.msra.mxu0 0.0
    %466 = vmatprep.subr.mxu0 0.0
    %467 = vmatpush1.msra.mxu0 0.0
    %468 = vmatprep.subr.mxu0 0.0
    %469 = vmatpush1.msra.mxu0 0.0
    %470 = vmatprep.subr.mxu0 0.0
    %471 = vmatpush1.msra.mxu0 0.0
    %472 = vmatprep.subr.mxu0 0.0
    %473 = vmatpush1.msra.mxu0 0.0
    %474 = vmatprep.subr.mxu0 0.0
    %475 = vmatpush1.msra.mxu0 0.0
    %476 = vmatprep.subr.mxu0 0.0
    %477 = vmatpush1.msra.mxu0 0.0
    %478 = vmatprep.subr.mxu0 0.0
    %479 = vmatpush1.msra.mxu0 0.0
    %480 = vmatprep.subr.mxu0 0.0
    %481 = vmatpush1.msra.mxu0 0.0
    %482 = vmatprep.subr.mxu0 0.0
    %483 = vmatpush1.msra.mxu0 0.0
    %484 = vmatprep.subr.mxu0 0.0
    %485 = vmatpush1.msra.mxu0 0.0
    %486 = vmatprep.subr.mxu0 0.0
    %487 = vmatpush1.msra.mxu0 0.0
    %488 = vmatprep.subr.mxu0 0.0
    %489 = vmatpush1.msra.mxu0 0.0
    %490 = vmatprep.subr.mxu0 0.0
    %491 = vmatpush1.msra.mxu0 0.0
    %492 = vmatprep.mubr.f32.mxu0 0.0
    %493 = vmatmul.mubr.f32.gmra.mrb[0].mxu0 %v273
    %v494 = vpop.f32.mrb[0].mxu0
    %v495 = vadd.f32 0.0, %v494
    %v496 = vpop.f32.mrb[0].mxu0
    %497 = vmatprep.mubr.f32.mxu0 0.0
    %498 = vmatmul.mubr.f32.gmra.mrb[0].mxu0 %v276
    %v499 = vpop.f32.mrb[0].mxu0
    %v500 = vadd.f32 0.0, %v499
    %v501 = vpop.f32.mrb[0].mxu0
    %502 = vdwg.mxu0
    %503 = vmatprep.subr.mxu0 0.0
    %504 = vmatpush1.msra.mxu0 %v153
    %505 = vmatprep.subr.mxu0 0.0
    %506 = vmatpush1.msra.mxu0 %v154
    %507 = vmatprep.subr.mxu0 0.0
    %508 = vmatpush1.msra.mxu0 0.0
    %509 = vmatprep.subr.mxu0 0.0
    %510 = vmatpush1.msra.mxu0 0.0
    %511 = vmatprep.subr.mxu0 0.0
    %512 = vmatpush1.msra.mxu0 0.0
    %513 = vmatprep.subr.mxu0 0.0
    %514 = vmatpush1.msra.mxu0 0.0
    %515 = vmatprep.subr.mxu0 0.0
    %516 = vmatpush1.msra.mxu0 0.0
    %517 = vmatprep.subr.mxu0 0.0
    %518 = vmatpush1.msra.mxu0 0.0
    %519 = vmatprep.subr.mxu0 0.0
    %520 = vmatpush1.msra.mxu0 0.0
    %521 = vmatprep.subr.mxu0 0.0
    %522 = vmatpush1.msra.mxu0 0.0
    %523 = vmatprep.subr.mxu0 0.0
    %524 = vmatpush1.msra.mxu0 0.0
    %525 = vmatprep.subr.mxu0 0.0
    %526 = vmatpush1.msra.mxu0 0.0
    %527 = vmatprep.subr.mxu0 0.0
    %528 = vmatpush1.msra.mxu0 0.0
    %529 = vmatprep.subr.mxu0 0.0
    %530 = vmatpush1.msra.mxu0 0.0
    %531 = vmatprep.subr.mxu0 0.0
    %532 = vmatpush1.msra.mxu0 0.0
    %533 = vmatprep.subr.mxu0 0.0
    %534 = vmatpush1.msra.mxu0 0.0
    %535 = vmatprep.subr.mxu0 0.0
    %536 = vmatpush1.msra.mxu0 0.0
    %537 = vmatprep.subr.mxu0 0.0
    %538 = vmatpush1.msra.mxu0 0.0
    %539 = vmatprep.subr.mxu0 0.0
    %540 = vmatpush1.msra.mxu0 0.0
    %541 = vmatprep.subr.mxu0 0.0
    %542 = vmatpush1.msra.mxu0 0.0
    %543 = vmatprep.subr.mxu0 0.0
    %544 = vmatpush1.msra.mxu0 0.0
    %545 = vmatprep.subr.mxu0 0.0
    %546 = vmatpush1.msra.mxu0 0.0
    %547 = vmatprep.subr.mxu0 0.0
    %548 = vmatpush1.msra.mxu0 0.0
    %549 = vmatprep.subr.mxu0 0.0
    %550 = vmatpush1.msra.mxu0 0.0
    %551 = vmatprep.subr.mxu0 0.0
    %552 = vmatpush1.msra.mxu0 0.0
    %553 = vmatprep.subr.mxu0 0.0
    %554 = vmatpush1.msra.mxu0 0.0
    %555 = vmatprep.subr.mxu0 0.0
    %556 = vmatpush1.msra.mxu0 0.0
    %557 = vmatprep.subr.mxu0 0.0
    %558 = vmatpush1.msra.mxu0 0.0
    %559 = vmatprep.subr.mxu0 0.0
    %560 = vmatpush1.msra.mxu0 0.0
    %561 = vmatprep.subr.mxu0 0.0
    %562 = vmatpush1.msra.mxu0 0.0
    %563 = vmatprep.subr.mxu0 0.0
    %564 = vmatpush1.msra.mxu0 0.0
    %565 = vmatprep.subr.mxu0 0.0
    %566 = vmatpush1.msra.mxu0 0.0
    %567 = vmatprep.mubr.f32.mxu0 0.0
    %568 = vmatmul.mubr.f32.gmra.mrb[0].mxu0 %v273
    %v569 = vpop.f32.mrb[0].mxu0
    %v570 = vadd.f32 0.0, %v569
    %v571 = vpop.f32.mrb[0].mxu0
    %572 = vmatprep.mubr.f32.mxu0 0.0
    %573 = vmatmul.mubr.f32.gmra.mrb[0].mxu0 %v276
    %v574 = vpop.f32.mrb[0].mxu0
    %v575 = vadd.f32 0.0, %v574
    %v576 = vpop.f32.mrb[0].mxu0
    %577 = vdwg.mxu0
    %578 = vmatprep.subr.mxu0 0.0
    %579 = vmatpush1.msra.mxu0 %v155
    %580 = vmatprep.subr.mxu0 0.0
    %581 = vmatpush1.msra.mxu0 %v156
    %582 = vmatprep.subr.mxu0 0.0
    %583 = vmatpush1.msra.mxu0 0.0
    %584 = vmatprep.subr.mxu0 0.0
    %585 = vmatpush1.msra.mxu0 0.0
    %586 = vmatprep.subr.mxu0 0.0
    %587 = vmatpush1.msra.mxu0 0.0
    %588 = vmatprep.subr.mxu0 0.0
    %589 = vmatpush1.msra.mxu0 0.0
    %590 = vmatprep.subr.mxu0 0.0
    %591 = vmatpush1.msra.mxu0 0.0
    %592 = vmatprep.subr.mxu0 0.0
    %593 = vmatpush1.msra.mxu0 0.0
    %594 = vmatprep.subr.mxu0 0.0
    %595 = vmatpush1.msra.mxu0 0.0
    %596 = vmatprep.subr.mxu0 0.0
    %597 = vmatpush1.msra.mxu0 0.0
    %598 = vmatprep.subr.mxu0 0.0
    %599 = vmatpush1.msra.mxu0 0.0
    %600 = vmatprep.subr.mxu0 0.0
    %601 = vmatpush1.msra.mxu0 0.0
    %602 = vmatprep.subr.mxu0 0.0
    %603 = vmatpush1.msra.mxu0 0.0
    %604 = vmatprep.subr.mxu0 0.0
    %605 = vmatpush1.msra.mxu0 0.0
    %606 = vmatprep.subr.mxu0 0.0
    %607 = vmatpush1.msra.mxu0 0.0
    %608 = vmatprep.subr.mxu0 0.0
    %609 = vmatpush1.msra.mxu0 0.0
    %610 = vmatprep.subr.mxu0 0.0
    %611 = vmatpush1.msra.mxu0 0.0
    %612 = vmatprep.subr.mxu0 0.0
    %613 = vmatpush1.msra.mxu0 0.0
    %614 = vmatprep.subr.mxu0 0.0
    %615 = vmatpush1.msra.mxu0 0.0
    %616 = vmatprep.subr.mxu0 0.0
    %617 = vmatpush1.msra.mxu0 0.0
    %618 = vmatprep.subr.mxu0 0.0
    %619 = vmatpush1.msra.mxu0 0.0
    %620 = vmatprep.subr.mxu0 0.0
    %621 = vmatpush1.msra.mxu0 0.0
    %622 = vmatprep.subr.mxu0 0.0
    %623 = vmatpush1.msra.mxu0 0.0
    %624 = vmatprep.subr.mxu0 0.0
    %625 = vmatpush1.msra.mxu0 0.0
    %626 = vmatprep.subr.mxu0 0.0
    %627 = vmatpush1.msra.mxu0 0.0
    %628 = vmatprep.subr.mxu0 0.0
    %629 = vmatpush1.msra.mxu0 0.0
    %630 = vmatprep.subr.mxu0 0.0
    %631 = vmatpush1.msra.mxu0 0.0
    %632 = vmatprep.subr.mxu0 0.0
    %633 = vmatpush1.msra.mxu0 0.0
    %634 = vmatprep.subr.mxu0 0.0
    %635 = vmatpush1.msra.mxu0 0.0
    %636 = vmatprep.subr.mxu0 0.0
    %637 = vmatpush1.msra.mxu0 0.0
    %638 = vmatprep.subr.mxu0 0.0
    %639 = vmatpush1.msra.mxu0 0.0
    %640 = vmatprep.subr.mxu0 0.0
    %641 = vmatpush1.msra.mxu0 0.0
    %642 = vmatprep.mubr.f32.mxu0 0.0
    %643 = vmatmul.mubr.f32.gmra.mrb[0].mxu0 %v273
    %v644 = vpop.f32.mrb[0].mxu0
    %v645 = vadd.f32 0.0, %v644
    %v646 = vpop.f32.mrb[0].mxu0
    %647 = vmatprep.mubr.f32.mxu0 0.0
    %648 = vmatmul.mubr.f32.gmra.mrb[0].mxu0 %v276
    %v649 = vpop.f32.mrb[0].mxu0
    %v650 = vadd.f32 0.0, %v649
    %v651 = vpop.f32.mrb[0].mxu0
    %652 = vdwg.mxu0
    %653 = vmatprep.subr.mxu0 0.0
    %654 = vmatpush1.msra.mxu0 %v157
    %655 = vmatprep.subr.mxu0 0.0
    %656 = vmatpush1.msra.mxu0 %v158
    %657 = vmatprep.subr.mxu0 0.0
    %658 = vmatpush1.msra.mxu0 0.0
    %659 = vmatprep.subr.mxu0 0.0
    %660 = vmatpush1.msra.mxu0 0.0
    %661 = vmatprep.subr.mxu0 0.0
    %662 = vmatpush1.msra.mxu0 0.0
    %663 = vmatprep.subr.mxu0 0.0
    %664 = vmatpush1.msra.mxu0 0.0
    %665 = vmatprep.subr.mxu0 0.0
    %666 = vmatpush1.msra.mxu0 0.0
    %667 = vmatprep.subr.mxu0 0.0
    %668 = vmatpush1.msra.mxu0 0.0
    %669 = vmatprep.subr.mxu0 0.0
    %670 = vmatpush1.msra.mxu0 0.0
    %671 = vmatprep.subr.mxu0 0.0
    %672 = vmatpush1.msra.mxu0 0.0
    %673 = vmatprep.subr.mxu0 0.0
    %674 = vmatpush1.msra.mxu0 0.0
    %675 = vmatprep.subr.mxu0 0.0
    %676 = vmatpush1.msra.mxu0 0.0
    %677 = vmatprep.subr.mxu0 0.0
    %678 = vmatpush1.msra.mxu0 0.0
    %679 = vmatprep.subr.mxu0 0.0
    %680 = vmatpush1.msra.mxu0 0.0
    %681 = vmatprep.subr.mxu0 0.0
    %682 = vmatpush1.msra.mxu0 0.0
    %683 = vmatprep.subr.mxu0 0.0
    %684 = vmatpush1.msra.mxu0 0.0
    %685 = vmatprep.subr.mxu0 0.0
    %686 = vmatpush1.msra.mxu0 0.0
    %687 = vmatprep.subr.mxu0 0.0
    %688 = vmatpush1.msra.mxu0 0.0
    %689 = vmatprep.subr.mxu0 0.0
    %690 = vmatpush1.msra.mxu0 0.0
    %691 = vmatprep.subr.mxu0 0.0
    %692 = vmatpush1.msra.mxu0 0.0
    %693 = vmatprep.subr.mxu0 0.0
    %694 = vmatpush1.msra.mxu0 0.0
    %695 = vmatprep.subr.mxu0 0.0
    %696 = vmatpush1.msra.mxu0 0.0
    %697 = vmatprep.subr.mxu0 0.0
    %698 = vmatpush1.msra.mxu0 0.0
    %699 = vmatprep.subr.mxu0 0.0
    %700 = vmatpush1.msra.mxu0 0.0
    %701 = vmatprep.subr.mxu0 0.0
    %702 = vmatpush1.msra.mxu0 0.0
    %703 = vmatprep.subr.mxu0 0.0
    %704 = vmatpush1.msra.mxu0 0.0
    %705 = vmatprep.subr.mxu0 0.0
    %706 = vmatpush1.msra.mxu0 0.0
    %707 = vmatprep.subr.mxu0 0.0
    %708 = vmatpush1.msra.mxu0 0.0
    %709 = vmatprep.subr.mxu0 0.0
    %710 = vmatpush1.msra.mxu0 0.0
    %711 = vmatprep.subr.mxu0 0.0
    %712 = vmatpush1.msra.mxu0 0.0
    %713 = vmatprep.subr.mxu0 0.0
    %714 = vmatpush1.msra.mxu0 0.0
    %715 = vmatprep.subr.mxu0 0.0
    %716 = vmatpush1.msra.mxu0 0.0
    %717 = vmatprep.mubr.f32.mxu0 0.0
    %718 = vmatmul.mubr.f32.gmra.mrb[0].mxu0 %v273
    %v719 = vpop.f32.mrb[0].mxu0
    %v720 = vadd.f32 0.0, %v719
    %v721 = vpop.f32.mrb[0].mxu0
    %722 = vmatprep.mubr.f32.mxu0 0.0
    %723 = vmatmul.mubr.f32.gmra.mrb[0].mxu0 %v276
    %v724 = vpop.f32.mrb[0].mxu0
    %v725 = vadd.f32 0.0, %v724
    %v726 = vpop.f32.mrb[0].mxu0
    %727 = vdwg.mxu0
    %728 = vmatprep.subr.mxu0 0.0
    %729 = vmatpush1.msra.mxu0 %v159
    %730 = vmatprep.subr.mxu0 0.0
    %731 = vmatpush1.msra.mxu0 %v160
    %732 = vmatprep.subr.mxu0 0.0
    %733 = vmatpush1.msra.mxu0 0.0
    %734 = vmatprep.subr.mxu0 0.0
    %735 = vmatpush1.msra.mxu0 0.0
    %736 = vmatprep.subr.mxu0 0.0
    %737 = vmatpush1.msra.mxu0 0.0
    %738 = vmatprep.subr.mxu0 0.0
    %739 = vmatpush1.msra.mxu0 0.0
    %740 = vmatprep.subr.mxu0 0.0
    %741 = vmatpush1.msra.mxu0 0.0
    %742 = vmatprep.subr.mxu0 0.0
    %743 = vmatpush1.msra.mxu0 0.0
    %744 = vmatprep.subr.mxu0 0.0
    %745 = vmatpush1.msra.mxu0 0.0
    %746 = vmatprep.subr.mxu0 0.0
    %747 = vmatpush1.msra.mxu0 0.0
    %748 = vmatprep.subr.mxu0 0.0
    %749 = vmatpush1.msra.mxu0 0.0
    %750 = vmatprep.subr.mxu0 0.0
    %751 = vmatpush1.msra.mxu0 0.0
    %752 = vmatprep.subr.mxu0 0.0
    %753 = vmatpush1.msra.mxu0 0.0
    %754 = vmatprep.subr.mxu0 0.0
    %755 = vmatpush1.msra.mxu0 0.0
    %756 = vmatprep.subr.mxu0 0.0
    %757 = vmatpush1.msra.mxu0 0.0
    %758 = vmatprep.subr.mxu0 0.0
    %759 = vmatpush1.msra.mxu0 0.0
    %760 = vmatprep.subr.mxu0 0.0
    %761 = vmatpush1.msra.mxu0 0.0
    %762 = vmatprep.subr.mxu0 0.0
    %763 = vmatpush1.msra.mxu0 0.0
    %764 = vmatprep.subr.mxu0 0.0
    %765 = vmatpush1.msra.mxu0 0.0
    %766 = vmatprep.subr.mxu0 0.0
    %767 = vmatpush1.msra.mxu0 0.0
    %768 = vmatprep.subr.mxu0 0.0
    %769 = vmatpush1.msra.mxu0 0.0
    %770 = vmatprep.subr.mxu0 0.0
    %771 = vmatpush1.msra.mxu0 0.0
    %772 = vmatprep.subr.mxu0 0.0
    %773 = vmatpush1.msra.mxu0 0.0
    %774 = vmatprep.subr.mxu0 0.0
    %775 = vmatpush1.msra.mxu0 0.0
    %776 = vmatprep.subr.mxu0 0.0
    %777 = vmatpush1.msra.mxu0 0.0
    %778 = vmatprep.subr.mxu0 0.0
    %779 = vmatpush1.msra.mxu0 0.0
    %780 = vmatprep.subr.mxu0 0.0
    %781 = vmatpush1.msra.mxu0 0.0
    %782 = vmatprep.subr.mxu0 0.0
    %783 = vmatpush1.msra.mxu0 0.0
    %784 = vmatprep.subr.mxu0 0.0
    %785 = vmatpush1.msra.mxu0 0.0
    %786 = vmatprep.subr.mxu0 0.0
    %787 = vmatpush1.msra.mxu0 0.0
    %788 = vmatprep.subr.mxu0 0.0
    %789 = vmatpush1.msra.mxu0 0.0
    %790 = vmatprep.subr.mxu0 0.0
    %791 = vmatpush1.msra.mxu0 0.0
    %792 = vmatprep.mubr.f32.mxu0 0.0
    %793 = vmatmul.mubr.f32.gmra.mrb[0].mxu0 %v273
    %v794 = vpop.f32.mrb[0].mxu0
    %v795 = vadd.f32 0.0, %v794
    %v796 = vpop.f32.mrb[0].mxu0
    %797 = vmatprep.mubr.f32.mxu0 0.0
    %798 = vmatmul.mubr.f32.gmra.mrb[0].mxu0 %v276
    %v799 = vpop.f32.mrb[0].mxu0
    %v800 = vadd.f32 0.0, %v799
    %v801 = vpop.f32.mrb[0].mxu0
    %802 = vdwg.mxu0
    %803 = vmatprep.subr.mxu0 0.0
    %804 = vmatpush1.msra.mxu0 %v161
    %805 = vmatprep.subr.mxu0 0.0
    %806 = vmatpush1.msra.mxu0 %v162
    %807 = vmatprep.subr.mxu0 0.0
    %808 = vmatpush1.msra.mxu0 0.0
    %809 = vmatprep.subr.mxu0 0.0
    %810 = vmatpush1.msra.mxu0 0.0
    %811 = vmatprep.subr.mxu0 0.0
    %812 = vmatpush1.msra.mxu0 0.0
    %813 = vmatprep.subr.mxu0 0.0
    %814 = vmatpush1.msra.mxu0 0.0
    %815 = vmatprep.subr.mxu0 0.0
    %816 = vmatpush1.msra.mxu0 0.0
    %817 = vmatprep.subr.mxu0 0.0
    %818 = vmatpush1.msra.mxu0 0.0
    %819 = vmatprep.subr.mxu0 0.0
    %820 = vmatpush1.msra.mxu0 0.0
    %821 = vmatprep.subr.mxu0 0.0
    %822 = vmatpush1.msra.mxu0 0.0
    %823 = vmatprep.subr.mxu0 0.0
    %824 = vmatpush1.msra.mxu0 0.0
    %825 = vmatprep.subr.mxu0 0.0
    %826 = vmatpush1.msra.mxu0 0.0
    %827 = vmatprep.subr.mxu0 0.0
    %828 = vmatpush1.msra.mxu0 0.0
    %829 = vmatprep.subr.mxu0 0.0
    %830 = vmatpush1.msra.mxu0 0.0
    %831 = vmatprep.subr.mxu0 0.0
    %832 = vmatpush1.msra.mxu0 0.0
    %833 = vmatprep.subr.mxu0 0.0
    %834 = vmatpush1.msra.mxu0 0.0
    %835 = vmatprep.subr.mxu0 0.0
    %836 = vmatpush1.msra.mxu0 0.0
    %837 = vmatprep.subr.mxu0 0.0
    %838 = vmatpush1.msra.mxu0 0.0
    %839 = vmatprep.subr.mxu0 0.0
    %840 = vmatpush1.msra.mxu0 0.0
    %841 = vmatprep.subr.mxu0 0.0
    %842 = vmatpush1.msra.mxu0 0.0
    %843 = vmatprep.subr.mxu0 0.0
    %844 = vmatpush1.msra.mxu0 0.0
    %845 = vmatprep.subr.mxu0 0.0
    %846 = vmatpush1.msra.mxu0 0.0
    %847 = vmatprep.subr.mxu0 0.0
    %848 = vmatpush1.msra.mxu0 0.0
    %849 = vmatprep.subr.mxu0 0.0
    %850 = vmatpush1.msra.mxu0 0.0
    %851 = vmatprep.subr.mxu0 0.0
    %852 = vmatpush1.msra.mxu0 0.0
    %853 = vmatprep.subr.mxu0 0.0
    %854 = vmatpush1.msra.mxu0 0.0
    %855 = vmatprep.subr.mxu0 0.0
    %856 = vmatpush1.msra.mxu0 0.0
    %857 = vmatprep.subr.mxu0 0.0
    %858 = vmatpush1.msra.mxu0 0.0
    %859 = vmatprep.subr.mxu0 0.0
    %860 = vmatpush1.msra.mxu0 0.0
    %861 = vmatprep.subr.mxu0 0.0
    %862 = vmatpush1.msra.mxu0 0.0
    %863 = vmatprep.subr.mxu0 0.0
    %864 = vmatpush1.msra.mxu0 0.0
    %865 = vmatprep.subr.mxu0 0.0
    %866 = vmatpush1.msra.mxu0 0.0
    %867 = vmatprep.mubr.f32.mxu0 0.0
    %868 = vmatmul.mubr.f32.gmra.mrb[0].mxu0 %v273
    %v869 = vpop.f32.mrb[0].mxu0
    %v870 = vadd.f32 0.0, %v869
    %v871 = vpop.f32.mrb[0].mxu0
    %872 = vmatprep.mubr.f32.mxu0 0.0
    %873 = vmatmul.mubr.f32.gmra.mrb[0].mxu0 %v276
    %v874 = vpop.f32.mrb[0].mxu0
    %v875 = vadd.f32 0.0, %v874
    %v876 = vpop.f32.mrb[0].mxu0
    %877 = vdwg.mxu0
    %v879 = vlaneseq
    %v880 = vshrl.u32 %v879, 7
    %v881 = vsub.s32 0, %v880
    %v882 = vrot.slane %v268, %v881
    %v883 = vlaneseq
    %v884 = vshrl.u32 %v883, 7
    %v885 = vsub.s32 1, %v884
    %v886 = vrot.slane %v268, %v885
    %v890 = vcombine.high %v165, %v165
    %vm891 = vcmask 31744
    %v893 = vsel %vm891, %v345, 0
    %v896 = vsel %vm891, %v350, 0
    %v899 = vsel %vm891, %v420, 0
    %v902 = vsel %vm891, %v425, 0
    %v905 = vsel %vm891, %v495, 0
    %v908 = vsel %vm891, %v500, 0
    %v911 = vsel %vm891, %v570, 0
    %v914 = vsel %vm891, %v575, 0
    %v917 = vsel %vm891, %v645, 0
    %v920 = vsel %vm891, %v650, 0
    %v923 = vsel %vm891, %v720, 0
    %v926 = vsel %vm891, %v725, 0
    %v929 = vsel %vm891, %v795, 0
    %v932 = vsel %vm891, %v800, 0
    %v935 = vsel %vm891, %v870, 0
    %v938 = vsel %vm891, %v875, 0
    %vm940 = vcmask 1043456
    %v941 = vsel %vm940, %v165, 0
    %v943 = vsel %vm940, %v890, 0
    %945 = vmatprep.subr.mxu0 %v943
    %946 = vmatpush1.msra.mxu0 %v941
    %947 = vmatprep.subr.mxu0 0.0
    %948 = vmatpush1.msra.mxu0 0.0
    %949 = vmatprep.subr.mxu0 0.0
    %950 = vmatpush1.msra.mxu0 0.0
    %951 = vmatprep.subr.mxu0 0.0
    %952 = vmatpush1.msra.mxu0 0.0
    %953 = vmatprep.subr.mxu0 0.0
    %954 = vmatpush1.msra.mxu0 0.0
    %955 = vmatprep.subr.mxu0 0.0
    %956 = vmatpush1.msra.mxu0 0.0
    %957 = vmatprep.subr.mxu0 0.0
    %958 = vmatpush1.msra.mxu0 0.0
    %959 = vmatprep.subr.mxu0 0.0
    %960 = vmatpush1.msra.mxu0 0.0
    %961 = vmatprep.subr.mxu0 0.0
    %962 = vmatpush1.msra.mxu0 0.0
    %963 = vmatprep.subr.mxu0 0.0
    %964 = vmatpush1.msra.mxu0 0.0
    %965 = vmatprep.subr.mxu0 0.0
    %966 = vmatpush1.msra.mxu0 0.0
    %967 = vmatprep.subr.mxu0 0.0
    %968 = vmatpush1.msra.mxu0 0.0
    %969 = vmatprep.subr.mxu0 0.0
    %970 = vmatpush1.msra.mxu0 0.0
    %971 = vmatprep.subr.mxu0 0.0
    %972 = vmatpush1.msra.mxu0 0.0
    %973 = vmatprep.subr.mxu0 0.0
    %974 = vmatpush1.msra.mxu0 0.0
    %975 = vmatprep.subr.mxu0 0.0
    %976 = vmatpush1.msra.mxu0 0.0
    %977 = vmatprep.subr.mxu0 0.0
    %978 = vmatpush1.msra.mxu0 0.0
    %979 = vmatprep.subr.mxu0 0.0
    %980 = vmatpush1.msra.mxu0 0.0
    %981 = vmatprep.subr.mxu0 0.0
    %982 = vmatpush1.msra.mxu0 0.0
    %983 = vmatprep.subr.mxu0 0.0
    %984 = vmatpush1.msra.mxu0 0.0
    %985 = vmatprep.subr.mxu0 0.0
    %986 = vmatpush1.msra.mxu0 0.0
    %987 = vmatprep.subr.mxu0 0.0
    %988 = vmatpush1.msra.mxu0 0.0
    %989 = vmatprep.subr.mxu0 0.0
    %990 = vmatpush1.msra.mxu0 0.0
    %991 = vmatprep.subr.mxu0 0.0
    %992 = vmatpush1.msra.mxu0 0.0
    %993 = vmatprep.subr.mxu0 0.0
    %994 = vmatpush1.msra.mxu0 0.0
    %995 = vmatprep.subr.mxu0 0.0
    %996 = vmatpush1.msra.mxu0 0.0
    %997 = vmatprep.subr.mxu0 0.0
    %998 = vmatpush1.msra.mxu0 0.0
    %999 = vmatprep.subr.mxu0 0.0
    %1000 = vmatpush1.msra.mxu0 0.0
    %1001 = vmatprep.subr.mxu0 0.0
    %1002 = vmatpush1.msra.mxu0 0.0
    %1003 = vmatprep.subr.mxu0 0.0
    %1004 = vmatpush1.msra.mxu0 0.0
    %1005 = vmatprep.subr.mxu0 0.0
    %1006 = vmatpush1.msra.mxu0 0.0
    %1007 = vmatprep.subr.mxu0 0.0
    %1008 = vmatpush1.msra.mxu0 0.0
    %1009 = vmatprep.mubr.f32.mxu0 0.0
    %1010 = vmatmul.mubr.f32.gmra.mrb[0].mxu0 %v893
    %v1011 = vpop.f32.mrb[0].mxu0
    %v1012 = vadd.f32 %v882, %v1011
    %v1013 = vpop.f32.mrb[0].mxu0
    %v1014 = vadd.f32 %v886, %v1013
    %1015 = vmatprep.mubr.f32.mxu0 0.0
    %1016 = vmatmul.mubr.f32.gmra.mrb[0].mxu0 %v896
    %v1017 = vpop.f32.mrb[0].mxu0
    %v1018 = vadd.f32 %v882, %v1017
    %v1019 = vpop.f32.mrb[0].mxu0
    %v1020 = vadd.f32 %v886, %v1019
    %1021 = vmatprep.mubr.f32.mxu0 0.0
    %1022 = vmatmul.mubr.f32.gmra.mrb[0].mxu0 %v899
    %v1023 = vpop.f32.mrb[0].mxu0
    %v1024 = vadd.f32 %v882, %v1023
    %v1025 = vpop.f32.mrb[0].mxu0
    %v1026 = vadd.f32 %v886, %v1025
    %1027 = vmatprep.mubr.f32.mxu0 0.0
    %1028 = vmatmul.mubr.f32.gmra.mrb[0].mxu0 %v902
    %v1029 = vpop.f32.mrb[0].mxu0
    %v1030 = vadd.f32 %v882, %v1029
    %v1031 = vpop.f32.mrb[0].mxu0
    %v1032 = vadd.f32 %v886, %v1031
    %1033 = vmatprep.mubr.f32.mxu0 0.0
    %1034 = vmatmul.mubr.f32.gmra.mrb[0].mxu0 %v905
    %v1035 = vpop.f32.mrb[0].mxu0
    %v1036 = vadd.f32 %v882, %v1035
    %v1037 = vpop.f32.mrb[0].mxu0
    %v1038 = vadd.f32 %v886, %v1037
    %1039 = vmatprep.mubr.f32.mxu0 0.0
    %1040 = vmatmul.mubr.f32.gmra.mrb[0].mxu0 %v908
    %v1041 = vpop.f32.mrb[0].mxu0
    %v1042 = vadd.f32 %v882, %v1041
    %v1043 = vpop.f32.mrb[0].mxu0
    %v1044 = vadd.f32 %v886, %v1043
    %1045 = vmatprep.mubr.f32.mxu0 0.0
    %1046 = vmatmul.mubr.f32.gmra.mrb[0].mxu0 %v911
    %v1047 = vpop.f32.mrb[0].mxu0
    %v1048 = vadd.f32 %v882, %v1047
    %v1049 = vpop.f32.mrb[0].mxu0
    %v1050 = vadd.f32 %v886, %v1049
    %1051 = vmatprep.mubr.f32.mxu0 0.0
    %1052 = vmatmul.mubr.f32.gmra.mrb[0].mxu0 %v914
    %v1053 = vpop.f32.mrb[0].mxu0
    %v1054 = vadd.f32 %v882, %v1053
    %v1055 = vpop.f32.mrb[0].mxu0
    %v1056 = vadd.f32 %v886, %v1055
    %1057 = vmatprep.mubr.f32.mxu0 0.0
    %1058 = vmatmul.mubr.f32.gmra.mrb[0].mxu0 %v917
    %v1059 = vpop.f32.mrb[0].mxu0
    %v1060 = vadd.f32 %v882, %v1059
    %v1061 = vpop.f32.mrb[0].mxu0
    %v1062 = vadd.f32 %v886, %v1061
    %1063 = vmatprep.mubr.f32.mxu0 0.0
    %1064 = vmatmul.mubr.f32.gmra.mrb[0].mxu0 %v920
    %v1065 = vpop.f32.mrb[0].mxu0
    %v1066 = vadd.f32 %v882, %v1065
    %v1067 = vpop.f32.mrb[0].mxu0
    %v1068 = vadd.f32 %v886, %v1067
    %1069 = vmatprep.mubr.f32.mxu0 0.0
    %1070 = vmatmul.mubr.f32.gmra.mrb[0].mxu0 %v923
    %v1071 = vpop.f32.mrb[0].mxu0
    %v1072 = vadd.f32 %v882, %v1071
    %v1073 = vpop.f32.mrb[0].mxu0
    %v1074 = vadd.f32 %v886, %v1073
    %1075 = vmatprep.mubr.f32.mxu0 0.0
    %1076 = vmatmul.mubr.f32.gmra.mrb[0].mxu0 %v926
    %v1077 = vpop.f32.mrb[0].mxu0
    %v1078 = vadd.f32 %v882, %v1077
    %v1079 = vpop.f32.mrb[0].mxu0
    %v1080 = vadd.f32 %v886, %v1079
    %1081 = vmatprep.mubr.f32.mxu0 0.0
    %1082 = vmatmul.mubr.f32.gmra.mrb[0].mxu0 %v929
    %v1083 = vpop.f32.mrb[0].mxu0
    %v1084 = vadd.f32 %v882, %v1083
    %v1085 = vpop.f32.mrb[0].mxu0
    %v1086 = vadd.f32 %v886, %v1085
    %1087 = vmatprep.mubr.f32.mxu0 0.0
    %1088 = vmatmul.mubr.f32.gmra.mrb[0].mxu0 %v932
    %v1089 = vpop.f32.mrb[0].mxu0
    %v1090 = vadd.f32 %v882, %v1089
    %v1091 = vpop.f32.mrb[0].mxu0
    %v1092 = vadd.f32 %v886, %v1091
    %1093 = vmatprep.mubr.f32.mxu0 0.0
    %1094 = vmatmul.mubr.f32.gmra.mrb[0].mxu0 %v935
    %v1095 = vpop.f32.mrb[0].mxu0
    %v1096 = vadd.f32 %v882, %v1095
    %v1097 = vpop.f32.mrb[0].mxu0
    %v1098 = vadd.f32 %v886, %v1097
    %1099 = vmatprep.mubr.f32.mxu0 0.0
    %1100 = vmatmul.mubr.f32.gmra.mrb[0].mxu0 %v938
    %v1101 = vpop.f32.mrb[0].mxu0
    %v1102 = vadd.f32 %v882, %v1101
    %v1103 = vpop.f32.mrb[0].mxu0
    %v1104 = vadd.f32 %v886, %v1103
    %1105 = vdwg.mxu0
    %v1106 = vmax.f32 %v1012, 0.0
    %v1107 = vmax.f32 %v1018, 0.0
    %v1108 = vmax.f32 %v1024, 0.0
    %v1109 = vmax.f32 %v1030, 0.0
    %v1110 = vmax.f32 %v1036, 0.0
    %v1111 = vmax.f32 %v1042, 0.0
    %v1112 = vmax.f32 %v1048, 0.0
    %v1113 = vmax.f32 %v1054, 0.0
    %v1114 = vmax.f32 %v1060, 0.0
    %v1115 = vmax.f32 %v1066, 0.0
    %v1116 = vmax.f32 %v1072, 0.0
    %v1117 = vmax.f32 %v1078, 0.0
    %v1118 = vmax.f32 %v1084, 0.0
    %v1119 = vmax.f32 %v1090, 0.0
    %v1120 = vmax.f32 %v1096, 0.0
    %v1121 = vmax.f32 %v1102, 0.0
    %v1122 = vadd.f32 %v1106, %v1014
    %v1123 = vadd.f32 %v1107, %v1020
    %v1124 = vadd.f32 %v1108, %v1026
    %v1125 = vadd.f32 %v1109, %v1032
    %v1126 = vadd.f32 %v1110, %v1038
    %v1127 = vadd.f32 %v1111, %v1044
    %v1128 = vadd.f32 %v1112, %v1050
    %v1129 = vadd.f32 %v1113, %v1056
    %v1130 = vadd.f32 %v1114, %v1062
    %v1131 = vadd.f32 %v1115, %v1068
    %v1132 = vadd.f32 %v1116, %v1074
    %v1133 = vadd.f32 %v1117, %v1080
    %v1134 = vadd.f32 %v1118, %v1086
    %v1135 = vadd.f32 %v1119, %v1092
    %v1136 = vadd.f32 %v1120, %v1098
    %v1137 = vadd.f32 %v1121, %v1104
    %v1139 = vlaneseq
    %v1140 = vshrl.u32 %v1139, 7
    %v1141 = vsub.s32 0, %v1140
    %v1142 = vrot.slane %v264, %v1141
    %v1143 = vlaneseq
    %v1144 = vshrl.u32 %v1143, 7
    %v1145 = vsub.s32 1, %v1144
    %v1146 = vrot.slane %v264, %v1145
    %v1147 = vlaneseq
    %v1148 = vshrl.u32 %v1147, 7
    %v1149 = vsub.s32 2, %v1148
    %v1150 = vrot.slane %v264, %v1149
    %1154 = vmatprep.subr.mxu0 %v167
    %1155 = vmatpush1.msra.mxu0 %v166
    %1156 = vmatprep.subr.mxu0 %v170
    %1157 = vmatpush1.msra.mxu0 %v169
    %1158 = vmatprep.subr.mxu0 %v173
    %1159 = vmatpush1.msra.mxu0 %v172
    %1160 = vmatprep.subr.mxu0 %v176
    %1161 = vmatpush1.msra.mxu0 %v175
    %1162 = vmatprep.subr.mxu0 %v179
    %1163 = vmatpush1.msra.mxu0 %v178
    %1164 = vmatprep.subr.mxu0 %v182
    %1165 = vmatpush1.msra.mxu0 %v181
    %1166 = vmatprep.subr.mxu0 %v185
    %1167 = vmatpush1.msra.mxu0 %v184
    %1168 = vmatprep.subr.mxu0 %v188
    %1169 = vmatpush1.msra.mxu0 %v187
    %1170 = vmatprep.subr.mxu0 %v191
    %1171 = vmatpush1.msra.mxu0 %v190
    %1172 = vmatprep.subr.mxu0 %v194
    %1173 = vmatpush1.msra.mxu0 %v193
    %1174 = vmatprep.subr.mxu0 %v197
    %1175 = vmatpush1.msra.mxu0 %v196
    %1176 = vmatprep.subr.mxu0 %v200
    %1177 = vmatpush1.msra.mxu0 %v199
    %1178 = vmatprep.subr.mxu0 %v203
    %1179 = vmatpush1.msra.mxu0 %v202
    %1180 = vmatprep.subr.mxu0 %v206
    %1181 = vmatpush1.msra.mxu0 %v205
    %1182 = vmatprep.subr.mxu0 %v209
    %1183 = vmatpush1.msra.mxu0 %v208
    %1184 = vmatprep.subr.mxu0 %v212
    %1185 = vmatpush1.msra.mxu0 %v211
    %1186 = vmatprep.subr.mxu0 0.0
    %1187 = vmatpush1.msra.mxu0 0.0
    %1188 = vmatprep.subr.mxu0 0.0
    %1189 = vmatpush1.msra.mxu0 0.0
    %1190 = vmatprep.subr.mxu0 0.0
    %1191 = vmatpush1.msra.mxu0 0.0
    %1192 = vmatprep.subr.mxu0 0.0
    %1193 = vmatpush1.msra.mxu0 0.0
    %1194 = vmatprep.subr.mxu0 0.0
    %1195 = vmatpush1.msra.mxu0 0.0
    %1196 = vmatprep.subr.mxu0 0.0
    %1197 = vmatpush1.msra.mxu0 0.0
    %1198 = vmatprep.subr.mxu0 0.0
    %1199 = vmatpush1.msra.mxu0 0.0
    %1200 = vmatprep.subr.mxu0 0.0
    %1201 = vmatpush1.msra.mxu0 0.0
    %1202 = vmatprep.subr.mxu0 0.0
    %1203 = vmatpush1.msra.mxu0 0.0
    %1204 = vmatprep.subr.mxu0 0.0
    %1205 = vmatpush1.msra.mxu0 0.0
    %1206 = vmatprep.subr.mxu0 0.0
    %1207 = vmatpush1.msra.mxu0 0.0
    %1208 = vmatprep.subr.mxu0 0.0
    %1209 = vmatpush1.msra.mxu0 0.0
    %1210 = vmatprep.subr.mxu0 0.0
    %1211 = vmatpush1.msra.mxu0 0.0
    %1212 = vmatprep.subr.mxu0 0.0
    %1213 = vmatpush1.msra.mxu0 0.0
    %1214 = vmatprep.subr.mxu0 0.0
    %1215 = vmatpush1.msra.mxu0 0.0
    %1216 = vmatprep.subr.mxu0 0.0
    %1217 = vmatpush1.msra.mxu0 0.0
    %1218 = vmatprep.mubr.f32.mxu0 0.0
    %1219 = vmatmul.mubr.f32.gmra.mrb[0].mxu0 %v1122
    %v1220 = vpop.f32.mrb[0].mxu0
    %v1221 = vadd.f32 %v1142, %v1220
    %v1222 = vpop.f32.mrb[0].mxu0
    %v1223 = vadd.f32 %v1146, %v1222
    %1224 = vmatprep.mubr.f32.mxu0 0.0
    %1225 = vmatmul.mubr.f32.gmra.mrb[0].mxu0 %v1123
    %v1226 = vpop.f32.mrb[0].mxu0
    %v1227 = vadd.f32 %v1142, %v1226
    %v1228 = vpop.f32.mrb[0].mxu0
    %v1229 = vadd.f32 %v1146, %v1228
    %1230 = vmatprep.mubr.f32.mxu0 0.0
    %1231 = vmatmul.mubr.f32.gmra.mrb[0].mxu0 %v1124
    %v1232 = vpop.f32.mrb[0].mxu0
    %v1233 = vadd.f32 %v1142, %v1232
    %v1234 = vpop.f32.mrb[0].mxu0
    %v1235 = vadd.f32 %v1146, %v1234
    %1236 = vmatprep.mubr.f32.mxu0 0.0
    %1237 = vmatmul.mubr.f32.gmra.mrb[0].mxu0 %v1125
    %v1238 = vpop.f32.mrb[0].mxu0
    %v1239 = vadd.f32 %v1142, %v1238
    %v1240 = vpop.f32.mrb[0].mxu0
    %v1241 = vadd.f32 %v1146, %v1240
    %1242 = vmatprep.mubr.f32.mxu0 0.0
    %1243 = vmatmul.mubr.f32.gmra.mrb[0].mxu0 %v1126
    %v1244 = vpop.f32.mrb[0].mxu0
    %v1245 = vadd.f32 %v1142, %v1244
    %v1246 = vpop.f32.mrb[0].mxu0
    %v1247 = vadd.f32 %v1146, %v1246
    %1248 = vmatprep.mubr.f32.mxu0 0.0
    %1249 = vmatmul.mubr.f32.gmra.mrb[0].mxu0 %v1127
    %v1250 = vpop.f32.mrb[0].mxu0
    %v1251 = vadd.f32 %v1142, %v1250
    %v1252 = vpop.f32.mrb[0].mxu0
    %v1253 = vadd.f32 %v1146, %v1252
    %1254 = vmatprep.mubr.f32.mxu0 0.0
    %1255 = vmatmul.mubr.f32.gmra.mrb[0].mxu0 %v1128
    %v1256 = vpop.f32.mrb[0].mxu0
    %v1257 = vadd.f32 %v1142, %v1256
    %v1258 = vpop.f32.mrb[0].mxu0
    %v1259 = vadd.f32 %v1146, %v1258
    %1260 = vmatprep.mubr.f32.mxu0 0.0
    %1261 = vmatmul.mubr.f32.gmra.mrb[0].mxu0 %v1129
    %v1262 = vpop.f32.mrb[0].mxu0
    %v1263 = vadd.f32 %v1142, %v1262
    %v1264 = vpop.f32.mrb[0].mxu0
    %v1265 = vadd.f32 %v1146, %v1264
    %1266 = vmatprep.mubr.f32.mxu0 0.0
    %1267 = vmatmul.mubr.f32.gmra.mrb[0].mxu0 %v1130
    %v1268 = vpop.f32.mrb[0].mxu0
    %v1269 = vadd.f32 %v1142, %v1268
    %v1270 = vpop.f32.mrb[0].mxu0
    %v1271 = vadd.f32 %v1146, %v1270
    %1272 = vmatprep.mubr.f32.mxu0 0.0
    %1273 = vmatmul.mubr.f32.gmra.mrb[0].mxu0 %v1131
    %v1274 = vpop.f32.mrb[0].mxu0
    %v1275 = vadd.f32 %v1142, %v1274
    %v1276 = vpop.f32.mrb[0].mxu0
    %v1277 = vadd.f32 %v1146, %v1276
    %1278 = vmatprep.mubr.f32.mxu0 0.0
    %1279 = vmatmul.mubr.f32.gmra.mrb[0].mxu0 %v1132
    %v1280 = vpop.f32.mrb[0].mxu0
    %v1281 = vadd.f32 %v1142, %v1280
    %v1282 = vpop.f32.mrb[0].mxu0
    %v1283 = vadd.f32 %v1146, %v1282
    %1284 = vmatprep.mubr.f32.mxu0 0.0
    %1285 = vmatmul.mubr.f32.gmra.mrb[0].mxu0 %v1133
    %v1286 = vpop.f32.mrb[0].mxu0
    %v1287 = vadd.f32 %v1142, %v1286
    %v1288 = vpop.f32.mrb[0].mxu0
    %v1289 = vadd.f32 %v1146, %v1288
    %1290 = vmatprep.mubr.f32.mxu0 0.0
    %1291 = vmatmul.mubr.f32.gmra.mrb[0].mxu0 %v1134
    %v1292 = vpop.f32.mrb[0].mxu0
    %v1293 = vadd.f32 %v1142, %v1292
    %v1294 = vpop.f32.mrb[0].mxu0
    %v1295 = vadd.f32 %v1146, %v1294
    %1296 = vmatprep.mubr.f32.mxu0 0.0
    %1297 = vmatmul.mubr.f32.gmra.mrb[0].mxu0 %v1135
    %v1298 = vpop.f32.mrb[0].mxu0
    %v1299 = vadd.f32 %v1142, %v1298
    %v1300 = vpop.f32.mrb[0].mxu0
    %v1301 = vadd.f32 %v1146, %v1300
    %1302 = vmatprep.mubr.f32.mxu0 0.0
    %1303 = vmatmul.mubr.f32.gmra.mrb[0].mxu0 %v1136
    %v1304 = vpop.f32.mrb[0].mxu0
    %v1305 = vadd.f32 %v1142, %v1304
    %v1306 = vpop.f32.mrb[0].mxu0
    %v1307 = vadd.f32 %v1146, %v1306
    %1308 = vmatprep.mubr.f32.mxu0 0.0
    %1309 = vmatmul.mubr.f32.gmra.mrb[0].mxu0 %v1137
    %v1310 = vpop.f32.mrb[0].mxu0
    %v1311 = vadd.f32 %v1142, %v1310
    %v1312 = vpop.f32.mrb[0].mxu0
    %v1313 = vadd.f32 %v1146, %v1312
    %1314 = vdwg.mxu0
    %1315 = vmatprep.subr.mxu0 0.0
    %1316 = vmatpush1.msra.mxu0 %v168
    %1317 = vmatprep.subr.mxu0 0.0
    %1318 = vmatpush1.msra.mxu0 %v171
    %1319 = vmatprep.subr.mxu0 0.0
    %1320 = vmatpush1.msra.mxu0 %v174
    %1321 = vmatprep.subr.mxu0 0.0
    %1322 = vmatpush1.msra.mxu0 %v177
    %1323 = vmatprep.subr.mxu0 0.0
    %1324 = vmatpush1.msra.mxu0 %v180
    %1325 = vmatprep.subr.mxu0 0.0
    %1326 = vmatpush1.msra.mxu0 %v183
    %1327 = vmatprep.subr.mxu0 0.0
    %1328 = vmatpush1.msra.mxu0 %v186
    %1329 = vmatprep.subr.mxu0 0.0
    %1330 = vmatpush1.msra.mxu0 %v189
    %1331 = vmatprep.subr.mxu0 0.0
    %1332 = vmatpush1.msra.mxu0 %v192
    %1333 = vmatprep.subr.mxu0 0.0
    %1334 = vmatpush1.msra.mxu0 %v195
    %1335 = vmatprep.subr.mxu0 0.0
    %1336 = vmatpush1.msra.mxu0 %v198
    %1337 = vmatprep.subr.mxu0 0.0
    %1338 = vmatpush1.msra.mxu0 %v201
    %1339 = vmatprep.subr.mxu0 0.0
    %1340 = vmatpush1.msra.mxu0 %v204
    %1341 = vmatprep.subr.mxu0 0.0
    %1342 = vmatpush1.msra.mxu0 %v207
    %1343 = vmatprep.subr.mxu0 0.0
    %1344 = vmatpush1.msra.mxu0 %v210
    %1345 = vmatprep.subr.mxu0 0.0
    %1346 = vmatpush1.msra.mxu0 %v213
    %1347 = vmatprep.subr.mxu0 0.0
    %1348 = vmatpush1.msra.mxu0 0.0
    %1349 = vmatprep.subr.mxu0 0.0
    %1350 = vmatpush1.msra.mxu0 0.0
    %1351 = vmatprep.subr.mxu0 0.0
    %1352 = vmatpush1.msra.mxu0 0.0
    %1353 = vmatprep.subr.mxu0 0.0
    %1354 = vmatpush1.msra.mxu0 0.0
    %1355 = vmatprep.subr.mxu0 0.0
    %1356 = vmatpush1.msra.mxu0 0.0
    %1357 = vmatprep.subr.mxu0 0.0
    %1358 = vmatpush1.msra.mxu0 0.0
    %1359 = vmatprep.subr.mxu0 0.0
    %1360 = vmatpush1.msra.mxu0 0.0
    %1361 = vmatprep.subr.mxu0 0.0
    %1362 = vmatpush1.msra.mxu0 0.0
    %1363 = vmatprep.subr.mxu0 0.0
    %1364 = vmatpush1.msra.mxu0 0.0
    %1365 = vmatprep.subr.mxu0 0.0
    %1366 = vmatpush1.msra.mxu0 0.0
    %1367 = vmatprep.subr.mxu0 0.0
    %1368 = vmatpush1.msra.mxu0 0.0
    %1369 = vmatprep.subr.mxu0 0.0
    %1370 = vmatpush1.msra.mxu0 0.0
    %1371 = vmatprep.subr.mxu0 0.0
    %1372 = vmatpush1.msra.mxu0 0.0
    %1373 = vmatprep.subr.mxu0 0.0
    %1374 = vmatpush1.msra.mxu0 0.0
    %1375 = vmatprep.subr.mxu0 0.0
    %1376 = vmatpush1.msra.mxu0 0.0
    %1377 = vmatprep.subr.mxu0 0.0
    %1378 = vmatpush1.msra.mxu0 0.0
    %1379 = vmatprep.mubr.f32.mxu0 0.0
    %1380 = vmatmul.mubr.f32.gmra.mrb[0].mxu0 %v1122
    %v1381 = vpop.f32.mrb[0].mxu0
    %v1382 = vadd.f32 %v1150, %v1381
    %v1383 = vpop.f32.mrb[0].mxu0
    %1384 = vmatprep.mubr.f32.mxu0 0.0
    %1385 = vmatmul.mubr.f32.gmra.mrb[0].mxu0 %v1123
    %v1386 = vpop.f32.mrb[0].mxu0
    %v1387 = vadd.f32 %v1150, %v1386
    %v1388 = vpop.f32.mrb[0].mxu0
    %1389 = vmatprep.mubr.f32.mxu0 0.0
    %1390 = vmatmul.mubr.f32.gmra.mrb[0].mxu0 %v1124
    %v1391 = vpop.f32.mrb[0].mxu0
    %v1392 = vadd.f32 %v1150, %v1391
    %v1393 = vpop.f32.mrb[0].mxu0
    %1394 = vmatprep.mubr.f32.mxu0 0.0
    %1395 = vmatmul.mubr.f32.gmra.mrb[0].mxu0 %v1125
    %v1396 = vpop.f32.mrb[0].mxu0
    %v1397 = vadd.f32 %v1150, %v1396
    %v1398 = vpop.f32.mrb[0].mxu0
    %1399 = vmatprep.mubr.f32.mxu0 0.0
    %1400 = vmatmul.mubr.f32.gmra.mrb[0].mxu0 %v1126
    %v1401 = vpop.f32.mrb[0].mxu0
    %v1402 = vadd.f32 %v1150, %v1401
    %v1403 = vpop.f32.mrb[0].mxu0
    %1404 = vmatprep.mubr.f32.mxu0 0.0
    %1405 = vmatmul.mubr.f32.gmra.mrb[0].mxu0 %v1127
    %v1406 = vpop.f32.mrb[0].mxu0
    %v1407 = vadd.f32 %v1150, %v1406
    %v1408 = vpop.f32.mrb[0].mxu0
    %1409 = vmatprep.mubr.f32.mxu0 0.0
    %1410 = vmatmul.mubr.f32.gmra.mrb[0].mxu0 %v1128
    %v1411 = vpop.f32.mrb[0].mxu0
    %v1412 = vadd.f32 %v1150, %v1411
    %v1413 = vpop.f32.mrb[0].mxu0
    %1414 = vmatprep.mubr.f32.mxu0 0.0
    %1415 = vmatmul.mubr.f32.gmra.mrb[0].mxu0 %v1129
    %v1416 = vpop.f32.mrb[0].mxu0
    %v1417 = vadd.f32 %v1150, %v1416
    %v1418 = vpop.f32.mrb[0].mxu0
    %1419 = vmatprep.mubr.f32.mxu0 0.0
    %1420 = vmatmul.mubr.f32.gmra.mrb[0].mxu0 %v1130
    %v1421 = vpop.f32.mrb[0].mxu0
    %v1422 = vadd.f32 %v1150, %v1421
    %v1423 = vpop.f32.mrb[0].mxu0
    %1424 = vmatprep.mubr.f32.mxu0 0.0
    %1425 = vmatmul.mubr.f32.gmra.mrb[0].mxu0 %v1131
    %v1426 = vpop.f32.mrb[0].mxu0
    %v1427 = vadd.f32 %v1150, %v1426
    %v1428 = vpop.f32.mrb[0].mxu0
    %1429 = vmatprep.mubr.f32.mxu0 0.0
    %1430 = vmatmul.mubr.f32.gmra.mrb[0].mxu0 %v1132
    %v1431 = vpop.f32.mrb[0].mxu0
    %v1432 = vadd.f32 %v1150, %v1431
    %v1433 = vpop.f32.mrb[0].mxu0
    %1434 = vmatprep.mubr.f32.mxu0 0.0
    %1435 = vmatmul.mubr.f32.gmra.mrb[0].mxu0 %v1133
    %v1436 = vpop.f32.mrb[0].mxu0
    %v1437 = vadd.f32 %v1150, %v1436
    %v1438 = vpop.f32.mrb[0].mxu0
    %1439 = vmatprep.mubr.f32.mxu0 0.0
    %1440 = vmatmul.mubr.f32.gmra.mrb[0].mxu0 %v1134
    %v1441 = vpop.f32.mrb[0].mxu0
    %v1442 = vadd.f32 %v1150, %v1441
    %v1443 = vpop.f32.mrb[0].mxu0
    %1444 = vmatprep.mubr.f32.mxu0 0.0
    %1445 = vmatmul.mubr.f32.gmra.mrb[0].mxu0 %v1135
    %v1446 = vpop.f32.mrb[0].mxu0
    %v1447 = vadd.f32 %v1150, %v1446
    %v1448 = vpop.f32.mrb[0].mxu0
    %1449 = vmatprep.mubr.f32.mxu0 0.0
    %1450 = vmatmul.mubr.f32.gmra.mrb[0].mxu0 %v1136
    %v1451 = vpop.f32.mrb[0].mxu0
    %v1452 = vadd.f32 %v1150, %v1451
    %v1453 = vpop.f32.mrb[0].mxu0
    %1454 = vmatprep.mubr.f32.mxu0 0.0
    %1455 = vmatmul.mubr.f32.gmra.mrb[0].mxu0 %v1137
    %v1456 = vpop.f32.mrb[0].mxu0
    %v1457 = vadd.f32 %v1150, %v1456
    %v1458 = vpop.f32.mrb[0].mxu0
    %1459 = vdwg.mxu0
    %v1461 = vlaneseq
    %v1462 = vshrl.u32 %v1461, 7
    %v1463 = vsub.s32 0, %v1462
    %v1464 = vrot.slane %v266, %v1463
    %v1465 = vlaneseq
    %v1466 = vshrl.u32 %v1465, 7
    %v1467 = vsub.s32 1, %v1466
    %v1468 = vrot.slane %v266, %v1467
    %v1469 = vlaneseq
    %v1470 = vshrl.u32 %v1469, 7
    %v1471 = vsub.s32 2, %v1470
    %v1472 = vrot.slane %v266, %v1471
    %1476 = vmatprep.subr.mxu0 %v215
    %1477 = vmatpush1.msra.mxu0 %v214
    %1478 = vmatprep.subr.mxu0 %v218
    %1479 = vmatpush1.msra.mxu0 %v217
    %1480 = vmatprep.subr.mxu0 %v221
    %1481 = vmatpush1.msra.mxu0 %v220
    %1482 = vmatprep.subr.mxu0 %v224
    %1483 = vmatpush1.msra.mxu0 %v223
    %1484 = vmatprep.subr.mxu0 %v227
    %1485 = vmatpush1.msra.mxu0 %v226
    %1486 = vmatprep.subr.mxu0 %v230
    %1487 = vmatpush1.msra.mxu0 %v229
    %1488 = vmatprep.subr.mxu0 %v233
    %1489 = vmatpush1.msra.mxu0 %v232
    %1490 = vmatprep.subr.mxu0 %v236
    %1491 = vmatpush1.msra.mxu0 %v235
    %1492 = vmatprep.subr.mxu0 %v239
    %1493 = vmatpush1.msra.mxu0 %v238
    %1494 = vmatprep.subr.mxu0 %v242
    %1495 = vmatpush1.msra.mxu0 %v241
    %1496 = vmatprep.subr.mxu0 %v245
    %1497 = vmatpush1.msra.mxu0 %v244
    %1498 = vmatprep.subr.mxu0 %v248
    %1499 = vmatpush1.msra.mxu0 %v247
    %1500 = vmatprep.subr.mxu0 %v251
    %1501 = vmatpush1.msra.mxu0 %v250
    %1502 = vmatprep.subr.mxu0 %v254
    %1503 = vmatpush1.msra.mxu0 %v253
    %1504 = vmatprep.subr.mxu0 %v257
    %1505 = vmatpush1.msra.mxu0 %v256
    %1506 = vmatprep.subr.mxu0 %v260
    %1507 = vmatpush1.msra.mxu0 %v259
    %1508 = vmatprep.subr.mxu0 0.0
    %1509 = vmatpush1.msra.mxu0 0.0
    %1510 = vmatprep.subr.mxu0 0.0
    %1511 = vmatpush1.msra.mxu0 0.0
    %1512 = vmatprep.subr.mxu0 0.0
    %1513 = vmatpush1.msra.mxu0 0.0
    %1514 = vmatprep.subr.mxu0 0.0
    %1515 = vmatpush1.msra.mxu0 0.0
    %1516 = vmatprep.subr.mxu0 0.0
    %1517 = vmatpush1.msra.mxu0 0.0
    %1518 = vmatprep.subr.mxu0 0.0
    %1519 = vmatpush1.msra.mxu0 0.0
    %1520 = vmatprep.subr.mxu0 0.0
    %1521 = vmatpush1.msra.mxu0 0.0
    %1522 = vmatprep.subr.mxu0 0.0
    %1523 = vmatpush1.msra.mxu0 0.0
    %1524 = vmatprep.subr.mxu0 0.0
    %1525 = vmatpush1.msra.mxu0 0.0
    %1526 = vmatprep.subr.mxu0 0.0
    %1527 = vmatpush1.msra.mxu0 0.0
    %1528 = vmatprep.subr.mxu0 0.0
    %1529 = vmatpush1.msra.mxu0 0.0
    %1530 = vmatprep.subr.mxu0 0.0
    %1531 = vmatpush1.msra.mxu0 0.0
    %1532 = vmatprep.subr.mxu0 0.0
    %1533 = vmatpush1.msra.mxu0 0.0
    %1534 = vmatprep.subr.mxu0 0.0
    %1535 = vmatpush1.msra.mxu0 0.0
    %1536 = vmatprep.subr.mxu0 0.0
    %1537 = vmatpush1.msra.mxu0 0.0
    %1538 = vmatprep.subr.mxu0 0.0
    %1539 = vmatpush1.msra.mxu0 0.0
    %1540 = vmatprep.mubr.f32.mxu0 0.0
    %1541 = vmatmul.mubr.f32.gmra.mrb[0].mxu0 %v262
    %v1542 = vpop.f32.mrb[0].mxu0
    %v1543 = vadd.f32 %v1464, %v1542
    %v1544 = vpop.f32.mrb[0].mxu0
    %v1545 = vadd.f32 %v1468, %v1544
    %1546 = vmatprep.mubr.f32.mxu0 0.0
    %1547 = vmatmul.mubr.f32.gmra.mrb[0].mxu0 %v263
    %v1548 = vpop.f32.mrb[0].mxu0
    %v1549 = vadd.f32 %v1464, %v1548
    %v1550 = vpop.f32.mrb[0].mxu0
    %v1551 = vadd.f32 %v1468, %v1550
    %1552 = vdwg.mxu0
    %1553 = vmatprep.subr.mxu0 0.0
    %1554 = vmatpush1.msra.mxu0 %v216
    %1555 = vmatprep.subr.mxu0 0.0
    %1556 = vmatpush1.msra.mxu0 %v219
    %1557 = vmatprep.subr.mxu0 0.0
    %1558 = vmatpush1.msra.mxu0 %v222
    %1559 = vmatprep.subr.mxu0 0.0
    %1560 = vmatpush1.msra.mxu0 %v225
    %1561 = vmatprep.subr.mxu0 0.0
    %1562 = vmatpush1.msra.mxu0 %v228
    %1563 = vmatprep.subr.mxu0 0.0
    %1564 = vmatpush1.msra.mxu0 %v231
    %1565 = vmatprep.subr.mxu0 0.0
    %1566 = vmatpush1.msra.mxu0 %v234
    %1567 = vmatprep.subr.mxu0 0.0
    %1568 = vmatpush1.msra.mxu0 %v237
    %1569 = vmatprep.subr.mxu0 0.0
    %1570 = vmatpush1.msra.mxu0 %v240
    %1571 = vmatprep.subr.mxu0 0.0
    %1572 = vmatpush1.msra.mxu0 %v243
    %1573 = vmatprep.subr.mxu0 0.0
    %1574 = vmatpush1.msra.mxu0 %v246
    %1575 = vmatprep.subr.mxu0 0.0
    %1576 = vmatpush1.msra.mxu0 %v249
    %1577 = vmatprep.subr.mxu0 0.0
    %1578 = vmatpush1.msra.mxu0 %v252
    %1579 = vmatprep.subr.mxu0 0.0
    %1580 = vmatpush1.msra.mxu0 %v255
    %1581 = vmatprep.subr.mxu0 0.0
    %1582 = vmatpush1.msra.mxu0 %v258
    %1583 = vmatprep.subr.mxu0 0.0
    %1584 = vmatpush1.msra.mxu0 %v261
    %1585 = vmatprep.subr.mxu0 0.0
    %1586 = vmatpush1.msra.mxu0 0.0
    %1587 = vmatprep.subr.mxu0 0.0
    %1588 = vmatpush1.msra.mxu0 0.0
    %1589 = vmatprep.subr.mxu0 0.0
    %1590 = vmatpush1.msra.mxu0 0.0
    %1591 = vmatprep.subr.mxu0 0.0
    %1592 = vmatpush1.msra.mxu0 0.0
    %1593 = vmatprep.subr.mxu0 0.0
    %1594 = vmatpush1.msra.mxu0 0.0
    %1595 = vmatprep.subr.mxu0 0.0
    %1596 = vmatpush1.msra.mxu0 0.0
    %1597 = vmatprep.subr.mxu0 0.0
    %1598 = vmatpush1.msra.mxu0 0.0
    %1599 = vmatprep.subr.mxu0 0.0
    %1600 = vmatpush1.msra.mxu0 0.0
    %1601 = vmatprep.subr.mxu0 0.0
    %1602 = vmatpush1.msra.mxu0 0.0
    %1603 = vmatprep.subr.mxu0 0.0
    %1604 = vmatpush1.msra.mxu0 0.0
    %1605 = vmatprep.subr.mxu0 0.0
    %1606 = vmatpush1.msra.mxu0 0.0
    %1607 = vmatprep.subr.mxu0 0.0
    %1608 = vmatpush1.msra.mxu0 0.0
    %1609 = vmatprep.subr.mxu0 0.0
    %1610 = vmatpush1.msra.mxu0 0.0
    %1611 = vmatprep.subr.mxu0 0.0
    %1612 = vmatpush1.msra.mxu0 0.0
    %1613 = vmatprep.subr.mxu0 0.0
    %1614 = vmatpush1.msra.mxu0 0.0
    %1615 = vmatprep.subr.mxu0 0.0
    %1616 = vmatpush1.msra.mxu0 0.0
    %1617 = vmatprep.mubr.f32.mxu0 0.0
    %1618 = vmatmul.mubr.f32.gmra.mrb[0].mxu0 %v262
    %v1619 = vpop.f32.mrb[0].mxu0
    %v1620 = vadd.f32 %v1472, %v1619
    %v1621 = vpop.f32.mrb[0].mxu0
    %1622 = vmatprep.mubr.f32.mxu0 0.0
    %1623 = vmatmul.mubr.f32.gmra.mrb[0].mxu0 %v263
    %v1624 = vpop.f32.mrb[0].mxu0
    %v1625 = vadd.f32 %v1472, %v1624
    %v1626 = vpop.f32.mrb[0].mxu0
    %1627 = vdwg.mxu0
    %v1628 = vadd.f32 %v1221, %v1543
    %v1629 = vadd.f32 %v1227, %v1549
    %v1630 = vadd.f32 %v1233, %v1543
    %v1631 = vadd.f32 %v1239, %v1549
    %v1632 = vadd.f32 %v1245, %v1543
    %v1633 = vadd.f32 %v1251, %v1549
    %v1634 = vadd.f32 %v1257, %v1543
    %v1635 = vadd.f32 %v1263, %v1549
    %v1636 = vadd.f32 %v1269, %v1543
    %v1637 = vadd.f32 %v1275, %v1549
    %v1638 = vadd.f32 %v1281, %v1543
    %v1639 = vadd.f32 %v1287, %v1549
    %v1640 = vadd.f32 %v1293, %v1543
    %v1641 = vadd.f32 %v1299, %v1549
    %v1642 = vadd.f32 %v1305, %v1543
    %v1643 = vadd.f32 %v1311, %v1549
    %v1644 = vxor.u32 %v1628, 2147483648
    %v1645 = vxor.u32 %v1629, 2147483648
    %v1646 = vxor.u32 %v1630, 2147483648
    %v1647 = vxor.u32 %v1631, 2147483648
    %v1648 = vxor.u32 %v1632, 2147483648
    %v1649 = vxor.u32 %v1633, 2147483648
    %v1650 = vxor.u32 %v1634, 2147483648
    %v1651 = vxor.u32 %v1635, 2147483648
    %v1652 = vxor.u32 %v1636, 2147483648
    %v1653 = vxor.u32 %v1637, 2147483648
    %v1654 = vxor.u32 %v1638, 2147483648
    %v1655 = vxor.u32 %v1639, 2147483648
    %v1656 = vxor.u32 %v1640, 2147483648
    %v1657 = vxor.u32 %v1641, 2147483648
    %v1658 = vxor.u32 %v1642, 2147483648
    %v1659 = vxor.u32 %v1643, 2147483648
    %v1660 = vmul.f32 %v1644, 1.442695
    %v1661 = vpow.pop %v1660
    %v1662 = vmul.f32 %v1645, 1.442695
    %v1663 = vpow.pop %v1662
    %v1664 = vmul.f32 %v1646, 1.442695
    %v1665 = vpow.pop %v1664
    %v1666 = vmul.f32 %v1647, 1.442695
    %v1667 = vpow.pop %v1666
    %v1668 = vmul.f32 %v1648, 1.442695
    %v1669 = vpow.pop %v1668
    %v1670 = vmul.f32 %v1649, 1.442695
    %v1671 = vpow.pop %v1670
    %v1672 = vmul.f32 %v1650, 1.442695
    %v1673 = vpow.pop %v1672
    %v1674 = vmul.f32 %v1651, 1.442695
    %v1675 = vpow.pop %v1674
    %v1676 = vmul.f32 %v1652, 1.442695
    %v1677 = vpow.pop %v1676
    %v1678 = vmul.f32 %v1653, 1.442695
    %v1679 = vpow.pop %v1678
    %v1680 = vmul.f32 %v1654, 1.442695
    %v1681 = vpow.pop %v1680
    %v1682 = vmul.f32 %v1655, 1.442695
    %v1683 = vpow.pop %v1682
    %v1684 = vmul.f32 %v1656, 1.442695
    %v1685 = vpow.pop %v1684
    %v1686 = vmul.f32 %v1657, 1.442695
    %v1687 = vpow.pop %v1686
    %v1688 = vmul.f32 %v1658, 1.442695
    %v1689 = vpow.pop %v1688
    %v1690 = vmul.f32 %v1659, 1.442695
    %v1691 = vpow.pop %v1690
    %v1692 = vadd.f32 %v1661, 1.0
    %v1693 = vadd.f32 %v1663, 1.0
    %v1694 = vadd.f32 %v1665, 1.0
    %v1695 = vadd.f32 %v1667, 1.0
    %v1696 = vadd.f32 %v1669, 1.0
    %v1697 = vadd.f32 %v1671, 1.0
    %v1698 = vadd.f32 %v1673, 1.0
    %v1699 = vadd.f32 %v1675, 1.0
    %v1700 = vadd.f32 %v1677, 1.0
    %v1701 = vadd.f32 %v1679, 1.0
    %v1702 = vadd.f32 %v1681, 1.0
    %v1703 = vadd.f32 %v1683, 1.0
    %v1704 = vadd.f32 %v1685, 1.0
    %v1705 = vadd.f32 %v1687, 1.0
    %v1706 = vadd.f32 %v1689, 1.0
    %v1707 = vadd.f32 %v1691, 1.0
    %v1708 = vrcp.pop %v1692
    %v1709 = vmul.f32 1.0, %v1708
    %v1710 = vrcp.pop %v1693
    %v1711 = vmul.f32 1.0, %v1710
    %v1712 = vrcp.pop %v1694
    %v1713 = vmul.f32 1.0, %v1712
    %v1714 = vrcp.pop %v1695
    %v1715 = vmul.f32 1.0, %v1714
    %v1716 = vrcp.pop %v1696
    %v1717 = vmul.f32 1.0, %v1716
    %v1718 = vrcp.pop %v1697
    %v1719 = vmul.f32 1.0, %v1718
    %v1720 = vrcp.pop %v1698
    %v1721 = vmul.f32 1.0, %v1720
    %v1722 = vrcp.pop %v1699
    %v1723 = vmul.f32 1.0, %v1722
    %v1724 = vrcp.pop %v1700
    %v1725 = vmul.f32 1.0, %v1724
    %v1726 = vrcp.pop %v1701
    %v1727 = vmul.f32 1.0, %v1726
    %v1728 = vrcp.pop %v1702
    %v1729 = vmul.f32 1.0, %v1728
    %v1730 = vrcp.pop %v1703
    %v1731 = vmul.f32 1.0, %v1730
    %v1732 = vrcp.pop %v1704
    %v1733 = vmul.f32 1.0, %v1732
    %v1734 = vrcp.pop %v1705
    %v1735 = vmul.f32 1.0, %v1734
    %v1736 = vrcp.pop %v1706
    %v1737 = vmul.f32 1.0, %v1736
    %v1738 = vrcp.pop %v1707
    %v1739 = vmul.f32 1.0, %v1738
    %v1740 = vadd.f32 %v1223, %v1545
    %v1741 = vadd.f32 %v1229, %v1551
    %v1742 = vadd.f32 %v1235, %v1545
    %v1743 = vadd.f32 %v1241, %v1551
    %v1744 = vadd.f32 %v1247, %v1545
    %v1745 = vadd.f32 %v1253, %v1551
    %v1746 = vadd.f32 %v1259, %v1545
    %v1747 = vadd.f32 %v1265, %v1551
    %v1748 = vadd.f32 %v1271, %v1545
    %v1749 = vadd.f32 %v1277, %v1551
    %v1750 = vadd.f32 %v1283, %v1545
    %v1751 = vadd.f32 %v1289, %v1551
    %v1752 = vadd.f32 %v1295, %v1545
    %v1753 = vadd.f32 %v1301, %v1551
    %v1754 = vadd.f32 %v1307, %v1545
    %v1755 = vadd.f32 %v1313, %v1551
    %v1756 = vxor.u32 %v1740, 2147483648
    %v1757 = vxor.u32 %v1741, 2147483648
    %v1758 = vxor.u32 %v1742, 2147483648
    %v1759 = vxor.u32 %v1743, 2147483648
    %v1760 = vxor.u32 %v1744, 2147483648
    %v1761 = vxor.u32 %v1745, 2147483648
    %v1762 = vxor.u32 %v1746, 2147483648
    %v1763 = vxor.u32 %v1747, 2147483648
    %v1764 = vxor.u32 %v1748, 2147483648
    %v1765 = vxor.u32 %v1749, 2147483648
    %v1766 = vxor.u32 %v1750, 2147483648
    %v1767 = vxor.u32 %v1751, 2147483648
    %v1768 = vxor.u32 %v1752, 2147483648
    %v1769 = vxor.u32 %v1753, 2147483648
    %v1770 = vxor.u32 %v1754, 2147483648
    %v1771 = vxor.u32 %v1755, 2147483648
    %v1772 = vmul.f32 %v1756, 1.442695
    %v1773 = vpow.pop %v1772
    %v1774 = vmul.f32 %v1757, 1.442695
    %v1775 = vpow.pop %v1774
    %v1776 = vmul.f32 %v1758, 1.442695
    %v1777 = vpow.pop %v1776
    %v1778 = vmul.f32 %v1759, 1.442695
    %v1779 = vpow.pop %v1778
    %v1780 = vmul.f32 %v1760, 1.442695
    %v1781 = vpow.pop %v1780
    %v1782 = vmul.f32 %v1761, 1.442695
    %v1783 = vpow.pop %v1782
    %v1784 = vmul.f32 %v1762, 1.442695
    %v1785 = vpow.pop %v1784
    %v1786 = vmul.f32 %v1763, 1.442695
    %v1787 = vpow.pop %v1786
    %v1788 = vmul.f32 %v1764, 1.442695
    %v1789 = vpow.pop %v1788
    %v1790 = vmul.f32 %v1765, 1.442695
    %v1791 = vpow.pop %v1790
    %v1792 = vmul.f32 %v1766, 1.442695
    %v1793 = vpow.pop %v1792
    %v1794 = vmul.f32 %v1767, 1.442695
    %v1795 = vpow.pop %v1794
    %v1796 = vmul.f32 %v1768, 1.442695
    %v1797 = vpow.pop %v1796
    %v1798 = vmul.f32 %v1769, 1.442695
    %v1799 = vpow.pop %v1798
    %v1800 = vmul.f32 %v1770, 1.442695
    %v1801 = vpow.pop %v1800
    %v1802 = vmul.f32 %v1771, 1.442695
    %v1803 = vpow.pop %v1802
    %v1804 = vadd.f32 %v1773, 1.0
    %v1805 = vadd.f32 %v1775, 1.0
    %v1806 = vadd.f32 %v1777, 1.0
    %v1807 = vadd.f32 %v1779, 1.0
    %v1808 = vadd.f32 %v1781, 1.0
    %v1809 = vadd.f32 %v1783, 1.0
    %v1810 = vadd.f32 %v1785, 1.0
    %v1811 = vadd.f32 %v1787, 1.0
    %v1812 = vadd.f32 %v1789, 1.0
    %v1813 = vadd.f32 %v1791, 1.0
    %v1814 = vadd.f32 %v1793, 1.0
    %v1815 = vadd.f32 %v1795, 1.0
    %v1816 = vadd.f32 %v1797, 1.0
    %v1817 = vadd.f32 %v1799, 1.0
    %v1818 = vadd.f32 %v1801, 1.0
    %v1819 = vadd.f32 %v1803, 1.0
    %v1820 = vrcp.pop %v1804
    %v1821 = vmul.f32 1.0, %v1820
    %v1822 = vrcp.pop %v1805
    %v1823 = vmul.f32 1.0, %v1822
    %v1824 = vrcp.pop %v1806
    %v1825 = vmul.f32 1.0, %v1824
    %v1826 = vrcp.pop %v1807
    %v1827 = vmul.f32 1.0, %v1826
    %v1828 = vrcp.pop %v1808
    %v1829 = vmul.f32 1.0, %v1828
    %v1830 = vrcp.pop %v1809
    %v1831 = vmul.f32 1.0, %v1830
    %v1832 = vrcp.pop %v1810
    %v1833 = vmul.f32 1.0, %v1832
    %v1834 = vrcp.pop %v1811
    %v1835 = vmul.f32 1.0, %v1834
    %v1836 = vrcp.pop %v1812
    %v1837 = vmul.f32 1.0, %v1836
    %v1838 = vrcp.pop %v1813
    %v1839 = vmul.f32 1.0, %v1838
    %v1840 = vrcp.pop %v1814
    %v1841 = vmul.f32 1.0, %v1840
    %v1842 = vrcp.pop %v1815
    %v1843 = vmul.f32 1.0, %v1842
    %v1844 = vrcp.pop %v1816
    %v1845 = vmul.f32 1.0, %v1844
    %v1846 = vrcp.pop %v1817
    %v1847 = vmul.f32 1.0, %v1846
    %v1848 = vrcp.pop %v1818
    %v1849 = vmul.f32 1.0, %v1848
    %v1850 = vrcp.pop %v1819
    %v1851 = vmul.f32 1.0, %v1850
    %v1852 = vmul.f32 %v1709, %v1620
    %v1853 = vmul.f32 %v1711, %v1625
    %v1854 = vmul.f32 %v1713, %v1620
    %v1855 = vmul.f32 %v1715, %v1625
    %v1856 = vmul.f32 %v1717, %v1620
    %v1857 = vmul.f32 %v1719, %v1625
    %v1858 = vmul.f32 %v1721, %v1620
    %v1859 = vmul.f32 %v1723, %v1625
    %v1860 = vmul.f32 %v1725, %v1620
    %v1861 = vmul.f32 %v1727, %v1625
    %v1862 = vmul.f32 %v1729, %v1620
    %v1863 = vmul.f32 %v1731, %v1625
    %v1864 = vmul.f32 %v1733, %v1620
    %v1865 = vmul.f32 %v1735, %v1625
    %v1866 = vmul.f32 %v1737, %v1620
    %v1867 = vmul.f32 %v1739, %v1625
    %v1868 = vadd.f32 %v1382, %v1852
    %v1869 = vadd.f32 %v1387, %v1853
    %v1870 = vadd.f32 %v1392, %v1854
    %v1871 = vadd.f32 %v1397, %v1855
    %v1872 = vadd.f32 %v1402, %v1856
    %v1873 = vadd.f32 %v1407, %v1857
    %v1874 = vadd.f32 %v1412, %v1858
    %v1875 = vadd.f32 %v1417, %v1859
    %v1876 = vadd.f32 %v1422, %v1860
    %v1877 = vadd.f32 %v1427, %v1861
    %v1878 = vadd.f32 %v1432, %v1862
    %v1879 = vadd.f32 %v1437, %v1863
    %v1880 = vadd.f32 %v1442, %v1864
    %v1881 = vadd.f32 %v1447, %v1865
    %v1882 = vadd.f32 %v1452, %v1866
    %v1883 = vadd.f32 %v1457, %v1867
    %v1884 = vtanh.pop %v1868
    %v1885 = vtanh.pop %v1869
    %v1886 = vtanh.pop %v1870
    %v1887 = vtanh.pop %v1871
    %v1888 = vtanh.pop %v1872
    %v1889 = vtanh.pop %v1873
    %v1890 = vtanh.pop %v1874
    %v1891 = vtanh.pop %v1875
    %v1892 = vtanh.pop %v1876
    %v1893 = vtanh.pop %v1877
    %v1894 = vtanh.pop %v1878
    %v1895 = vtanh.pop %v1879
    %v1896 = vtanh.pop %v1880
    %v1897 = vtanh.pop %v1881
    %v1898 = vtanh.pop %v1882
    %v1899 = vtanh.pop %v1883
    %v1900 = vsub.f32 1.0, %v1821
    %v1901 = vsub.f32 1.0, %v1823
    %v1902 = vsub.f32 1.0, %v1825
    %v1903 = vsub.f32 1.0, %v1827
    %v1904 = vsub.f32 1.0, %v1829
    %v1905 = vsub.f32 1.0, %v1831
    %v1906 = vsub.f32 1.0, %v1833
    %v1907 = vsub.f32 1.0, %v1835
    %v1908 = vsub.f32 1.0, %v1837
    %v1909 = vsub.f32 1.0, %v1839
    %v1910 = vsub.f32 1.0, %v1841
    %v1911 = vsub.f32 1.0, %v1843
    %v1912 = vsub.f32 1.0, %v1845
    %v1913 = vsub.f32 1.0, %v1847
    %v1914 = vsub.f32 1.0, %v1849
    %v1915 = vsub.f32 1.0, %v1851
    %v1916 = vmul.f32 %v1900, %v1884
    %v1917 = vmul.f32 %v1901, %v1885
    %v1918 = vmul.f32 %v1902, %v1886
    %v1919 = vmul.f32 %v1903, %v1887
    %v1920 = vmul.f32 %v1904, %v1888
    %v1921 = vmul.f32 %v1905, %v1889
    %v1922 = vmul.f32 %v1906, %v1890
    %v1923 = vmul.f32 %v1907, %v1891
    %v1924 = vmul.f32 %v1908, %v1892
    %v1925 = vmul.f32 %v1909, %v1893
    %v1926 = vmul.f32 %v1910, %v1894
    %v1927 = vmul.f32 %v1911, %v1895
    %v1928 = vmul.f32 %v1912, %v1896
    %v1929 = vmul.f32 %v1913, %v1897
    %v1930 = vmul.f32 %v1914, %v1898
    %v1931 = vmul.f32 %v1915, %v1899
    %v1932 = vmul.f32 %v1821, %v262
    %v1933 = vmul.f32 %v1823, %v263
    %v1934 = vmul.f32 %v1825, %v262
    %v1935 = vmul.f32 %v1827, %v263
    %v1936 = vmul.f32 %v1829, %v262
    %v1937 = vmul.f32 %v1831, %v263
    %v1938 = vmul.f32 %v1833, %v262
    %v1939 = vmul.f32 %v1835, %v263
    %v1940 = vmul.f32 %v1837, %v262
    %v1941 = vmul.f32 %v1839, %v263
    %v1942 = vmul.f32 %v1841, %v262
    %v1943 = vmul.f32 %v1843, %v263
    %v1944 = vmul.f32 %v1845, %v262
    %v1945 = vmul.f32 %v1847, %v263
    %v1946 = vmul.f32 %v1849, %v262
    %v1947 = vmul.f32 %v1851, %v263
    %v1948 = vadd.f32 %v1916, %v1932
    %v1949 = vadd.f32 %v1917, %v1933
    %v1950 = vadd.f32 %v1918, %v1934
    %v1951 = vadd.f32 %v1919, %v1935
    %v1952 = vadd.f32 %v1920, %v1936
    %v1953 = vadd.f32 %v1921, %v1937
    %v1954 = vadd.f32 %v1922, %v1938
    %v1955 = vadd.f32 %v1923, %v1939
    %v1956 = vadd.f32 %v1924, %v1940
    %v1957 = vadd.f32 %v1925, %v1941
    %v1958 = vadd.f32 %v1926, %v1942
    %v1959 = vadd.f32 %v1927, %v1943
    %v1960 = vadd.f32 %v1928, %v1944
    %v1961 = vadd.f32 %v1929, %v1945
    %v1962 = vadd.f32 %v1930, %v1946
    %v1963 = vadd.f32 %v1931, %v1947
    %v1964 = vmul.f32 %v1948, %v269
    %v1965 = vmul.f32 %v1949, %v269
    %v1966 = vmul.f32 %v1950, %v269
    %v1967 = vmul.f32 %v1951, %v269
    %v1968 = vmul.f32 %v1952, %v269
    %v1969 = vmul.f32 %v1953, %v269
    %v1970 = vmul.f32 %v1954, %v269
    %v1971 = vmul.f32 %v1955, %v269
    %v1972 = vmul.f32 %v1956, %v269
    %v1973 = vmul.f32 %v1957, %v269
    %v1974 = vmul.f32 %v1958, %v269
    %v1975 = vmul.f32 %v1959, %v269
    %v1976 = vmul.f32 %v1960, %v269
    %v1977 = vmul.f32 %v1961, %v269
    %v1978 = vmul.f32 %v1962, %v269
    %v1979 = vmul.f32 %v1963, %v269
    %v1980 = vadd.f32 %v1964, %v270
    %v1981 = vadd.f32 %v1965, %v270
    %v1982 = vadd.f32 %v1966, %v270
    %v1983 = vadd.f32 %v1967, %v270
    %v1984 = vadd.f32 %v1968, %v270
    %v1985 = vadd.f32 %v1969, %v270
    %v1986 = vadd.f32 %v1970, %v270
    %v1987 = vadd.f32 %v1971, %v270
    %v1988 = vadd.f32 %v1972, %v270
    %v1989 = vadd.f32 %v1973, %v270
    %v1990 = vadd.f32 %v1974, %v270
    %v1991 = vadd.f32 %v1975, %v270
    %v1992 = vadd.f32 %v1976, %v270
    %v1993 = vadd.f32 %v1977, %v270
    %v1994 = vadd.f32 %v1978, %v270
    %v1995 = vadd.f32 %v1979, %v270
    %1996 = vst [vmem:[#allocation14] sm:$0xff] %v1980
    %1997 = vst [vmem:[#allocation14 + $0x8] sm:$0xff] %v1981
    %1998 = vst [vmem:[#allocation14 + $0x10] sm:$0xff] %v1982
    %1999 = vst [vmem:[#allocation14 + $0x18] sm:$0xff] %v1983
    %2000 = vst [vmem:[#allocation14 + $0x20] sm:$0xff] %v1984
    %2001 = vst [vmem:[#allocation14 + $0x28] sm:$0xff] %v1985
    %2002 = vst [vmem:[#allocation14 + $0x30] sm:$0xff] %v1986
    %2003 = vst [vmem:[#allocation14 + $0x38] sm:$0xff] %v1987
    %2004 = vst [vmem:[#allocation14 + $0x40] sm:$0xff] %v1988
    %2005 = vst [vmem:[#allocation14 + $0x48] sm:$0xff] %v1989
    %2006 = vst [vmem:[#allocation14 + $0x50] sm:$0xff] %v1990
    %2007 = vst [vmem:[#allocation14 + $0x58] sm:$0xff] %v1991
    %2008 = vst [vmem:[#allocation14 + $0x60] sm:$0xff] %v1992
    %2009 = vst [vmem:[#allocation14 + $0x68] sm:$0xff] %v1993
    %2010 = vst [vmem:[#allocation14 + $0x70] sm:$0xff] %v1994
    %2011 = vst [vmem:[#allocation14 + $0x78] sm:$0xff] %v1995
    %v2012 = vld [vmem:[#allocation8] sm:$0xff]
    %v2013 = vld [vmem:[#allocation8 + $0x8] sm:$0xff]
    %v2014 = vld [vmem:[#allocation8 + $0x10] sm:$0xff]
    %v2015 = vld [vmem:[#allocation8 + $0x18] sm:$0xff]
    %v2016 = vld [vmem:[#allocation8 + $0x20] sm:$0xff]
    %v2017 = vld [vmem:[#allocation8 + $0x28] sm:$0xff]
    %v2018 = vld [vmem:[#allocation8 + $0x30] sm:$0xff]
    %v2019 = vld [vmem:[#allocation8 + $0x38] sm:$0xff]
    %v2020 = vld [vmem:[#allocation8 + $0x40] sm:$0xff]
    %v2021 = vld [vmem:[#allocation8 + $0x48] sm:$0xff]
    %v2022 = vld [vmem:[#allocation8 + $0x50] sm:$0xff]
    %v2023 = vld [vmem:[#allocation8 + $0x58] sm:$0xff]
    %v2024 = vld [vmem:[#allocation8 + $0x60] sm:$0xff]
    %v2025 = vld [vmem:[#allocation8 + $0x68] sm:$0xff]
    %v2026 = vld [vmem:[#allocation8 + $0x70] sm:$0xff]
    %v2027 = vld [vmem:[#allocation8 + $0x78] sm:$0xff]
    %v2028 = vld [vmem:[#allocation8 + $0x80] sm:$0xff]
    %v2029 = vld [vmem:[#allocation8 + $0x88] sm:$0xff]
    %v2030 = vld [vmem:[#allocation8 + $0x90] sm:$0xff]
    %v2031 = vld [vmem:[#allocation8 + $0x98] sm:$0xff]
    %v2032 = vld [vmem:[#allocation8 + $0xa0] sm:$0xff]
    %v2033 = vld [vmem:[#allocation8 + $0xa8] sm:$0xff]
    %v2034 = vld [vmem:[#allocation8 + $0xb0] sm:$0xff]
    %v2035 = vld [vmem:[#allocation8 + $0xb8] sm:$0xff]
    %v2036 = vld [vmem:[#allocation8 + $0xc0] sm:$0xff]
    %v2037 = vld [vmem:[#allocation8 + $0xc8] sm:$0xff]
    %v2038 = vld [vmem:[#allocation8 + $0xd0] sm:$0xff]
    %v2039 = vld [vmem:[#allocation8 + $0xd8] sm:$0xff]
    %v2040 = vld [vmem:[#allocation8 + $0xe0] sm:$0xff]
    %v2041 = vld [vmem:[#allocation8 + $0xe8] sm:$0xff]
    %v2042 = vld [vmem:[#allocation8 + $0xf0] sm:$0xff]
    %v2043 = vld [vmem:[#allocation8 + $0xf8] sm:$0xff]
    %v2044 = vld [vmem:[#allocation10] sm:$0xff]
    %v2045 = vld [vmem:[#allocation10 + $0x8] sm:$0xff]
    %v2046 = vld [vmem:[#allocation10 + $0x10] sm:$0xff]
    %v2047 = vld [vmem:[#allocation10 + $0x18] sm:$0xff]
    %v2048 = vld [vmem:[#allocation10 + $0x20] sm:$0xff]
    %v2049 = vld [vmem:[#allocation10 + $0x28] sm:$0xff]
    %v2050 = vld [vmem:[#allocation10 + $0x30] sm:$0xff]
    %v2051 = vld [vmem:[#allocation10 + $0x38] sm:$0xff]
    %v2052 = vld [vmem:[#allocation10 + $0x40] sm:$0xff]
    %v2053 = vld [vmem:[#allocation10 + $0x48] sm:$0xff]
    %v2054 = vld [vmem:[#allocation10 + $0x50] sm:$0xff]
    %v2055 = vld [vmem:[#allocation10 + $0x58] sm:$0xff]
    %v2056 = vld [vmem:[#allocation10 + $0x60] sm:$0xff]
    %v2057 = vld [vmem:[#allocation10 + $0x68] sm:$0xff]
    %v2058 = vld [vmem:[#allocation10 + $0x70] sm:$0xff]
    %v2059 = vld [vmem:[#allocation10 + $0x78] sm:$0xff]
    %v2060 = vld [vmem:[#allocation10 + $0x80] sm:$0xff]
    %v2061 = vld [vmem:[#allocation10 + $0x88] sm:$0xff]
    %v2062 = vld [vmem:[#allocation10 + $0x90] sm:$0xff]
    %v2063 = vld [vmem:[#allocation10 + $0x98] sm:$0xff]
    %v2064 = vld [vmem:[#allocation10 + $0xa0] sm:$0xff]
    %v2065 = vld [vmem:[#allocation10 + $0xa8] sm:$0xff]
    %v2066 = vld [vmem:[#allocation10 + $0xb0] sm:$0xff]
    %v2067 = vld [vmem:[#allocation10 + $0xb8] sm:$0xff]
    %v2068 = vld [vmem:[#allocation10 + $0xc0] sm:$0xff]
    %v2069 = vld [vmem:[#allocation10 + $0xc8] sm:$0xff]
    %v2070 = vld [vmem:[#allocation10 + $0xd0] sm:$0xff]
    %v2071 = vld [vmem:[#allocation10 + $0xd8] sm:$0xff]
    %v2072 = vld [vmem:[#allocation10 + $0xe0] sm:$0xff]
    %v2073 = vld [vmem:[#allocation10 + $0xe8] sm:$0xff]
    %v2074 = vld [vmem:[#allocation10 + $0xf0] sm:$0xff]
    %v2075 = vld [vmem:[#allocation10 + $0xf8] sm:$0xff]
    %v2076 = vld [vmem:[#allocation10 + $0x100] sm:$0xff]
    %v2077 = vld [vmem:[#allocation10 + $0x108] sm:$0xff]
    %v2078 = vld [vmem:[#allocation10 + $0x110] sm:$0xff]
    %v2079 = vld [vmem:[#allocation10 + $0x118] sm:$0xff]
    %v2080 = vld [vmem:[#allocation10 + $0x120] sm:$0xff]
    %v2081 = vld [vmem:[#allocation10 + $0x128] sm:$0xff]
    %v2082 = vld [vmem:[#allocation10 + $0x130] sm:$0xff]
    %v2083 = vld [vmem:[#allocation10 + $0x138] sm:$0xff]
    %v2084 = vld [vmem:[#allocation10 + $0x140] sm:$0xff]
    %v2085 = vld [vmem:[#allocation10 + $0x148] sm:$0xff]
    %v2086 = vld [vmem:[#allocation10 + $0x150] sm:$0xff]
    %v2087 = vld [vmem:[#allocation10 + $0x158] sm:$0xff]
    %v2088 = vld [vmem:[#allocation10 + $0x160] sm:$0xff]
    %v2089 = vld [vmem:[#allocation10 + $0x168] sm:$0xff]
    %v2090 = vld [vmem:[#allocation10 + $0x170] sm:$0xff]
    %v2091 = vld [vmem:[#allocation10 + $0x178] sm:$0xff]
    %v2092 = vld [vmem:[#allocation11] sm:$0xff]
    %v2093 = vld [vmem:[#allocation11 + $0x8] sm:$0xff]
    %v2094 = vld [vmem:[#allocation11 + $0x10] sm:$0xff]
    %v2095 = vld [vmem:[#allocation11 + $0x18] sm:$0xff]
    %v2096 = vld [vmem:[#allocation11 + $0x20] sm:$0xff]
    %v2097 = vld [vmem:[#allocation11 + $0x28] sm:$0xff]
    %v2098 = vld [vmem:[#allocation11 + $0x30] sm:$0xff]
    %v2099 = vld [vmem:[#allocation11 + $0x38] sm:$0xff]
    %v2100 = vld [vmem:[#allocation11 + $0x40] sm:$0xff]
    %v2101 = vld [vmem:[#allocation11 + $0x48] sm:$0xff]
    %v2102 = vld [vmem:[#allocation11 + $0x50] sm:$0xff]
    %v2103 = vld [vmem:[#allocation11 + $0x58] sm:$0xff]
    %v2104 = vld [vmem:[#allocation11 + $0x60] sm:$0xff]
    %v2105 = vld [vmem:[#allocation11 + $0x68] sm:$0xff]
    %v2106 = vld [vmem:[#allocation11 + $0x70] sm:$0xff]
    %v2107 = vld [vmem:[#allocation11 + $0x78] sm:$0xff]
    %v2108 = vld [vmem:[#allocation11 + $0x80] sm:$0xff]
    %v2109 = vld [vmem:[#allocation11 + $0x88] sm:$0xff]
    %v2110 = vld [vmem:[#allocation11 + $0x90] sm:$0xff]
    %v2111 = vld [vmem:[#allocation11 + $0x98] sm:$0xff]
    %v2112 = vld [vmem:[#allocation11 + $0xa0] sm:$0xff]
    %v2113 = vld [vmem:[#allocation11 + $0xa8] sm:$0xff]
    %v2114 = vld [vmem:[#allocation11 + $0xb0] sm:$0xff]
    %v2115 = vld [vmem:[#allocation11 + $0xb8] sm:$0xff]
    %v2116 = vld [vmem:[#allocation11 + $0xc0] sm:$0xff]
    %v2117 = vld [vmem:[#allocation11 + $0xc8] sm:$0xff]
    %v2118 = vld [vmem:[#allocation11 + $0xd0] sm:$0xff]
    %v2119 = vld [vmem:[#allocation11 + $0xd8] sm:$0xff]
    %v2120 = vld [vmem:[#allocation11 + $0xe0] sm:$0xff]
    %v2121 = vld [vmem:[#allocation11 + $0xe8] sm:$0xff]
    %v2122 = vld [vmem:[#allocation11 + $0xf0] sm:$0xff]
    %v2123 = vld [vmem:[#allocation11 + $0xf8] sm:$0xff]
    %v2124 = vld [vmem:[#allocation11 + $0x100] sm:$0xff]
    %v2125 = vld [vmem:[#allocation11 + $0x108] sm:$0xff]
    %v2126 = vld [vmem:[#allocation11 + $0x110] sm:$0xff]
    %v2127 = vld [vmem:[#allocation11 + $0x118] sm:$0xff]
    %v2128 = vld [vmem:[#allocation11 + $0x120] sm:$0xff]
    %v2129 = vld [vmem:[#allocation11 + $0x128] sm:$0xff]
    %v2130 = vld [vmem:[#allocation11 + $0x130] sm:$0xff]
    %v2131 = vld [vmem:[#allocation11 + $0x138] sm:$0xff]
    %v2132 = vld [vmem:[#allocation11 + $0x140] sm:$0xff]
    %v2133 = vld [vmem:[#allocation11 + $0x148] sm:$0xff]
    %v2134 = vld [vmem:[#allocation11 + $0x150] sm:$0xff]
    %v2135 = vld [vmem:[#allocation11 + $0x158] sm:$0xff]
    %v2136 = vld [vmem:[#allocation11 + $0x160] sm:$0xff]
    %v2137 = vld [vmem:[#allocation11 + $0x168] sm:$0xff]
    %v2138 = vld [vmem:[#allocation11 + $0x170] sm:$0xff]
    %v2139 = vld [vmem:[#allocation11 + $0x178] sm:$0xff]
    %v2140 = vld [vmem:[#allocation13] sm:$0xff]
    %v2141 = vld [vmem:[#allocation13 + $0x8] sm:$0xff]
    %v2142 = vld [vmem:[%s10] ss:$8 sm:$0x7]
    %s2143 = scalar_lea.vmem %s10, 1
    %v2144 = vld [vmem:[%s2143] ss:$8 sm:$0x7]
    %s2145 = scalar_lea.vmem %s10, 2
    %v2146 = vld [vmem:[%s2145] ss:$8 sm:$0x3]
    %v2147 = vld [vmem:[%s10 + $0x12] ss:$0 sm:$0xff]
    %v2148 = vld [vmem:[%s10 + $0x3] ss:$0 sm:$0xff]
    %2149 = vmatprep.subr.mxu0 0.0
    %2150 = vmatpush1.msra.mxu0 %v1980
    %2151 = vmatprep.subr.mxu0 0.0
    %2152 = vmatpush1.msra.mxu0 %v1981
    %2153 = vmatprep.subr.mxu0 0.0
    %2154 = vmatpush1.msra.mxu0 0.0
    %2155 = vmatprep.subr.mxu0 0.0
    %2156 = vmatpush1.msra.mxu0 0.0
    %2157 = vmatprep.subr.mxu0 0.0
    %2158 = vmatpush1.msra.mxu0 0.0
    %2159 = vmatprep.subr.mxu0 0.0
    %2160 = vmatpush1.msra.mxu0 0.0
    %2161 = vmatprep.subr.mxu0 0.0
    %2162 = vmatpush1.msra.mxu0 0.0
    %2163 = vmatprep.subr.mxu0 0.0
    %2164 = vmatpush1.msra.mxu0 0.0
    %2165 = vmatprep.subr.mxu0 0.0
    %2166 = vmatpush1.msra.mxu0 0.0
    %2167 = vmatprep.subr.mxu0 0.0
    %2168 = vmatpush1.msra.mxu0 0.0
    %2169 = vmatprep.subr.mxu0 0.0
    %2170 = vmatpush1.msra.mxu0 0.0
    %2171 = vmatprep.subr.mxu0 0.0
    %2172 = vmatpush1.msra.mxu0 0.0
    %2173 = vmatprep.subr.mxu0 0.0
    %2174 = vmatpush1.msra.mxu0 0.0
    %2175 = vmatprep.subr.mxu0 0.0
    %2176 = vmatpush1.msra.mxu0 0.0
    %2177 = vmatprep.subr.mxu0 0.0
    %2178 = vmatpush1.msra.mxu0 0.0
    %2179 = vmatprep.subr.mxu0 0.0
    %2180 = vmatpush1.msra.mxu0 0.0
    %2181 = vmatprep.subr.mxu0 0.0
    %2182 = vmatpush1.msra.mxu0 0.0
    %2183 = vmatprep.subr.mxu0 0.0
    %2184 = vmatpush1.msra.mxu0 0.0
    %2185 = vmatprep.subr.mxu0 0.0
    %2186 = vmatpush1.msra.mxu0 0.0
    %2187 = vmatprep.subr.mxu0 0.0
    %2188 = vmatpush1.msra.mxu0 0.0
    %2189 = vmatprep.subr.mxu0 0.0
    %2190 = vmatpush1.msra.mxu0 0.0
    %2191 = vmatprep.subr.mxu0 0.0
    %2192 = vmatpush1.msra.mxu0 0.0
    %2193 = vmatprep.subr.mxu0 0.0
    %2194 = vmatpush1.msra.mxu0 0.0
    %2195 = vmatprep.subr.mxu0 0.0
    %2196 = vmatpush1.msra.mxu0 0.0
    %2197 = vmatprep.subr.mxu0 0.0
    %2198 = vmatpush1.msra.mxu0 0.0
    %2199 = vmatprep.subr.mxu0 0.0
    %2200 = vmatpush1.msra.mxu0 0.0
    %2201 = vmatprep.subr.mxu0 0.0
    %2202 = vmatpush1.msra.mxu0 0.0
    %2203 = vmatprep.subr.mxu0 0.0
    %2204 = vmatpush1.msra.mxu0 0.0
    %2205 = vmatprep.subr.mxu0 0.0
    %2206 = vmatpush1.msra.mxu0 0.0
    %2207 = vmatprep.subr.mxu0 0.0
    %2208 = vmatpush1.msra.mxu0 0.0
    %2209 = vmatprep.subr.mxu0 0.0
    %2210 = vmatpush1.msra.mxu0 0.0
    %2211 = vmatprep.subr.mxu0 0.0
    %2212 = vmatpush1.msra.mxu0 0.0
    %2213 = vmatprep.mubr.f32.mxu0 0.0
    %2214 = vmatmul.mubr.f32.gmra.mrb[0].mxu0 %v273
    %v2215 = vpop.f32.mrb[0].mxu0
    %v2216 = vadd.f32 0.0, %v2215
    %v2217 = vpop.f32.mrb[0].mxu0
    %2218 = vmatprep.mubr.f32.mxu0 0.0
    %2219 = vmatmul.mubr.f32.gmra.mrb[0].mxu0 %v276
    %v2220 = vpop.f32.mrb[0].mxu0
    %v2221 = vadd.f32 0.0, %v2220
    %v2222 = vpop.f32.mrb[0].mxu0
    %2223 = vdwg.mxu0
    %2224 = vmatprep.subr.mxu0 0.0
    %2225 = vmatpush1.msra.mxu0 %v1982
    %2226 = vmatprep.subr.mxu0 0.0
    %2227 = vmatpush1.msra.mxu0 %v1983
    %2228 = vmatprep.subr.mxu0 0.0
    %2229 = vmatpush1.msra.mxu0 0.0
    %2230 = vmatprep.subr.mxu0 0.0
    %2231 = vmatpush1.msra.mxu0 0.0
    %2232 = vmatprep.subr.mxu0 0.0
    %2233 = vmatpush1.msra.mxu0 0.0
    %2234 = vmatprep.subr.mxu0 0.0
    %2235 = vmatpush1.msra.mxu0 0.0
    %2236 = vmatprep.subr.mxu0 0.0
    %2237 = vmatpush1.msra.mxu0 0.0
    %2238 = vmatprep.subr.mxu0 0.0
    %2239 = vmatpush1.msra.mxu0 0.0
    %2240 = vmatprep.subr.mxu0 0.0
    %2241 = vmatpush1.msra.mxu0 0.0
    %2242 = vmatprep.subr.mxu0 0.0
    %2243 = vmatpush1.msra.mxu0 0.0
    %2244 = vmatprep.subr.mxu0 0.0
    %2245 = vmatpush1.msra.mxu0 0.0
    %2246 = vmatprep.subr.mxu0 0.0
    %2247 = vmatpush1.msra.mxu0 0.0
    %2248 = vmatprep.subr.mxu0 0.0
    %2249 = vmatpush1.msra.mxu0 0.0
    %2250 = vmatprep.subr.mxu0 0.0
    %2251 = vmatpush1.msra.mxu0 0.0
    %2252 = vmatprep.subr.mxu0 0.0
    %2253 = vmatpush1.msra.mxu0 0.0
    %2254 = vmatprep.subr.mxu0 0.0
    %2255 = vmatpush1.msra.mxu0 0.0
    %2256 = vmatprep.subr.mxu0 0.0
    %2257 = vmatpush1.msra.mxu0 0.0
    %2258 = vmatprep.subr.mxu0 0.0
    %2259 = vmatpush1.msra.mxu0 0.0
    %2260 = vmatprep.subr.mxu0 0.0
    %2261 = vmatpush1.msra.mxu0 0.0
    %2262 = vmatprep.subr.mxu0 0.0
    %2263 = vmatpush1.msra.mxu0 0.0
    %2264 = vmatprep.subr.mxu0 0.0
    %2265 = vmatpush1.msra.mxu0 0.0
    %2266 = vmatprep.subr.mxu0 0.0
    %2267 = vmatpush1.msra.mxu0 0.0
    %2268 = vmatprep.subr.mxu0 0.0
    %2269 = vmatpush1.msra.mxu0 0.0
    %2270 = vmatprep.subr.mxu0 0.0
    %2271 = vmatpush1.msra.mxu0 0.0
    %2272 = vmatprep.subr.mxu0 0.0
    %2273 = vmatpush1.msra.mxu0 0.0
    %2274 = vmatprep.subr.mxu0 0.0
    %2275 = vmatpush1.msra.mxu0 0.0
    %2276 = vmatprep.subr.mxu0 0.0
    %2277 = vmatpush1.msra.mxu0 0.0
    %2278 = vmatprep.subr.mxu0 0.0
    %2279 = vmatpush1.msra.mxu0 0.0
    %2280 = vmatprep.subr.mxu0 0.0
    %2281 = vmatpush1.msra.mxu0 0.0
    %2282 = vmatprep.subr.mxu0 0.0
    %2283 = vmatpush1.msra.mxu0 0.0
    %2284 = vmatprep.subr.mxu0 0.0
    %2285 = vmatpush1.msra.mxu0 0.0
    %2286 = vmatprep.subr.mxu0 0.0
    %2287 = vmatpush1.msra.mxu0 0.0
    %2288 = vmatprep.mubr.f32.mxu0 0.0
    %2289 = vmatmul.mubr.f32.gmra.mrb[0].mxu0 %v273
    %v2290 = vpop.f32.mrb[0].mxu0
    %v2291 = vadd.f32 0.0, %v2290
    %v2292 = vpop.f32.mrb[0].mxu0
    %2293 = vmatprep.mubr.f32.mxu0 0.0
    %2294 = vmatmul.mubr.f32.gmra.mrb[0].mxu0 %v276
    %v2295 = vpop.f32.mrb[0].mxu0
    %v2296 = vadd.f32 0.0, %v2295
    %v2297 = vpop.f32.mrb[0].mxu0
    %2298 = vdwg.mxu0
    %2299 = vmatprep.subr.mxu0 0.0
    %2300 = vmatpush1.msra.mxu0 %v1984
    %2301 = vmatprep.subr.mxu0 0.0
    %2302 = vmatpush1.msra.mxu0 %v1985
    %2303 = vmatprep.subr.mxu0 0.0
    %2304 = vmatpush1.msra.mxu0 0.0
    %2305 = vmatprep.subr.mxu0 0.0
    %2306 = vmatpush1.msra.mxu0 0.0
    %2307 = vmatprep.subr.mxu0 0.0
    %2308 = vmatpush1.msra.mxu0 0.0
    %2309 = vmatprep.subr.mxu0 0.0
    %2310 = vmatpush1.msra.mxu0 0.0
    %2311 = vmatprep.subr.mxu0 0.0
    %2312 = vmatpush1.msra.mxu0 0.0
    %2313 = vmatprep.subr.mxu0 0.0
    %2314 = vmatpush1.msra.mxu0 0.0
    %2315 = vmatprep.subr.mxu0 0.0
    %2316 = vmatpush1.msra.mxu0 0.0
    %2317 = vmatprep.subr.mxu0 0.0
    %2318 = vmatpush1.msra.mxu0 0.0
    %2319 = vmatprep.subr.mxu0 0.0
    %2320 = vmatpush1.msra.mxu0 0.0
    %2321 = vmatprep.subr.mxu0 0.0
    %2322 = vmatpush1.msra.mxu0 0.0
    %2323 = vmatprep.subr.mxu0 0.0
    %2324 = vmatpush1.msra.mxu0 0.0
    %2325 = vmatprep.subr.mxu0 0.0
    %2326 = vmatpush1.msra.mxu0 0.0
    %2327 = vmatprep.subr.mxu0 0.0
    %2328 = vmatpush1.msra.mxu0 0.0
    %2329 = vmatprep.subr.mxu0 0.0
    %2330 = vmatpush1.msra.mxu0 0.0
    %2331 = vmatprep.subr.mxu0 0.0
    %2332 = vmatpush1.msra.mxu0 0.0
    %2333 = vmatprep.subr.mxu0 0.0
    %2334 = vmatpush1.msra.mxu0 0.0
    %2335 = vmatprep.subr.mxu0 0.0
    %2336 = vmatpush1.msra.mxu0 0.0
    %2337 = vmatprep.subr.mxu0 0.0
    %2338 = vmatpush1.msra.mxu0 0.0
    %2339 = vmatprep.subr.mxu0 0.0
    %2340 = vmatpush1.msra.mxu0 0.0
    %2341 = vmatprep.subr.mxu0 0.0
    %2342 = vmatpush1.msra.mxu0 0.0
    %2343 = vmatprep.subr.mxu0 0.0
    %2344 = vmatpush1.msra.mxu0 0.0
    %2345 = vmatprep.subr.mxu0 0.0
    %2346 = vmatpush1.msra.mxu0 0.0
    %2347 = vmatprep.subr.mxu0 0.0
    %2348 = vmatpush1.msra.mxu0 0.0
    %2349 = vmatprep.subr.mxu0 0.0
    %2350 = vmatpush1.msra.mxu0 0.0
    %2351 = vmatprep.subr.mxu0 0.0
    %2352 = vmatpush1.msra.mxu0 0.0
    %2353 = vmatprep.subr.mxu0 0.0
    %2354 = vmatpush1.msra.mxu0 0.0
    %2355 = vmatprep.subr.mxu0 0.0
    %2356 = vmatpush1.msra.mxu0 0.0
    %2357 = vmatprep.subr.mxu0 0.0
    %2358 = vmatpush1.msra.mxu0 0.0
    %2359 = vmatprep.subr.mxu0 0.0
    %2360 = vmatpush1.msra.mxu0 0.0
    %2361 = vmatprep.subr.mxu0 0.0
    %2362 = vmatpush1.msra.mxu0 0.0
    %2363 = vmatprep.mubr.f32.mxu0 0.0
    %2364 = vmatmul.mubr.f32.gmra.mrb[0].mxu0 %v273
    %v2365 = vpop.f32.mrb[0].mxu0
    %v2366 = vadd.f32 0.0, %v2365
    %v2367 = vpop.f32.mrb[0].mxu0
    %2368 = vmatprep.mubr.f32.mxu0 0.0
    %2369 = vmatmul.mubr.f32.gmra.mrb[0].mxu0 %v276
    %v2370 = vpop.f32.mrb[0].mxu0
    %v2371 = vadd.f32 0.0, %v2370
    %v2372 = vpop.f32.mrb[0].mxu0
    %2373 = vdwg.mxu0
    %2374 = vmatprep.subr.mxu0 0.0
    %2375 = vmatpush1.msra.mxu0 %v1986
    %2376 = vmatprep.subr.mxu0 0.0
    %2377 = vmatpush1.msra.mxu0 %v1987
    %2378 = vmatprep.subr.mxu0 0.0
    %2379 = vmatpush1.msra.mxu0 0.0
    %2380 = vmatprep.subr.mxu0 0.0
    %2381 = vmatpush1.msra.mxu0 0.0
    %2382 = vmatprep.subr.mxu0 0.0
    %2383 = vmatpush1.msra.mxu0 0.0
    %2384 = vmatprep.subr.mxu0 0.0
    %2385 = vmatpush1.msra.mxu0 0.0
    %2386 = vmatprep.subr.mxu0 0.0
    %2387 = vmatpush1.msra.mxu0 0.0
    %2388 = vmatprep.subr.mxu0 0.0
    %2389 = vmatpush1.msra.mxu0 0.0
    %2390 = vmatprep.subr.mxu0 0.0
    %2391 = vmatpush1.msra.mxu0 0.0
    %2392 = vmatprep.subr.mxu0 0.0
    %2393 = vmatpush1.msra.mxu0 0.0
    %2394 = vmatprep.subr.mxu0 0.0
    %2395 = vmatpush1.msra.mxu0 0.0
    %2396 = vmatprep.subr.mxu0 0.0
    %2397 = vmatpush1.msra.mxu0 0.0
    %2398 = vmatprep.subr.mxu0 0.0
    %2399 = vmatpush1.msra.mxu0 0.0
    %2400 = vmatprep.subr.mxu0 0.0
    %2401 = vmatpush1.msra.mxu0 0.0
    %2402 = vmatprep.subr.mxu0 0.0
    %2403 = vmatpush1.msra.mxu0 0.0
    %2404 = vmatprep.subr.mxu0 0.0
    %2405 = vmatpush1.msra.mxu0 0.0
    %2406 = vmatprep.subr.mxu0 0.0
    %2407 = vmatpush1.msra.mxu0 0.0
    %2408 = vmatprep.subr.mxu0 0.0
    %2409 = vmatpush1.msra.mxu0 0.0
    %2410 = vmatprep.subr.mxu0 0.0
    %2411 = vmatpush1.msra.mxu0 0.0
    %2412 = vmatprep.subr.mxu0 0.0
    %2413 = vmatpush1.msra.mxu0 0.0
    %2414 = vmatprep.subr.mxu0 0.0
    %2415 = vmatpush1.msra.mxu0 0.0
    %2416 = vmatprep.subr.mxu0 0.0
    %2417 = vmatpush1.msra.mxu0 0.0
    %2418 = vmatprep.subr.mxu0 0.0
    %2419 = vmatpush1.msra.mxu0 0.0
    %2420 = vmatprep.subr.mxu0 0.0
    %2421 = vmatpush1.msra.mxu0 0.0
    %2422 = vmatprep.subr.mxu0 0.0
    %2423 = vmatpush1.msra.mxu0 0.0
    %2424 = vmatprep.subr.mxu0 0.0
    %2425 = vmatpush1.msra.mxu0 0.0
    %2426 = vmatprep.subr.mxu0 0.0
    %2427 = vmatpush1.msra.mxu0 0.0
    %2428 = vmatprep.subr.mxu0 0.0
    %2429 = vmatpush1.msra.mxu0 0.0
    %2430 = vmatprep.subr.mxu0 0.0
    %2431 = vmatpush1.msra.mxu0 0.0
    %2432 = vmatprep.subr.mxu0 0.0
    %2433 = vmatpush1.msra.mxu0 0.0
    %2434 = vmatprep.subr.mxu0 0.0
    %2435 = vmatpush1.msra.mxu0 0.0
    %2436 = vmatprep.subr.mxu0 0.0
    %2437 = vmatpush1.msra.mxu0 0.0
    %2438 = vmatprep.mubr.f32.mxu0 0.0
    %2439 = vmatmul.mubr.f32.gmra.mrb[0].mxu0 %v273
    %v2440 = vpop.f32.mrb[0].mxu0
    %v2441 = vadd.f32 0.0, %v2440
    %v2442 = vpop.f32.mrb[0].mxu0
    %2443 = vmatprep.mubr.f32.mxu0 0.0
    %2444 = vmatmul.mubr.f32.gmra.mrb[0].mxu0 %v276
    %v2445 = vpop.f32.mrb[0].mxu0
    %v2446 = vadd.f32 0.0, %v2445
    %v2447 = vpop.f32.mrb[0].mxu0
    %2448 = vdwg.mxu0
    %2449 = vmatprep.subr.mxu0 0.0
    %2450 = vmatpush1.msra.mxu0 %v1988
    %2451 = vmatprep.subr.mxu0 0.0
    %2452 = vmatpush1.msra.mxu0 %v1989
    %2453 = vmatprep.subr.mxu0 0.0
    %2454 = vmatpush1.msra.mxu0 0.0
    %2455 = vmatprep.subr.mxu0 0.0
    %2456 = vmatpush1.msra.mxu0 0.0
    %2457 = vmatprep.subr.mxu0 0.0
    %2458 = vmatpush1.msra.mxu0 0.0
    %2459 = vmatprep.subr.mxu0 0.0
    %2460 = vmatpush1.msra.mxu0 0.0
    %2461 = vmatprep.subr.mxu0 0.0
    %2462 = vmatpush1.msra.mxu0 0.0
    %2463 = vmatprep.subr.mxu0 0.0
    %2464 = vmatpush1.msra.mxu0 0.0
    %2465 = vmatprep.subr.mxu0 0.0
    %2466 = vmatpush1.msra.mxu0 0.0
    %2467 = vmatprep.subr.mxu0 0.0
    %2468 = vmatpush1.msra.mxu0 0.0
    %2469 = vmatprep.subr.mxu0 0.0
    %2470 = vmatpush1.msra.mxu0 0.0
    %2471 = vmatprep.subr.mxu0 0.0
    %2472 = vmatpush1.msra.mxu0 0.0
    %2473 = vmatprep.subr.mxu0 0.0
    %2474 = vmatpush1.msra.mxu0 0.0
    %2475 = vmatprep.subr.mxu0 0.0
    %2476 = vmatpush1.msra.mxu0 0.0
    %2477 = vmatprep.subr.mxu0 0.0
    %2478 = vmatpush1.msra.mxu0 0.0
    %2479 = vmatprep.subr.mxu0 0.0
    %2480 = vmatpush1.msra.mxu0 0.0
    %2481 = vmatprep.subr.mxu0 0.0
    %2482 = vmatpush1.msra.mxu0 0.0
    %2483 = vmatprep.subr.mxu0 0.0
    %2484 = vmatpush1.msra.mxu0 0.0
    %2485 = vmatprep.subr.mxu0 0.0
    %2486 = vmatpush1.msra.mxu0 0.0
    %2487 = vmatprep.subr.mxu0 0.0
    %2488 = vmatpush1.msra.mxu0 0.0
    %2489 = vmatprep.subr.mxu0 0.0
    %2490 = vmatpush1.msra.mxu0 0.0
    %2491 = vmatprep.subr.mxu0 0.0
    %2492 = vmatpush1.msra.mxu0 0.0
    %2493 = vmatprep.subr.mxu0 0.0
    %2494 = vmatpush1.msra.mxu0 0.0
    %2495 = vmatprep.subr.mxu0 0.0
    %2496 = vmatpush1.msra.mxu0 0.0
    %2497 = vmatprep.subr.mxu0 0.0
    %2498 = vmatpush1.msra.mxu0 0.0
    %2499 = vmatprep.subr.mxu0 0.0
    %2500 = vmatpush1.msra.mxu0 0.0
    %2501 = vmatprep.subr.mxu0 0.0
    %2502 = vmatpush1.msra.mxu0 0.0
    %2503 = vmatprep.subr.mxu0 0.0
    %2504 = vmatpush1.msra.mxu0 0.0
    %2505 = vmatprep.subr.mxu0 0.0
    %2506 = vmatpush1.msra.mxu0 0.0
    %2507 = vmatprep.subr.mxu0 0.0
    %2508 = vmatpush1.msra.mxu0 0.0
    %2509 = vmatprep.subr.mxu0 0.0
    %2510 = vmatpush1.msra.mxu0 0.0
    %2511 = vmatprep.subr.mxu0 0.0
    %2512 = vmatpush1.msra.mxu0 0.0
    %2513 = vmatprep.mubr.f32.mxu0 0.0
    %2514 = vmatmul.mubr.f32.gmra.mrb[0].mxu0 %v273
    %v2515 = vpop.f32.mrb[0].mxu0
    %v2516 = vadd.f32 0.0, %v2515
    %v2517 = vpop.f32.mrb[0].mxu0
    %2518 = vmatprep.mubr.f32.mxu0 0.0
    %2519 = vmatmul.mubr.f32.gmra.mrb[0].mxu0 %v276
    %v2520 = vpop.f32.mrb[0].mxu0
    %v2521 = vadd.f32 0.0, %v2520
    %v2522 = vpop.f32.mrb[0].mxu0
    %2523 = vdwg.mxu0
    %2524 = vmatprep.subr.mxu0 0.0
    %2525 = vmatpush1.msra.mxu0 %v1990
    %2526 = vmatprep.subr.mxu0 0.0
    %2527 = vmatpush1.msra.mxu0 %v1991
    %2528 = vmatprep.subr.mxu0 0.0
    %2529 = vmatpush1.msra.mxu0 0.0
    %2530 = vmatprep.subr.mxu0 0.0
    %2531 = vmatpush1.msra.mxu0 0.0
    %2532 = vmatprep.subr.mxu0 0.0
    %2533 = vmatpush1.msra.mxu0 0.0
    %2534 = vmatprep.subr.mxu0 0.0
    %2535 = vmatpush1.msra.mxu0 0.0
    %2536 = vmatprep.subr.mxu0 0.0
    %2537 = vmatpush1.msra.mxu0 0.0
    %2538 = vmatprep.subr.mxu0 0.0
    %2539 = vmatpush1.msra.mxu0 0.0
    %2540 = vmatprep.subr.mxu0 0.0
    %2541 = vmatpush1.msra.mxu0 0.0
    %2542 = vmatprep.subr.mxu0 0.0
    %2543 = vmatpush1.msra.mxu0 0.0
    %2544 = vmatprep.subr.mxu0 0.0
    %2545 = vmatpush1.msra.mxu0 0.0
    %2546 = vmatprep.subr.mxu0 0.0
    %2547 = vmatpush1.msra.mxu0 0.0
    %2548 = vmatprep.subr.mxu0 0.0
    %2549 = vmatpush1.msra.mxu0 0.0
    %2550 = vmatprep.subr.mxu0 0.0
    %2551 = vmatpush1.msra.mxu0 0.0
    %2552 = vmatprep.subr.mxu0 0.0
    %2553 = vmatpush1.msra.mxu0 0.0
    %2554 = vmatprep.subr.mxu0 0.0
    %2555 = vmatpush1.msra.mxu0 0.0
    %2556 = vmatprep.subr.mxu0 0.0
    %2557 = vmatpush1.msra.mxu0 0.0
    %2558 = vmatprep.subr.mxu0 0.0
    %2559 = vmatpush1.msra.mxu0 0.0
    %2560 = vmatprep.subr.mxu0 0.0
    %2561 = vmatpush1.msra.mxu0 0.0
    %2562 = vmatprep.subr.mxu0 0.0
    %2563 = vmatpush1.msra.mxu0 0.0
    %2564 = vmatprep.subr.mxu0 0.0
    %2565 = vmatpush1.msra.mxu0 0.0
    %2566 = vmatprep.subr.mxu0 0.0
    %2567 = vmatpush1.msra.mxu0 0.0
    %2568 = vmatprep.subr.mxu0 0.0
    %2569 = vmatpush1.msra.mxu0 0.0
    %2570 = vmatprep.subr.mxu0 0.0
    %2571 = vmatpush1.msra.mxu0 0.0
    %2572 = vmatprep.subr.mxu0 0.0
    %2573 = vmatpush1.msra.mxu0 0.0
    %2574 = vmatprep.subr.mxu0 0.0
    %2575 = vmatpush1.msra.mxu0 0.0
    %2576 = vmatprep.subr.mxu0 0.0
    %2577 = vmatpush1.msra.mxu0 0.0
    %2578 = vmatprep.subr.mxu0 0.0
    %2579 = vmatpush1.msra.mxu0 0.0
    %2580 = vmatprep.subr.mxu0 0.0
    %2581 = vmatpush1.msra.mxu0 0.0
    %2582 = vmatprep.subr.mxu0 0.0
    %2583 = vmatpush1.msra.mxu0 0.0
    %2584 = vmatprep.subr.mxu0 0.0
    %2585 = vmatpush1.msra.mxu0 0.0
    %2586 = vmatprep.subr.mxu0 0.0
    %2587 = vmatpush1.msra.mxu0 0.0
    %2588 = vmatprep.mubr.f32.mxu0 0.0
    %2589 = vmatmul.mubr.f32.gmra.mrb[0].mxu0 %v273
    %v2590 = vpop.f32.mrb[0].mxu0
    %v2591 = vadd.f32 0.0, %v2590
    %v2592 = vpop.f32.mrb[0].mxu0
    %2593 = vmatprep.mubr.f32.mxu0 0.0
    %2594 = vmatmul.mubr.f32.gmra.mrb[0].mxu0 %v276
    %v2595 = vpop.f32.mrb[0].mxu0
    %v2596 = vadd.f32 0.0, %v2595
    %v2597 = vpop.f32.mrb[0].mxu0
    %2598 = vdwg.mxu0
    %2599 = vmatprep.subr.mxu0 0.0
    %2600 = vmatpush1.msra.mxu0 %v1992
    %2601 = vmatprep.subr.mxu0 0.0
    %2602 = vmatpush1.msra.mxu0 %v1993
    %2603 = vmatprep.subr.mxu0 0.0
    %2604 = vmatpush1.msra.mxu0 0.0
    %2605 = vmatprep.subr.mxu0 0.0
    %2606 = vmatpush1.msra.mxu0 0.0
    %2607 = vmatprep.subr.mxu0 0.0
    %2608 = vmatpush1.msra.mxu0 0.0
    %2609 = vmatprep.subr.mxu0 0.0
    %2610 = vmatpush1.msra.mxu0 0.0
    %2611 = vmatprep.subr.mxu0 0.0
    %2612 = vmatpush1.msra.mxu0 0.0
    %2613 = vmatprep.subr.mxu0 0.0
    %2614 = vmatpush1.msra.mxu0 0.0
    %2615 = vmatprep.subr.mxu0 0.0
    %2616 = vmatpush1.msra.mxu0 0.0
    %2617 = vmatprep.subr.mxu0 0.0
    %2618 = vmatpush1.msra.mxu0 0.0
    %2619 = vmatprep.subr.mxu0 0.0
    %2620 = vmatpush1.msra.mxu0 0.0
    %2621 = vmatprep.subr.mxu0 0.0
    %2622 = vmatpush1.msra.mxu0 0.0
    %2623 = vmatprep.subr.mxu0 0.0
    %2624 = vmatpush1.msra.mxu0 0.0
    %2625 = vmatprep.subr.mxu0 0.0
    %2626 = vmatpush1.msra.mxu0 0.0
    %2627 = vmatprep.subr.mxu0 0.0
    %2628 = vmatpush1.msra.mxu0 0.0
    %2629 = vmatprep.subr.mxu0 0.0
    %2630 = vmatpush1.msra.mxu0 0.0
    %2631 = vmatprep.subr.mxu0 0.0
    %2632 = vmatpush1.msra.mxu0 0.0
    %2633 = vmatprep.subr.mxu0 0.0
    %2634 = vmatpush1.msra.mxu0 0.0
    %2635 = vmatprep.subr.mxu0 0.0
    %2636 = vmatpush1.msra.mxu0 0.0
    %2637 = vmatprep.subr.mxu0 0.0
    %2638 = vmatpush1.msra.mxu0 0.0
    %2639 = vmatprep.subr.mxu0 0.0
    %2640 = vmatpush1.msra.mxu0 0.0
    %2641 = vmatprep.subr.mxu0 0.0
    %2642 = vmatpush1.msra.mxu0 0.0
    %2643 = vmatprep.subr.mxu0 0.0
    %2644 = vmatpush1.msra.mxu0 0.0
    %2645 = vmatprep.subr.mxu0 0.0
    %2646 = vmatpush1.msra.mxu0 0.0
    %2647 = vmatprep.subr.mxu0 0.0
    %2648 = vmatpush1.msra.mxu0 0.0
    %2649 = vmatprep.subr.mxu0 0.0
    %2650 = vmatpush1.msra.mxu0 0.0
    %2651 = vmatprep.subr.mxu0 0.0
    %2652 = vmatpush1.msra.mxu0 0.0
    %2653 = vmatprep.subr.mxu0 0.0
    %2654 = vmatpush1.msra.mxu0 0.0
    %2655 = vmatprep.subr.mxu0 0.0
    %2656 = vmatpush1.msra.mxu0 0.0
    %2657 = vmatprep.subr.mxu0 0.0
    %2658 = vmatpush1.msra.mxu0 0.0
    %2659 = vmatprep.subr.mxu0 0.0
    %2660 = vmatpush1.msra.mxu0 0.0
    %2661 = vmatprep.subr.mxu0 0.0
    %2662 = vmatpush1.msra.mxu0 0.0
    %2663 = vmatprep.mubr.f32.mxu0 0.0
    %2664 = vmatmul.mubr.f32.gmra.mrb[0].mxu0 %v273
    %v2665 = vpop.f32.mrb[0].mxu0
    %v2666 = vadd.f32 0.0, %v2665
    %v2667 = vpop.f32.mrb[0].mxu0
    %2668 = vmatprep.mubr.f32.mxu0 0.0
    %2669 = vmatmul.mubr.f32.gmra.mrb[0].mxu0 %v276
    %v2670 = vpop.f32.mrb[0].mxu0
    %v2671 = vadd.f32 0.0, %v2670
    %v2672 = vpop.f32.mrb[0].mxu0
    %2673 = vdwg.mxu0
    %2674 = vmatprep.subr.mxu0 0.0
    %2675 = vmatpush1.msra.mxu0 %v1994
    %2676 = vmatprep.subr.mxu0 0.0
    %2677 = vmatpush1.msra.mxu0 %v1995
    %2678 = vmatprep.subr.mxu0 0.0
    %2679 = vmatpush1.msra.mxu0 0.0
    %2680 = vmatprep.subr.mxu0 0.0
    %2681 = vmatpush1.msra.mxu0 0.0
    %2682 = vmatprep.subr.mxu0 0.0
    %2683 = vmatpush1.msra.mxu0 0.0
    %2684 = vmatprep.subr.mxu0 0.0
    %2685 = vmatpush1.msra.mxu0 0.0
    %2686 = vmatprep.subr.mxu0 0.0
    %2687 = vmatpush1.msra.mxu0 0.0
    %2688 = vmatprep.subr.mxu0 0.0
    %2689 = vmatpush1.msra.mxu0 0.0
    %2690 = vmatprep.subr.mxu0 0.0
    %2691 = vmatpush1.msra.mxu0 0.0
    %2692 = vmatprep.subr.mxu0 0.0
    %2693 = vmatpush1.msra.mxu0 0.0
    %2694 = vmatprep.subr.mxu0 0.0
    %2695 = vmatpush1.msra.mxu0 0.0
    %2696 = vmatprep.subr.mxu0 0.0
    %2697 = vmatpush1.msra.mxu0 0.0
    %2698 = vmatprep.subr.mxu0 0.0
    %2699 = vmatpush1.msra.mxu0 0.0
    %2700 = vmatprep.subr.mxu0 0.0
    %2701 = vmatpush1.msra.mxu0 0.0
    %2702 = vmatprep.subr.mxu0 0.0
    %2703 = vmatpush1.msra.mxu0 0.0
    %2704 = vmatprep.subr.mxu0 0.0
    %2705 = vmatpush1.msra.mxu0 0.0
    %2706 = vmatprep.subr.mxu0 0.0
    %2707 = vmatpush1.msra.mxu0 0.0
    %2708 = vmatprep.subr.mxu0 0.0
    %2709 = vmatpush1.msra.mxu0 0.0
    %2710 = vmatprep.subr.mxu0 0.0
    %2711 = vmatpush1.msra.mxu0 0.0
    %2712 = vmatprep.subr.mxu0 0.0
    %2713 = vmatpush1.msra.mxu0 0.0
    %2714 = vmatprep.subr.mxu0 0.0
    %2715 = vmatpush1.msra.mxu0 0.0
    %2716 = vmatprep.subr.mxu0 0.0
    %2717 = vmatpush1.msra.mxu0 0.0
    %2718 = vmatprep.subr.mxu0 0.0
    %2719 = vmatpush1.msra.mxu0 0.0
    %2720 = vmatprep.subr.mxu0 0.0
    %2721 = vmatpush1.msra.mxu0 0.0
    %2722 = vmatprep.subr.mxu0 0.0
    %2723 = vmatpush1.msra.mxu0 0.0
    %2724 = vmatprep.subr.mxu0 0.0
    %2725 = vmatpush1.msra.mxu0 0.0
    %2726 = vmatprep.subr.mxu0 0.0
    %2727 = vmatpush1.msra.mxu0 0.0
    %2728 = vmatprep.subr.mxu0 0.0
    %2729 = vmatpush1.msra.mxu0 0.0
    %2730 = vmatprep.subr.mxu0 0.0
    %2731 = vmatpush1.msra.mxu0 0.0
    %2732 = vmatprep.subr.mxu0 0.0
    %2733 = vmatpush1.msra.mxu0 0.0
    %2734 = vmatprep.subr.mxu0 0.0
    %2735 = vmatpush1.msra.mxu0 0.0
    %2736 = vmatprep.subr.mxu0 0.0
    %2737 = vmatpush1.msra.mxu0 0.0
    %2738 = vmatprep.mubr.f32.mxu0 0.0
    %2739 = vmatmul.mubr.f32.gmra.mrb[0].mxu0 %v273
    %v2740 = vpop.f32.mrb[0].mxu0
    %v2741 = vadd.f32 0.0, %v2740
    %v2742 = vpop.f32.mrb[0].mxu0
    %2743 = vmatprep.mubr.f32.mxu0 0.0
    %2744 = vmatmul.mubr.f32.gmra.mrb[0].mxu0 %v276
    %v2745 = vpop.f32.mrb[0].mxu0
    %v2746 = vadd.f32 0.0, %v2745
    %v2747 = vpop.f32.mrb[0].mxu0
    %2748 = vdwg.mxu0
    %v2750 = vlaneseq
    %v2751 = vshrl.u32 %v2750, 7
    %v2752 = vsub.s32 0, %v2751
    %v2753 = vrot.slane %v2146, %v2752
    %v2754 = vlaneseq
    %v2755 = vshrl.u32 %v2754, 7
    %v2756 = vsub.s32 1, %v2755
    %v2757 = vrot.slane %v2146, %v2756
    %2760 = vmatprep.subr.mxu0 %v2013
    %2761 = vmatpush1.msra.mxu0 %v2012
    %2762 = vmatprep.subr.mxu0 %v2015
    %2763 = vmatpush1.msra.mxu0 %v2014
    %2764 = vmatprep.subr.mxu0 %v2017
    %2765 = vmatpush1.msra.mxu0 %v2016
    %2766 = vmatprep.subr.mxu0 %v2019
    %2767 = vmatpush1.msra.mxu0 %v2018
    %2768 = vmatprep.subr.mxu0 %v2021
    %2769 = vmatpush1.msra.mxu0 %v2020
    %2770 = vmatprep.subr.mxu0 %v2023
    %2771 = vmatpush1.msra.mxu0 %v2022
    %2772 = vmatprep.subr.mxu0 %v2025
    %2773 = vmatpush1.msra.mxu0 %v2024
    %2774 = vmatprep.subr.mxu0 %v2027
    %2775 = vmatpush1.msra.mxu0 %v2026
    %2776 = vmatprep.subr.mxu0 %v2029
    %2777 = vmatpush1.msra.mxu0 %v2028
    %2778 = vmatprep.subr.mxu0 %v2031
    %2779 = vmatpush1.msra.mxu0 %v2030
    %2780 = vmatprep.subr.mxu0 %v2033
    %2781 = vmatpush1.msra.mxu0 %v2032
    %2782 = vmatprep.subr.mxu0 %v2035
    %2783 = vmatpush1.msra.mxu0 %v2034
    %2784 = vmatprep.subr.mxu0 %v2037
    %2785 = vmatpush1.msra.mxu0 %v2036
    %2786 = vmatprep.subr.mxu0 %v2039
    %2787 = vmatpush1.msra.mxu0 %v2038
    %2788 = vmatprep.subr.mxu0 %v2041
    %2789 = vmatpush1.msra.mxu0 %v2040
    %2790 = vmatprep.subr.mxu0 %v2043
    %2791 = vmatpush1.msra.mxu0 %v2042
    %2792 = vmatprep.subr.mxu0 0.0
    %2793 = vmatpush1.msra.mxu0 0.0
    %2794 = vmatprep.subr.mxu0 0.0
    %2795 = vmatpush1.msra.mxu0 0.0
    %2796 = vmatprep.subr.mxu0 0.0
    %2797 = vmatpush1.msra.mxu0 0.0
    %2798 = vmatprep.subr.mxu0 0.0
    %2799 = vmatpush1.msra.mxu0 0.0
    %2800 = vmatprep.subr.mxu0 0.0
    %2801 = vmatpush1.msra.mxu0 0.0
    %2802 = vmatprep.subr.mxu0 0.0
    %2803 = vmatpush1.msra.mxu0 0.0
    %2804 = vmatprep.subr.mxu0 0.0
    %2805 = vmatpush1.msra.mxu0 0.0
    %2806 = vmatprep.subr.mxu0 0.0
    %2807 = vmatpush1.msra.mxu0 0.0
    %2808 = vmatprep.subr.mxu0 0.0
    %2809 = vmatpush1.msra.mxu0 0.0
    %2810 = vmatprep.subr.mxu0 0.0
    %2811 = vmatpush1.msra.mxu0 0.0
    %2812 = vmatprep.subr.mxu0 0.0
    %2813 = vmatpush1.msra.mxu0 0.0
    %2814 = vmatprep.subr.mxu0 0.0
    %2815 = vmatpush1.msra.mxu0 0.0
    %2816 = vmatprep.subr.mxu0 0.0
    %2817 = vmatpush1.msra.mxu0 0.0
    %2818 = vmatprep.subr.mxu0 0.0
    %2819 = vmatpush1.msra.mxu0 0.0
    %2820 = vmatprep.subr.mxu0 0.0
    %2821 = vmatpush1.msra.mxu0 0.0
    %2822 = vmatprep.subr.mxu0 0.0
    %2823 = vmatpush1.msra.mxu0 0.0
    %2824 = vmatprep.mubr.f32.mxu0 0.0
    %2825 = vmatmul.mubr.f32.gmra.mrb[0].mxu0 %v2216
    %v2826 = vpop.f32.mrb[0].mxu0
    %v2827 = vadd.f32 %v2753, %v2826
    %v2828 = vpop.f32.mrb[0].mxu0
    %v2829 = vadd.f32 %v2757, %v2828
    %2830 = vmatprep.mubr.f32.mxu0 0.0
    %2831 = vmatmul.mubr.f32.gmra.mrb[0].mxu0 %v2221
    %v2832 = vpop.f32.mrb[0].mxu0
    %v2833 = vadd.f32 %v2753, %v2832
    %v2834 = vpop.f32.mrb[0].mxu0
    %v2835 = vadd.f32 %v2757, %v2834
    %2836 = vmatprep.mubr.f32.mxu0 0.0
    %2837 = vmatmul.mubr.f32.gmra.mrb[0].mxu0 %v2291
    %v2838 = vpop.f32.mrb[0].mxu0
    %v2839 = vadd.f32 %v2753, %v2838
    %v2840 = vpop.f32.mrb[0].mxu0
    %v2841 = vadd.f32 %v2757, %v2840
    %2842 = vmatprep.mubr.f32.mxu0 0.0
    %2843 = vmatmul.mubr.f32.gmra.mrb[0].mxu0 %v2296
    %v2844 = vpop.f32.mrb[0].mxu0
    %v2845 = vadd.f32 %v2753, %v2844
    %v2846 = vpop.f32.mrb[0].mxu0
    %v2847 = vadd.f32 %v2757, %v2846
    %2848 = vmatprep.mubr.f32.mxu0 0.0
    %2849 = vmatmul.mubr.f32.gmra.mrb[0].mxu0 %v2366
    %v2850 = vpop.f32.mrb[0].mxu0
    %v2851 = vadd.f32 %v2753, %v2850
    %v2852 = vpop.f32.mrb[0].mxu0
    %v2853 = vadd.f32 %v2757, %v2852
    %2854 = vmatprep.mubr.f32.mxu0 0.0
    %2855 = vmatmul.mubr.f32.gmra.mrb[0].mxu0 %v2371
    %v2856 = vpop.f32.mrb[0].mxu0
    %v2857 = vadd.f32 %v2753, %v2856
    %v2858 = vpop.f32.mrb[0].mxu0
    %v2859 = vadd.f32 %v2757, %v2858
    %2860 = vmatprep.mubr.f32.mxu0 0.0
    %2861 = vmatmul.mubr.f32.gmra.mrb[0].mxu0 %v2441
    %v2862 = vpop.f32.mrb[0].mxu0
    %v2863 = vadd.f32 %v2753, %v2862
    %v2864 = vpop.f32.mrb[0].mxu0
    %v2865 = vadd.f32 %v2757, %v2864
    %2866 = vmatprep.mubr.f32.mxu0 0.0
    %2867 = vmatmul.mubr.f32.gmra.mrb[0].mxu0 %v2446
    %v2868 = vpop.f32.mrb[0].mxu0
    %v2869 = vadd.f32 %v2753, %v2868
    %v2870 = vpop.f32.mrb[0].mxu0
    %v2871 = vadd.f32 %v2757, %v2870
    %2872 = vmatprep.mubr.f32.mxu0 0.0
    %2873 = vmatmul.mubr.f32.gmra.mrb[0].mxu0 %v2516
    %v2874 = vpop.f32.mrb[0].mxu0
    %v2875 = vadd.f32 %v2753, %v2874
    %v2876 = vpop.f32.mrb[0].mxu0
    %v2877 = vadd.f32 %v2757, %v2876
    %2878 = vmatprep.mubr.f32.mxu0 0.0
    %2879 = vmatmul.mubr.f32.gmra.mrb[0].mxu0 %v2521
    %v2880 = vpop.f32.mrb[0].mxu0
    %v2881 = vadd.f32 %v2753, %v2880
    %v2882 = vpop.f32.mrb[0].mxu0
    %v2883 = vadd.f32 %v2757, %v2882
    %2884 = vmatprep.mubr.f32.mxu0 0.0
    %2885 = vmatmul.mubr.f32.gmra.mrb[0].mxu0 %v2591
    %v2886 = vpop.f32.mrb[0].mxu0
    %v2887 = vadd.f32 %v2753, %v2886
    %v2888 = vpop.f32.mrb[0].mxu0
    %v2889 = vadd.f32 %v2757, %v2888
    %2890 = vmatprep.mubr.f32.mxu0 0.0
    %2891 = vmatmul.mubr.f32.gmra.mrb[0].mxu0 %v2596
    %v2892 = vpop.f32.mrb[0].mxu0
    %v2893 = vadd.f32 %v2753, %v2892
    %v2894 = vpop.f32.mrb[0].mxu0
    %v2895 = vadd.f32 %v2757, %v2894
    %2896 = vmatprep.mubr.f32.mxu0 0.0
    %2897 = vmatmul.mubr.f32.gmra.mrb[0].mxu0 %v2666
    %v2898 = vpop.f32.mrb[0].mxu0
    %v2899 = vadd.f32 %v2753, %v2898
    %v2900 = vpop.f32.mrb[0].mxu0
    %v2901 = vadd.f32 %v2757, %v2900
    %2902 = vmatprep.mubr.f32.mxu0 0.0
    %2903 = vmatmul.mubr.f32.gmra.mrb[0].mxu0 %v2671
    %v2904 = vpop.f32.mrb[0].mxu0
    %v2905 = vadd.f32 %v2753, %v2904
    %v2906 = vpop.f32.mrb[0].mxu0
    %v2907 = vadd.f32 %v2757, %v2906
    %2908 = vmatprep.mubr.f32.mxu0 0.0
    %2909 = vmatmul.mubr.f32.gmra.mrb[0].mxu0 %v2741
    %v2910 = vpop.f32.mrb[0].mxu0
    %v2911 = vadd.f32 %v2753, %v2910
    %v2912 = vpop.f32.mrb[0].mxu0
    %v2913 = vadd.f32 %v2757, %v2912
    %2914 = vmatprep.mubr.f32.mxu0 0.0
    %2915 = vmatmul.mubr.f32.gmra.mrb[0].mxu0 %v2746
    %v2916 = vpop.f32.mrb[0].mxu0
    %v2917 = vadd.f32 %v2753, %v2916
    %v2918 = vpop.f32.mrb[0].mxu0
    %v2919 = vadd.f32 %v2757, %v2918
    %2920 = vdwg.mxu0
    %v2921 = vmax.f32 %v2827, 0.0
    %v2922 = vmax.f32 %v2833, 0.0
    %v2923 = vmax.f32 %v2839, 0.0
    %v2924 = vmax.f32 %v2845, 0.0
    %v2925 = vmax.f32 %v2851, 0.0
    %v2926 = vmax.f32 %v2857, 0.0
    %v2927 = vmax.f32 %v2863, 0.0
    %v2928 = vmax.f32 %v2869, 0.0
    %v2929 = vmax.f32 %v2875, 0.0
    %v2930 = vmax.f32 %v2881, 0.0
    %v2931 = vmax.f32 %v2887, 0.0
    %v2932 = vmax.f32 %v2893, 0.0
    %v2933 = vmax.f32 %v2899, 0.0
    %v2934 = vmax.f32 %v2905, 0.0
    %v2935 = vmax.f32 %v2911, 0.0
    %v2936 = vmax.f32 %v2917, 0.0
    %v2937 = vadd.f32 %v2921, %v2829
    %v2938 = vadd.f32 %v2922, %v2835
    %v2939 = vadd.f32 %v2923, %v2841
    %v2940 = vadd.f32 %v2924, %v2847
    %v2941 = vadd.f32 %v2925, %v2853
    %v2942 = vadd.f32 %v2926, %v2859
    %v2943 = vadd.f32 %v2927, %v2865
    %v2944 = vadd.f32 %v2928, %v2871
    %v2945 = vadd.f32 %v2929, %v2877
    %v2946 = vadd.f32 %v2930, %v2883
    %v2947 = vadd.f32 %v2931, %v2889
    %v2948 = vadd.f32 %v2932, %v2895
    %v2949 = vadd.f32 %v2933, %v2901
    %v2950 = vadd.f32 %v2934, %v2907
    %v2951 = vadd.f32 %v2935, %v2913
    %v2952 = vadd.f32 %v2936, %v2919
    %v2954 = vlaneseq
    %v2955 = vshrl.u32 %v2954, 7
    %v2956 = vsub.s32 0, %v2955
    %v2957 = vrot.slane %v2142, %v2956
    %v2958 = vlaneseq
    %v2959 = vshrl.u32 %v2958, 7
    %v2960 = vsub.s32 1, %v2959
    %v2961 = vrot.slane %v2142, %v2960
    %v2962 = vlaneseq
    %v2963 = vshrl.u32 %v2962, 7
    %v2964 = vsub.s32 2, %v2963
    %v2965 = vrot.slane %v2142, %v2964
    %2969 = vmatprep.subr.mxu0 %v2045
    %2970 = vmatpush1.msra.mxu0 %v2044
    %2971 = vmatprep.subr.mxu0 %v2048
    %2972 = vmatpush1.msra.mxu0 %v2047
    %2973 = vmatprep.subr.mxu0 %v2051
    %2974 = vmatpush1.msra.mxu0 %v2050
    %2975 = vmatprep.subr.mxu0 %v2054
    %2976 = vmatpush1.msra.mxu0 %v2053
    %2977 = vmatprep.subr.mxu0 %v2057
    %2978 = vmatpush1.msra.mxu0 %v2056
    %2979 = vmatprep.subr.mxu0 %v2060
    %2980 = vmatpush1.msra.mxu0 %v2059
    %2981 = vmatprep.subr.mxu0 %v2063
    %2982 = vmatpush1.msra.mxu0 %v2062
    %2983 = vmatprep.subr.mxu0 %v2066
    %2984 = vmatpush1.msra.mxu0 %v2065
    %2985 = vmatprep.subr.mxu0 %v2069
    %2986 = vmatpush1.msra.mxu0 %v2068
    %2987 = vmatprep.subr.mxu0 %v2072
    %2988 = vmatpush1.msra.mxu0 %v2071
    %2989 = vmatprep.subr.mxu0 %v2075
    %2990 = vmatpush1.msra.mxu0 %v2074
    %2991 = vmatprep.subr.mxu0 %v2078
    %2992 = vmatpush1.msra.mxu0 %v2077
    %2993 = vmatprep.subr.mxu0 %v2081
    %2994 = vmatpush1.msra.mxu0 %v2080
    %2995 = vmatprep.subr.mxu0 %v2084
    %2996 = vmatpush1.msra.mxu0 %v2083
    %2997 = vmatprep.subr.mxu0 %v2087
    %2998 = vmatpush1.msra.mxu0 %v2086
    %2999 = vmatprep.subr.mxu0 %v2090
    %3000 = vmatpush1.msra.mxu0 %v2089
    %3001 = vmatprep.subr.mxu0 0.0
    %3002 = vmatpush1.msra.mxu0 0.0
    %3003 = vmatprep.subr.mxu0 0.0
    %3004 = vmatpush1.msra.mxu0 0.0
    %3005 = vmatprep.subr.mxu0 0.0
    %3006 = vmatpush1.msra.mxu0 0.0
    %3007 = vmatprep.subr.mxu0 0.0
    %3008 = vmatpush1.msra.mxu0 0.0
    %3009 = vmatprep.subr.mxu0 0.0
    %3010 = vmatpush1.msra.mxu0 0.0
    %3011 = vmatprep.subr.mxu0 0.0
    %3012 = vmatpush1.msra.mxu0 0.0
    %3013 = vmatprep.subr.mxu0 0.0
    %3014 = vmatpush1.msra.mxu0 0.0
    %3015 = vmatprep.subr.mxu0 0.0
    %3016 = vmatpush1.msra.mxu0 0.0
    %3017 = vmatprep.subr.mxu0 0.0
    %3018 = vmatpush1.msra.mxu0 0.0
    %3019 = vmatprep.subr.mxu0 0.0
    %3020 = vmatpush1.msra.mxu0 0.0
    %3021 = vmatprep.subr.mxu0 0.0
    %3022 = vmatpush1.msra.mxu0 0.0
    %3023 = vmatprep.subr.mxu0 0.0
    %3024 = vmatpush1.msra.mxu0 0.0
    %3025 = vmatprep.subr.mxu0 0.0
    %3026 = vmatpush1.msra.mxu0 0.0
    %3027 = vmatprep.subr.mxu0 0.0
    %3028 = vmatpush1.msra.mxu0 0.0
    %3029 = vmatprep.subr.mxu0 0.0
    %3030 = vmatpush1.msra.mxu0 0.0
    %3031 = vmatprep.subr.mxu0 0.0
    %3032 = vmatpush1.msra.mxu0 0.0
    %3033 = vmatprep.mubr.f32.mxu0 0.0
    %3034 = vmatmul.mubr.f32.gmra.mrb[0].mxu0 %v2937
    %v3035 = vpop.f32.mrb[0].mxu0
    %v3036 = vadd.f32 %v2957, %v3035
    %v3037 = vpop.f32.mrb[0].mxu0
    %v3038 = vadd.f32 %v2961, %v3037
    %3039 = vmatprep.mubr.f32.mxu0 0.0
    %3040 = vmatmul.mubr.f32.gmra.mrb[0].mxu0 %v2938
    %v3041 = vpop.f32.mrb[0].mxu0
    %v3042 = vadd.f32 %v2957, %v3041
    %v3043 = vpop.f32.mrb[0].mxu0
    %v3044 = vadd.f32 %v2961, %v3043
    %3045 = vmatprep.mubr.f32.mxu0 0.0
    %3046 = vmatmul.mubr.f32.gmra.mrb[0].mxu0 %v2939
    %v3047 = vpop.f32.mrb[0].mxu0
    %v3048 = vadd.f32 %v2957, %v3047
    %v3049 = vpop.f32.mrb[0].mxu0
    %v3050 = vadd.f32 %v2961, %v3049
    %3051 = vmatprep.mubr.f32.mxu0 0.0
    %3052 = vmatmul.mubr.f32.gmra.mrb[0].mxu0 %v2940
    %v3053 = vpop.f32.mrb[0].mxu0
    %v3054 = vadd.f32 %v2957, %v3053
    %v3055 = vpop.f32.mrb[0].mxu0
    %v3056 = vadd.f32 %v2961, %v3055
    %3057 = vmatprep.mubr.f32.mxu0 0.0
    %3058 = vmatmul.mubr.f32.gmra.mrb[0].mxu0 %v2941
    %v3059 = vpop.f32.mrb[0].mxu0
    %v3060 = vadd.f32 %v2957, %v3059
    %v3061 = vpop.f32.mrb[0].mxu0
    %v3062 = vadd.f32 %v2961, %v3061
    %3063 = vmatprep.mubr.f32.mxu0 0.0
    %3064 = vmatmul.mubr.f32.gmra.mrb[0].mxu0 %v2942
    %v3065 = vpop.f32.mrb[0].mxu0
    %v3066 = vadd.f32 %v2957, %v3065
    %v3067 = vpop.f32.mrb[0].mxu0
    %v3068 = vadd.f32 %v2961, %v3067
    %3069 = vmatprep.mubr.f32.mxu0 0.0
    %3070 = vmatmul.mubr.f32.gmra.mrb[0].mxu0 %v2943
    %v3071 = vpop.f32.mrb[0].mxu0
    %v3072 = vadd.f32 %v2957, %v3071
    %v3073 = vpop.f32.mrb[0].mxu0
    %v3074 = vadd.f32 %v2961, %v3073
    %3075 = vmatprep.mubr.f32.mxu0 0.0
    %3076 = vmatmul.mubr.f32.gmra.mrb[0].mxu0 %v2944
    %v3077 = vpop.f32.mrb[0].mxu0
    %v3078 = vadd.f32 %v2957, %v3077
    %v3079 = vpop.f32.mrb[0].mxu0
    %v3080 = vadd.f32 %v2961, %v3079
    %3081 = vmatprep.mubr.f32.mxu0 0.0
    %3082 = vmatmul.mubr.f32.gmra.mrb[0].mxu0 %v2945
    %v3083 = vpop.f32.mrb[0].mxu0
    %v3084 = vadd.f32 %v2957, %v3083
    %v3085 = vpop.f32.mrb[0].mxu0
    %v3086 = vadd.f32 %v2961, %v3085
    %3087 = vmatprep.mubr.f32.mxu0 0.0
    %3088 = vmatmul.mubr.f32.gmra.mrb[0].mxu0 %v2946
    %v3089 = vpop.f32.mrb[0].mxu0
    %v3090 = vadd.f32 %v2957, %v3089
    %v3091 = vpop.f32.mrb[0].mxu0
    %v3092 = vadd.f32 %v2961, %v3091
    %3093 = vmatprep.mubr.f32.mxu0 0.0
    %3094 = vmatmul.mubr.f32.gmra.mrb[0].mxu0 %v2947
    %v3095 = vpop.f32.mrb[0].mxu0
    %v3096 = vadd.f32 %v2957, %v3095
    %v3097 = vpop.f32.mrb[0].mxu0
    %v3098 = vadd.f32 %v2961, %v3097
    %3099 = vmatprep.mubr.f32.mxu0 0.0
    %3100 = vmatmul.mubr.f32.gmra.mrb[0].mxu0 %v2948
    %v3101 = vpop.f32.mrb[0].mxu0
    %v3102 = vadd.f32 %v2957, %v3101
    %v3103 = vpop.f32.mrb[0].mxu0
    %v3104 = vadd.f32 %v2961, %v3103
    %3105 = vmatprep.mubr.f32.mxu0 0.0
    %3106 = vmatmul.mubr.f32.gmra.mrb[0].mxu0 %v2949
    %v3107 = vpop.f32.mrb[0].mxu0
    %v3108 = vadd.f32 %v2957, %v3107
    %v3109 = vpop.f32.mrb[0].mxu0
    %v3110 = vadd.f32 %v2961, %v3109
    %3111 = vmatprep.mubr.f32.mxu0 0.0
    %3112 = vmatmul.mubr.f32.gmra.mrb[0].mxu0 %v2950
    %v3113 = vpop.f32.mrb[0].mxu0
    %v3114 = vadd.f32 %v2957, %v3113
    %v3115 = vpop.f32.mrb[0].mxu0
    %v3116 = vadd.f32 %v2961, %v3115
    %3117 = vmatprep.mubr.f32.mxu0 0.0
    %3118 = vmatmul.mubr.f32.gmra.mrb[0].mxu0 %v2951
    %v3119 = vpop.f32.mrb[0].mxu0
    %v3120 = vadd.f32 %v2957, %v3119
    %v3121 = vpop.f32.mrb[0].mxu0
    %v3122 = vadd.f32 %v2961, %v3121
    %3123 = vmatprep.mubr.f32.mxu0 0.0
    %3124 = vmatmul.mubr.f32.gmra.mrb[0].mxu0 %v2952
    %v3125 = vpop.f32.mrb[0].mxu0
    %v3126 = vadd.f32 %v2957, %v3125
    %v3127 = vpop.f32.mrb[0].mxu0
    %v3128 = vadd.f32 %v2961, %v3127
    %3129 = vdwg.mxu0
    %3130 = vmatprep.subr.mxu0 0.0
    %3131 = vmatpush1.msra.mxu0 %v2046
    %3132 = vmatprep.subr.mxu0 0.0
    %3133 = vmatpush1.msra.mxu0 %v2049
    %3134 = vmatprep.subr.mxu0 0.0
    %3135 = vmatpush1.msra.mxu0 %v2052
    %3136 = vmatprep.subr.mxu0 0.0
    %3137 = vmatpush1.msra.mxu0 %v2055
    %3138 = vmatprep.subr.mxu0 0.0
    %3139 = vmatpush1.msra.mxu0 %v2058
    %3140 = vmatprep.subr.mxu0 0.0
    %3141 = vmatpush1.msra.mxu0 %v2061
    %3142 = vmatprep.subr.mxu0 0.0
    %3143 = vmatpush1.msra.mxu0 %v2064
    %3144 = vmatprep.subr.mxu0 0.0
    %3145 = vmatpush1.msra.mxu0 %v2067
    %3146 = vmatprep.subr.mxu0 0.0
    %3147 = vmatpush1.msra.mxu0 %v2070
    %3148 = vmatprep.subr.mxu0 0.0
    %3149 = vmatpush1.msra.mxu0 %v2073
    %3150 = vmatprep.subr.mxu0 0.0
    %3151 = vmatpush1.msra.mxu0 %v2076
    %3152 = vmatprep.subr.mxu0 0.0
    %3153 = vmatpush1.msra.mxu0 %v2079
    %3154 = vmatprep.subr.mxu0 0.0
    %3155 = vmatpush1.msra.mxu0 %v2082
    %3156 = vmatprep.subr.mxu0 0.0
    %3157 = vmatpush1.msra.mxu0 %v2085
    %3158 = vmatprep.subr.mxu0 0.0
    %3159 = vmatpush1.msra.mxu0 %v2088
    %3160 = vmatprep.subr.mxu0 0.0
    %3161 = vmatpush1.msra.mxu0 %v2091
    %3162 = vmatprep.subr.mxu0 0.0
    %3163 = vmatpush1.msra.mxu0 0.0
    %3164 = vmatprep.subr.mxu0 0.0
    %3165 = vmatpush1.msra.mxu0 0.0
    %3166 = vmatprep.subr.mxu0 0.0
    %3167 = vmatpush1.msra.mxu0 0.0
    %3168 = vmatprep.subr.mxu0 0.0
    %3169 = vmatpush1.msra.mxu0 0.0
    %3170 = vmatprep.subr.mxu0 0.0
    %3171 = vmatpush1.msra.mxu0 0.0
    %3172 = vmatprep.subr.mxu0 0.0
    %3173 = vmatpush1.msra.mxu0 0.0
    %3174 = vmatprep.subr.mxu0 0.0
    %3175 = vmatpush1.msra.mxu0 0.0
    %3176 = vmatprep.subr.mxu0 0.0
    %3177 = vmatpush1.msra.mxu0 0.0
    %3178 = vmatprep.subr.mxu0 0.0
    %3179 = vmatpush1.msra.mxu0 0.0
    %3180 = vmatprep.subr.mxu0 0.0
    %3181 = vmatpush1.msra.mxu0 0.0
    %3182 = vmatprep.subr.mxu0 0.0
    %3183 = vmatpush1.msra.mxu0 0.0
    %3184 = vmatprep.subr.mxu0 0.0
    %3185 = vmatpush1.msra.mxu0 0.0
    %3186 = vmatprep.subr.mxu0 0.0
    %3187 = vmatpush1.msra.mxu0 0.0
    %3188 = vmatprep.subr.mxu0 0.0
    %3189 = vmatpush1.msra.mxu0 0.0
    %3190 = vmatprep.subr.mxu0 0.0
    %3191 = vmatpush1.msra.mxu0 0.0
    %3192 = vmatprep.subr.mxu0 0.0
    %3193 = vmatpush1.msra.mxu0 0.0
    %3194 = vmatprep.mubr.f32.mxu0 0.0
    %3195 = vmatmul.mubr.f32.gmra.mrb[0].mxu0 %v2937
    %v3196 = vpop.f32.mrb[0].mxu0
    %v3197 = vadd.f32 %v2965, %v3196
    %v3198 = vpop.f32.mrb[0].mxu0
    %3199 = vmatprep.mubr.f32.mxu0 0.0
    %3200 = vmatmul.mubr.f32.gmra.mrb[0].mxu0 %v2938
    %v3201 = vpop.f32.mrb[0].mxu0
    %v3202 = vadd.f32 %v2965, %v3201
    %v3203 = vpop.f32.mrb[0].mxu0
    %3204 = vmatprep.mubr.f32.mxu0 0.0
    %3205 = vmatmul.mubr.f32.gmra.mrb[0].mxu0 %v2939
    %v3206 = vpop.f32.mrb[0].mxu0
    %v3207 = vadd.f32 %v2965, %v3206
    %v3208 = vpop.f32.mrb[0].mxu0
    %3209 = vmatprep.mubr.f32.mxu0 0.0
    %3210 = vmatmul.mubr.f32.gmra.mrb[0].mxu0 %v2940
    %v3211 = vpop.f32.mrb[0].mxu0
    %v3212 = vadd.f32 %v2965, %v3211
    %v3213 = vpop.f32.mrb[0].mxu0
    %3214 = vmatprep.mubr.f32.mxu0 0.0
    %3215 = vmatmul.mubr.f32.gmra.mrb[0].mxu0 %v2941
    %v3216 = vpop.f32.mrb[0].mxu0
    %v3217 = vadd.f32 %v2965, %v3216
    %v3218 = vpop.f32.mrb[0].mxu0
    %3219 = vmatprep.mubr.f32.mxu0 0.0
    %3220 = vmatmul.mubr.f32.gmra.mrb[0].mxu0 %v2942
    %v3221 = vpop.f32.mrb[0].mxu0
    %v3222 = vadd.f32 %v2965, %v3221
    %v3223 = vpop.f32.mrb[0].mxu0
    %3224 = vmatprep.mubr.f32.mxu0 0.0
    %3225 = vmatmul.mubr.f32.gmra.mrb[0].mxu0 %v2943
    %v3226 = vpop.f32.mrb[0].mxu0
    %v3227 = vadd.f32 %v2965, %v3226
    %v3228 = vpop.f32.mrb[0].mxu0
    %3229 = vmatprep.mubr.f32.mxu0 0.0
    %3230 = vmatmul.mubr.f32.gmra.mrb[0].mxu0 %v2944
    %v3231 = vpop.f32.mrb[0].mxu0
    %v3232 = vadd.f32 %v2965, %v3231
    %v3233 = vpop.f32.mrb[0].mxu0
    %3234 = vmatprep.mubr.f32.mxu0 0.0
    %3235 = vmatmul.mubr.f32.gmra.mrb[0].mxu0 %v2945
    %v3236 = vpop.f32.mrb[0].mxu0
    %v3237 = vadd.f32 %v2965, %v3236
    %v3238 = vpop.f32.mrb[0].mxu0
    %3239 = vmatprep.mubr.f32.mxu0 0.0
    %3240 = vmatmul.mubr.f32.gmra.mrb[0].mxu0 %v2946
    %v3241 = vpop.f32.mrb[0].mxu0
    %v3242 = vadd.f32 %v2965, %v3241
    %v3243 = vpop.f32.mrb[0].mxu0
    %3244 = vmatprep.mubr.f32.mxu0 0.0
    %3245 = vmatmul.mubr.f32.gmra.mrb[0].mxu0 %v2947
    %v3246 = vpop.f32.mrb[0].mxu0
    %v3247 = vadd.f32 %v2965, %v3246
    %v3248 = vpop.f32.mrb[0].mxu0
    %3249 = vmatprep.mubr.f32.mxu0 0.0
    %3250 = vmatmul.mubr.f32.gmra.mrb[0].mxu0 %v2948
    %v3251 = vpop.f32.mrb[0].mxu0
    %v3252 = vadd.f32 %v2965, %v3251
    %v3253 = vpop.f32.mrb[0].mxu0
    %3254 = vmatprep.mubr.f32.mxu0 0.0
    %3255 = vmatmul.mubr.f32.gmra.mrb[0].mxu0 %v2949
    %v3256 = vpop.f32.mrb[0].mxu0
    %v3257 = vadd.f32 %v2965, %v3256
    %v3258 = vpop.f32.mrb[0].mxu0
    %3259 = vmatprep.mubr.f32.mxu0 0.0
    %3260 = vmatmul.mubr.f32.gmra.mrb[0].mxu0 %v2950
    %v3261 = vpop.f32.mrb[0].mxu0
    %v3262 = vadd.f32 %v2965, %v3261
    %v3263 = vpop.f32.mrb[0].mxu0
    %3264 = vmatprep.mubr.f32.mxu0 0.0
    %3265 = vmatmul.mubr.f32.gmra.mrb[0].mxu0 %v2951
    %v3266 = vpop.f32.mrb[0].mxu0
    %v3267 = vadd.f32 %v2965, %v3266
    %v3268 = vpop.f32.mrb[0].mxu0
    %3269 = vmatprep.mubr.f32.mxu0 0.0
    %3270 = vmatmul.mubr.f32.gmra.mrb[0].mxu0 %v2952
    %v3271 = vpop.f32.mrb[0].mxu0
    %v3272 = vadd.f32 %v2965, %v3271
    %v3273 = vpop.f32.mrb[0].mxu0
    %3274 = vdwg.mxu0
    %v3276 = vlaneseq
    %v3277 = vshrl.u32 %v3276, 7
    %v3278 = vsub.s32 0, %v3277
    %v3279 = vrot.slane %v2144, %v3278
    %v3280 = vlaneseq
    %v3281 = vshrl.u32 %v3280, 7
    %v3282 = vsub.s32 1, %v3281
    %v3283 = vrot.slane %v2144, %v3282
    %v3284 = vlaneseq
    %v3285 = vshrl.u32 %v3284, 7
    %v3286 = vsub.s32 2, %v3285
    %v3287 = vrot.slane %v2144, %v3286
    %3291 = vmatprep.subr.mxu0 %v2093
    %3292 = vmatpush1.msra.mxu0 %v2092
    %3293 = vmatprep.subr.mxu0 %v2096
    %3294 = vmatpush1.msra.mxu0 %v2095
    %3295 = vmatprep.subr.mxu0 %v2099
    %3296 = vmatpush1.msra.mxu0 %v2098
    %3297 = vmatprep.subr.mxu0 %v2102
    %3298 = vmatpush1.msra.mxu0 %v2101
    %3299 = vmatprep.subr.mxu0 %v2105
    %3300 = vmatpush1.msra.mxu0 %v2104
    %3301 = vmatprep.subr.mxu0 %v2108
    %3302 = vmatpush1.msra.mxu0 %v2107
    %3303 = vmatprep.subr.mxu0 %v2111
    %3304 = vmatpush1.msra.mxu0 %v2110
    %3305 = vmatprep.subr.mxu0 %v2114
    %3306 = vmatpush1.msra.mxu0 %v2113
    %3307 = vmatprep.subr.mxu0 %v2117
    %3308 = vmatpush1.msra.mxu0 %v2116
    %3309 = vmatprep.subr.mxu0 %v2120
    %3310 = vmatpush1.msra.mxu0 %v2119
    %3311 = vmatprep.subr.mxu0 %v2123
    %3312 = vmatpush1.msra.mxu0 %v2122
    %3313 = vmatprep.subr.mxu0 %v2126
    %3314 = vmatpush1.msra.mxu0 %v2125
    %3315 = vmatprep.subr.mxu0 %v2129
    %3316 = vmatpush1.msra.mxu0 %v2128
    %3317 = vmatprep.subr.mxu0 %v2132
    %3318 = vmatpush1.msra.mxu0 %v2131
    %3319 = vmatprep.subr.mxu0 %v2135
    %3320 = vmatpush1.msra.mxu0 %v2134
    %3321 = vmatprep.subr.mxu0 %v2138
    %3322 = vmatpush1.msra.mxu0 %v2137
    %3323 = vmatprep.subr.mxu0 0.0
    %3324 = vmatpush1.msra.mxu0 0.0
    %3325 = vmatprep.subr.mxu0 0.0
    %3326 = vmatpush1.msra.mxu0 0.0
    %3327 = vmatprep.subr.mxu0 0.0
    %3328 = vmatpush1.msra.mxu0 0.0
    %3329 = vmatprep.subr.mxu0 0.0
    %3330 = vmatpush1.msra.mxu0 0.0
    %3331 = vmatprep.subr.mxu0 0.0
    %3332 = vmatpush1.msra.mxu0 0.0
    %3333 = vmatprep.subr.mxu0 0.0
    %3334 = vmatpush1.msra.mxu0 0.0
    %3335 = vmatprep.subr.mxu0 0.0
    %3336 = vmatpush1.msra.mxu0 0.0
    %3337 = vmatprep.subr.mxu0 0.0
    %3338 = vmatpush1.msra.mxu0 0.0
    %3339 = vmatprep.subr.mxu0 0.0
    %3340 = vmatpush1.msra.mxu0 0.0
    %3341 = vmatprep.subr.mxu0 0.0
    %3342 = vmatpush1.msra.mxu0 0.0
    %3343 = vmatprep.subr.mxu0 0.0
    %3344 = vmatpush1.msra.mxu0 0.0
    %3345 = vmatprep.subr.mxu0 0.0
    %3346 = vmatpush1.msra.mxu0 0.0
    %3347 = vmatprep.subr.mxu0 0.0
    %3348 = vmatpush1.msra.mxu0 0.0
    %3349 = vmatprep.subr.mxu0 0.0
    %3350 = vmatpush1.msra.mxu0 0.0
    %3351 = vmatprep.subr.mxu0 0.0
    %3352 = vmatpush1.msra.mxu0 0.0
    %3353 = vmatprep.subr.mxu0 0.0
    %3354 = vmatpush1.msra.mxu0 0.0
    %3355 = vmatprep.mubr.f32.mxu0 0.0
    %3356 = vmatmul.mubr.f32.gmra.mrb[0].mxu0 %v2140
    %v3357 = vpop.f32.mrb[0].mxu0
    %v3358 = vadd.f32 %v3279, %v3357
    %v3359 = vpop.f32.mrb[0].mxu0
    %v3360 = vadd.f32 %v3283, %v3359
    %3361 = vmatprep.mubr.f32.mxu0 0.0
    %3362 = vmatmul.mubr.f32.gmra.mrb[0].mxu0 %v2141
    %v3363 = vpop.f32.mrb[0].mxu0
    %v3364 = vadd.f32 %v3279, %v3363
    %v3365 = vpop.f32.mrb[0].mxu0
    %v3366 = vadd.f32 %v3283, %v3365
    %3367 = vdwg.mxu0
    %3368 = vmatprep.subr.mxu0 0.0
    %3369 = vmatpush1.msra.mxu0 %v2094
    %3370 = vmatprep.subr.mxu0 0.0
    %3371 = vmatpush1.msra.mxu0 %v2097
    %3372 = vmatprep.subr.mxu0 0.0
    %3373 = vmatpush1.msra.mxu0 %v2100
    %3374 = vmatprep.subr.mxu0 0.0
    %3375 = vmatpush1.msra.mxu0 %v2103
    %3376 = vmatprep.subr.mxu0 0.0
    %3377 = vmatpush1.msra.mxu0 %v2106
    %3378 = vmatprep.subr.mxu0 0.0
    %3379 = vmatpush1.msra.mxu0 %v2109
    %3380 = vmatprep.subr.mxu0 0.0
    %3381 = vmatpush1.msra.mxu0 %v2112
    %3382 = vmatprep.subr.mxu0 0.0
    %3383 = vmatpush1.msra.mxu0 %v2115
    %3384 = vmatprep.subr.mxu0 0.0
    %3385 = vmatpush1.msra.mxu0 %v2118
    %3386 = vmatprep.subr.mxu0 0.0
    %3387 = vmatpush1.msra.mxu0 %v2121
    %3388 = vmatprep.subr.mxu0 0.0
    %3389 = vmatpush1.msra.mxu0 %v2124
    %3390 = vmatprep.subr.mxu0 0.0
    %3391 = vmatpush1.msra.mxu0 %v2127
    %3392 = vmatprep.subr.mxu0 0.0
    %3393 = vmatpush1.msra.mxu0 %v2130
    %3394 = vmatprep.subr.mxu0 0.0
    %3395 = vmatpush1.msra.mxu0 %v2133
    %3396 = vmatprep.subr.mxu0 0.0
    %3397 = vmatpush1.msra.mxu0 %v2136
    %3398 = vmatprep.subr.mxu0 0.0
    %3399 = vmatpush1.msra.mxu0 %v2139
    %3400 = vmatprep.subr.mxu0 0.0
    %3401 = vmatpush1.msra.mxu0 0.0
    %3402 = vmatprep.subr.mxu0 0.0
    %3403 = vmatpush1.msra.mxu0 0.0
    %3404 = vmatprep.subr.mxu0 0.0
    %3405 = vmatpush1.msra.mxu0 0.0
    %3406 = vmatprep.subr.mxu0 0.0
    %3407 = vmatpush1.msra.mxu0 0.0
    %3408 = vmatprep.subr.mxu0 0.0
    %3409 = vmatpush1.msra.mxu0 0.0
    %3410 = vmatprep.subr.mxu0 0.0
    %3411 = vmatpush1.msra.mxu0 0.0
    %3412 = vmatprep.subr.mxu0 0.0
    %3413 = vmatpush1.msra.mxu0 0.0
    %3414 = vmatprep.subr.mxu0 0.0
    %3415 = vmatpush1.msra.mxu0 0.0
    %3416 = vmatprep.subr.mxu0 0.0
    %3417 = vmatpush1.msra.mxu0 0.0
    %3418 = vmatprep.subr.mxu0 0.0
    %3419 = vmatpush1.msra.mxu0 0.0
    %3420 = vmatprep.subr.mxu0 0.0
    %3421 = vmatpush1.msra.mxu0 0.0
    %3422 = vmatprep.subr.mxu0 0.0
    %3423 = vmatpush1.msra.mxu0 0.0
    %3424 = vmatprep.subr.mxu0 0.0
    %3425 = vmatpush1.msra.mxu0 0.0
    %3426 = vmatprep.subr.mxu0 0.0
    %3427 = vmatpush1.msra.mxu0 0.0
    %3428 = vmatprep.subr.mxu0 0.0
    %3429 = vmatpush1.msra.mxu0 0.0
    %3430 = vmatprep.subr.mxu0 0.0
    %3431 = vmatpush1.msra.mxu0 0.0
    %3432 = vmatprep.mubr.f32.mxu0 0.0
    %3433 = vmatmul.mubr.f32.gmra.mrb[0].mxu0 %v2140
    %v3434 = vpop.f32.mrb[0].mxu0
    %v3435 = vadd.f32 %v3287, %v3434
    %v3436 = vpop.f32.mrb[0].mxu0
    %3437 = vmatprep.mubr.f32.mxu0 0.0
    %3438 = vmatmul.mubr.f32.gmra.mrb[0].mxu0 %v2141
    %v3439 = vpop.f32.mrb[0].mxu0
    %v3440 = vadd.f32 %v3287, %v3439
    %v3441 = vpop.f32.mrb[0].mxu0
    %3442 = vdwg.mxu0
    %v3443 = vadd.f32 %v3036, %v3358
    %v3444 = vadd.f32 %v3042, %v3364
    %v3445 = vadd.f32 %v3048, %v3358
    %v3446 = vadd.f32 %v3054, %v3364
    %v3447 = vadd.f32 %v3060, %v3358
    %v3448 = vadd.f32 %v3066, %v3364
    %v3449 = vadd.f32 %v3072, %v3358
    %v3450 = vadd.f32 %v3078, %v3364
    %v3451 = vadd.f32 %v3084, %v3358
    %v3452 = vadd.f32 %v3090, %v3364
    %v3453 = vadd.f32 %v3096, %v3358
    %v3454 = vadd.f32 %v3102, %v3364
    %v3455 = vadd.f32 %v3108, %v3358
    %v3456 = vadd.f32 %v3114, %v3364
    %v3457 = vadd.f32 %v3120, %v3358
    %v3458 = vadd.f32 %v3126, %v3364
    %v3459 = vxor.u32 %v3443, 2147483648
    %v3460 = vxor.u32 %v3444, 2147483648
    %v3461 = vxor.u32 %v3445, 2147483648
    %v3462 = vxor.u32 %v3446, 2147483648
    %v3463 = vxor.u32 %v3447, 2147483648
    %v3464 = vxor.u32 %v3448, 2147483648
    %v3465 = vxor.u32 %v3449, 2147483648
    %v3466 = vxor.u32 %v3450, 2147483648
    %v3467 = vxor.u32 %v3451, 2147483648
    %v3468 = vxor.u32 %v3452, 2147483648
    %v3469 = vxor.u32 %v3453, 2147483648
    %v3470 = vxor.u32 %v3454, 2147483648
    %v3471 = vxor.u32 %v3455, 2147483648
    %v3472 = vxor.u32 %v3456, 2147483648
    %v3473 = vxor.u32 %v3457, 2147483648
    %v3474 = vxor.u32 %v3458, 2147483648
    %v3475 = vmul.f32 %v3459, 1.442695
    %v3476 = vpow.pop %v3475
    %v3477 = vmul.f32 %v3460, 1.442695
    %v3478 = vpow.pop %v3477
    %v3479 = vmul.f32 %v3461, 1.442695
    %v3480 = vpow.pop %v3479
    %v3481 = vmul.f32 %v3462, 1.442695
    %v3482 = vpow.pop %v3481
    %v3483 = vmul.f32 %v3463, 1.442695
    %v3484 = vpow.pop %v3483
    %v3485 = vmul.f32 %v3464, 1.442695
    %v3486 = vpow.pop %v3485
    %v3487 = vmul.f32 %v3465, 1.442695
    %v3488 = vpow.pop %v3487
    %v3489 = vmul.f32 %v3466, 1.442695
    %v3490 = vpow.pop %v3489
    %v3491 = vmul.f32 %v3467, 1.442695
    %v3492 = vpow.pop %v3491
    %v3493 = vmul.f32 %v3468, 1.442695
    %v3494 = vpow.pop %v3493
    %v3495 = vmul.f32 %v3469, 1.442695
    %v3496 = vpow.pop %v3495
    %v3497 = vmul.f32 %v3470, 1.442695
    %v3498 = vpow.pop %v3497
    %v3499 = vmul.f32 %v3471, 1.442695
    %v3500 = vpow.pop %v3499
    %v3501 = vmul.f32 %v3472, 1.442695
    %v3502 = vpow.pop %v3501
    %v3503 = vmul.f32 %v3473, 1.442695
    %v3504 = vpow.pop %v3503
    %v3505 = vmul.f32 %v3474, 1.442695
    %v3506 = vpow.pop %v3505
    %v3507 = vadd.f32 %v3476, 1.0
    %v3508 = vadd.f32 %v3478, 1.0
    %v3509 = vadd.f32 %v3480, 1.0
    %v3510 = vadd.f32 %v3482, 1.0
    %v3511 = vadd.f32 %v3484, 1.0
    %v3512 = vadd.f32 %v3486, 1.0
    %v3513 = vadd.f32 %v3488, 1.0
    %v3514 = vadd.f32 %v3490, 1.0
    %v3515 = vadd.f32 %v3492, 1.0
    %v3516 = vadd.f32 %v3494, 1.0
    %v3517 = vadd.f32 %v3496, 1.0
    %v3518 = vadd.f32 %v3498, 1.0
    %v3519 = vadd.f32 %v3500, 1.0
    %v3520 = vadd.f32 %v3502, 1.0
    %v3521 = vadd.f32 %v3504, 1.0
    %v3522 = vadd.f32 %v3506, 1.0
    %v3523 = vrcp.pop %v3507
    %v3524 = vmul.f32 1.0, %v3523
    %v3525 = vrcp.pop %v3508
    %v3526 = vmul.f32 1.0, %v3525
    %v3527 = vrcp.pop %v3509
    %v3528 = vmul.f32 1.0, %v3527
    %v3529 = vrcp.pop %v3510
    %v3530 = vmul.f32 1.0, %v3529
    %v3531 = vrcp.pop %v3511
    %v3532 = vmul.f32 1.0, %v3531
    %v3533 = vrcp.pop %v3512
    %v3534 = vmul.f32 1.0, %v3533
    %v3535 = vrcp.pop %v3513
    %v3536 = vmul.f32 1.0, %v3535
    %v3537 = vrcp.pop %v3514
    %v3538 = vmul.f32 1.0, %v3537
    %v3539 = vrcp.pop %v3515
    %v3540 = vmul.f32 1.0, %v3539
    %v3541 = vrcp.pop %v3516
    %v3542 = vmul.f32 1.0, %v3541
    %v3543 = vrcp.pop %v3517
    %v3544 = vmul.f32 1.0, %v3543
    %v3545 = vrcp.pop %v3518
    %v3546 = vmul.f32 1.0, %v3545
    %v3547 = vrcp.pop %v3519
    %v3548 = vmul.f32 1.0, %v3547
    %v3549 = vrcp.pop %v3520
    %v3550 = vmul.f32 1.0, %v3549
    %v3551 = vrcp.pop %v3521
    %v3552 = vmul.f32 1.0, %v3551
    %v3553 = vrcp.pop %v3522
    %v3554 = vmul.f32 1.0, %v3553
    %v3555 = vadd.f32 %v3038, %v3360
    %v3556 = vadd.f32 %v3044, %v3366
    %v3557 = vadd.f32 %v3050, %v3360
    %v3558 = vadd.f32 %v3056, %v3366
    %v3559 = vadd.f32 %v3062, %v3360
    %v3560 = vadd.f32 %v3068, %v3366
    %v3561 = vadd.f32 %v3074, %v3360
    %v3562 = vadd.f32 %v3080, %v3366
    %v3563 = vadd.f32 %v3086, %v3360
    %v3564 = vadd.f32 %v3092, %v3366
    %v3565 = vadd.f32 %v3098, %v3360
    %v3566 = vadd.f32 %v3104, %v3366
    %v3567 = vadd.f32 %v3110, %v3360
    %v3568 = vadd.f32 %v3116, %v3366
    %v3569 = vadd.f32 %v3122, %v3360
    %v3570 = vadd.f32 %v3128, %v3366
    %v3571 = vxor.u32 %v3555, 2147483648
    %v3572 = vxor.u32 %v3556, 2147483648
    %v3573 = vxor.u32 %v3557, 2147483648
    %v3574 = vxor.u32 %v3558, 2147483648
    %v3575 = vxor.u32 %v3559, 2147483648
    %v3576 = vxor.u32 %v3560, 2147483648
    %v3577 = vxor.u32 %v3561, 2147483648
    %v3578 = vxor.u32 %v3562, 2147483648
    %v3579 = vxor.u32 %v3563, 2147483648
    %v3580 = vxor.u32 %v3564, 2147483648
    %v3581 = vxor.u32 %v3565, 2147483648
    %v3582 = vxor.u32 %v3566, 2147483648
    %v3583 = vxor.u32 %v3567, 2147483648
    %v3584 = vxor.u32 %v3568, 2147483648
    %v3585 = vxor.u32 %v3569, 2147483648
    %v3586 = vxor.u32 %v3570, 2147483648
    %v3587 = vmul.f32 %v3571, 1.442695
    %v3588 = vpow.pop %v3587
    %v3589 = vmul.f32 %v3572, 1.442695
    %v3590 = vpow.pop %v3589
    %v3591 = vmul.f32 %v3573, 1.442695
    %v3592 = vpow.pop %v3591
    %v3593 = vmul.f32 %v3574, 1.442695
    %v3594 = vpow.pop %v3593
    %v3595 = vmul.f32 %v3575, 1.442695
    %v3596 = vpow.pop %v3595
    %v3597 = vmul.f32 %v3576, 1.442695
    %v3598 = vpow.pop %v3597
    %v3599 = vmul.f32 %v3577, 1.442695
    %v3600 = vpow.pop %v3599
    %v3601 = vmul.f32 %v3578, 1.442695
    %v3602 = vpow.pop %v3601
    %v3603 = vmul.f32 %v3579, 1.442695
    %v3604 = vpow.pop %v3603
    %v3605 = vmul.f32 %v3580, 1.442695
    %v3606 = vpow.pop %v3605
    %v3607 = vmul.f32 %v3581, 1.442695
    %v3608 = vpow.pop %v3607
    %v3609 = vmul.f32 %v3582, 1.442695
    %v3610 = vpow.pop %v3609
    %v3611 = vmul.f32 %v3583, 1.442695
    %v3612 = vpow.pop %v3611
    %v3613 = vmul.f32 %v3584, 1.442695
    %v3614 = vpow.pop %v3613
    %v3615 = vmul.f32 %v3585, 1.442695
    %v3616 = vpow.pop %v3615
    %v3617 = vmul.f32 %v3586, 1.442695
    %v3618 = vpow.pop %v3617
    %v3619 = vadd.f32 %v3588, 1.0
    %v3620 = vadd.f32 %v3590, 1.0
    %v3621 = vadd.f32 %v3592, 1.0
    %v3622 = vadd.f32 %v3594, 1.0
    %v3623 = vadd.f32 %v3596, 1.0
    %v3624 = vadd.f32 %v3598, 1.0
    %v3625 = vadd.f32 %v3600, 1.0
    %v3626 = vadd.f32 %v3602, 1.0
    %v3627 = vadd.f32 %v3604, 1.0
    %v3628 = vadd.f32 %v3606, 1.0
    %v3629 = vadd.f32 %v3608, 1.0
    %v3630 = vadd.f32 %v3610, 1.0
    %v3631 = vadd.f32 %v3612, 1.0
    %v3632 = vadd.f32 %v3614, 1.0
    %v3633 = vadd.f32 %v3616, 1.0
    %v3634 = vadd.f32 %v3618, 1.0
    %v3635 = vrcp.pop %v3619
    %v3636 = vmul.f32 1.0, %v3635
    %v3637 = vrcp.pop %v3620
    %v3638 = vmul.f32 1.0, %v3637
    %v3639 = vrcp.pop %v3621
    %v3640 = vmul.f32 1.0, %v3639
    %v3641 = vrcp.pop %v3622
    %v3642 = vmul.f32 1.0, %v3641
    %v3643 = vrcp.pop %v3623
    %v3644 = vmul.f32 1.0, %v3643
    %v3645 = vrcp.pop %v3624
    %v3646 = vmul.f32 1.0, %v3645
    %v3647 = vrcp.pop %v3625
    %v3648 = vmul.f32 1.0, %v3647
    %v3649 = vrcp.pop %v3626
    %v3650 = vmul.f32 1.0, %v3649
    %v3651 = vrcp.pop %v3627
    %v3652 = vmul.f32 1.0, %v3651
    %v3653 = vrcp.pop %v3628
    %v3654 = vmul.f32 1.0, %v3653
    %v3655 = vrcp.pop %v3629
    %v3656 = vmul.f32 1.0, %v3655
    %v3657 = vrcp.pop %v3630
    %v3658 = vmul.f32 1.0, %v3657
    %v3659 = vrcp.pop %v3631
    %v3660 = vmul.f32 1.0, %v3659
    %v3661 = vrcp.pop %v3632
    %v3662 = vmul.f32 1.0, %v3661
    %v3663 = vrcp.pop %v3633
    %v3664 = vmul.f32 1.0, %v3663
    %v3665 = vrcp.pop %v3634
    %v3666 = vmul.f32 1.0, %v3665
    %v3667 = vmul.f32 %v3524, %v3435
    %v3668 = vmul.f32 %v3526, %v3440
    %v3669 = vmul.f32 %v3528, %v3435
    %v3670 = vmul.f32 %v3530, %v3440
    %v3671 = vmul.f32 %v3532, %v3435
    %v3672 = vmul.f32 %v3534, %v3440
    %v3673 = vmul.f32 %v3536, %v3435
    %v3674 = vmul.f32 %v3538, %v3440
    %v3675 = vmul.f32 %v3540, %v3435
    %v3676 = vmul.f32 %v3542, %v3440
    %v3677 = vmul.f32 %v3544, %v3435
    %v3678 = vmul.f32 %v3546, %v3440
    %v3679 = vmul.f32 %v3548, %v3435
    %v3680 = vmul.f32 %v3550, %v3440
    %v3681 = vmul.f32 %v3552, %v3435
    %v3682 = vmul.f32 %v3554, %v3440
    %v3683 = vadd.f32 %v3197, %v3667
    %v3684 = vadd.f32 %v3202, %v3668
    %v3685 = vadd.f32 %v3207, %v3669
    %v3686 = vadd.f32 %v3212, %v3670
    %v3687 = vadd.f32 %v3217, %v3671
    %v3688 = vadd.f32 %v3222, %v3672
    %v3689 = vadd.f32 %v3227, %v3673
    %v3690 = vadd.f32 %v3232, %v3674
    %v3691 = vadd.f32 %v3237, %v3675
    %v3692 = vadd.f32 %v3242, %v3676
    %v3693 = vadd.f32 %v3247, %v3677
    %v3694 = vadd.f32 %v3252, %v3678
    %v3695 = vadd.f32 %v3257, %v3679
    %v3696 = vadd.f32 %v3262, %v3680
    %v3697 = vadd.f32 %v3267, %v3681
    %v3698 = vadd.f32 %v3272, %v3682
    %v3699 = vtanh.pop %v3683
    %v3700 = vtanh.pop %v3684
    %v3701 = vtanh.pop %v3685
    %v3702 = vtanh.pop %v3686
    %v3703 = vtanh.pop %v3687
    %v3704 = vtanh.pop %v3688
    %v3705 = vtanh.pop %v3689
    %v3706 = vtanh.pop %v3690
    %v3707 = vtanh.pop %v3691
    %v3708 = vtanh.pop %v3692
    %v3709 = vtanh.pop %v3693
    %v3710 = vtanh.pop %v3694
    %v3711 = vtanh.pop %v3695
    %v3712 = vtanh.pop %v3696
    %v3713 = vtanh.pop %v3697
    %v3714 = vtanh.pop %v3698
    %v3715 = vsub.f32 1.0, %v3636
    %v3716 = vsub.f32 1.0, %v3638
    %v3717 = vsub.f32 1.0, %v3640
    %v3718 = vsub.f32 1.0, %v3642
    %v3719 = vsub.f32 1.0, %v3644
    %v3720 = vsub.f32 1.0, %v3646
    %v3721 = vsub.f32 1.0, %v3648
    %v3722 = vsub.f32 1.0, %v3650
    %v3723 = vsub.f32 1.0, %v3652
    %v3724 = vsub.f32 1.0, %v3654
    %v3725 = vsub.f32 1.0, %v3656
    %v3726 = vsub.f32 1.0, %v3658
    %v3727 = vsub.f32 1.0, %v3660
    %v3728 = vsub.f32 1.0, %v3662
    %v3729 = vsub.f32 1.0, %v3664
    %v3730 = vsub.f32 1.0, %v3666
    %v3731 = vmul.f32 %v3715, %v3699
    %v3732 = vmul.f32 %v3716, %v3700
    %v3733 = vmul.f32 %v3717, %v3701
    %v3734 = vmul.f32 %v3718, %v3702
    %v3735 = vmul.f32 %v3719, %v3703
    %v3736 = vmul.f32 %v3720, %v3704
    %v3737 = vmul.f32 %v3721, %v3705
    %v3738 = vmul.f32 %v3722, %v3706
    %v3739 = vmul.f32 %v3723, %v3707
    %v3740 = vmul.f32 %v3724, %v3708
    %v3741 = vmul.f32 %v3725, %v3709
    %v3742 = vmul.f32 %v3726, %v3710
    %v3743 = vmul.f32 %v3727, %v3711
    %v3744 = vmul.f32 %v3728, %v3712
    %v3745 = vmul.f32 %v3729, %v3713
    %v3746 = vmul.f32 %v3730, %v3714
    %v3747 = vmul.f32 %v3636, %v2140
    %v3748 = vmul.f32 %v3638, %v2141
    %v3749 = vmul.f32 %v3640, %v2140
    %v3750 = vmul.f32 %v3642, %v2141
    %v3751 = vmul.f32 %v3644, %v2140
    %v3752 = vmul.f32 %v3646, %v2141
    %v3753 = vmul.f32 %v3648, %v2140
    %v3754 = vmul.f32 %v3650, %v2141
    %v3755 = vmul.f32 %v3652, %v2140
    %v3756 = vmul.f32 %v3654, %v2141
    %v3757 = vmul.f32 %v3656, %v2140
    %v3758 = vmul.f32 %v3658, %v2141
    %v3759 = vmul.f32 %v3660, %v2140
    %v3760 = vmul.f32 %v3662, %v2141
    %v3761 = vmul.f32 %v3664, %v2140
    %v3762 = vmul.f32 %v3666, %v2141
    %v3763 = vadd.f32 %v3731, %v3747
    %v3764 = vadd.f32 %v3732, %v3748
    %v3765 = vadd.f32 %v3733, %v3749
    %v3766 = vadd.f32 %v3734, %v3750
    %v3767 = vadd.f32 %v3735, %v3751
    %v3768 = vadd.f32 %v3736, %v3752
    %v3769 = vadd.f32 %v3737, %v3753
    %v3770 = vadd.f32 %v3738, %v3754
    %v3771 = vadd.f32 %v3739, %v3755
    %v3772 = vadd.f32 %v3740, %v3756
    %v3773 = vadd.f32 %v3741, %v3757
    %v3774 = vadd.f32 %v3742, %v3758
    %v3775 = vadd.f32 %v3743, %v3759
    %v3776 = vadd.f32 %v3744, %v3760
    %v3777 = vadd.f32 %v3745, %v3761
    %v3778 = vadd.f32 %v3746, %v3762
    %v3779 = vmul.f32 %v3763, %v2147
    %v3780 = vmul.f32 %v3764, %v2147
    %v3781 = vmul.f32 %v3765, %v2147
    %v3782 = vmul.f32 %v3766, %v2147
    %v3783 = vmul.f32 %v3767, %v2147
    %v3784 = vmul.f32 %v3768, %v2147
    %v3785 = vmul.f32 %v3769, %v2147
    %v3786 = vmul.f32 %v3770, %v2147
    %v3787 = vmul.f32 %v3771, %v2147
    %v3788 = vmul.f32 %v3772, %v2147
    %v3789 = vmul.f32 %v3773, %v2147
    %v3790 = vmul.f32 %v3774, %v2147
    %v3791 = vmul.f32 %v3775, %v2147
    %v3792 = vmul.f32 %v3776, %v2147
    %v3793 = vmul.f32 %v3777, %v2147
    %v3794 = vmul.f32 %v3778, %v2147
    %v3795 = vadd.f32 %v3779, %v2148
    %v3796 = vadd.f32 %v3780, %v2148
    %v3797 = vadd.f32 %v3781, %v2148
    %v3798 = vadd.f32 %v3782, %v2148
    %v3799 = vadd.f32 %v3783, %v2148
    %v3800 = vadd.f32 %v3784, %v2148
    %v3801 = vadd.f32 %v3785, %v2148
    %v3802 = vadd.f32 %v3786, %v2148
    %v3803 = vadd.f32 %v3787, %v2148
    %v3804 = vadd.f32 %v3788, %v2148
    %v3805 = vadd.f32 %v3789, %v2148
    %v3806 = vadd.f32 %v3790, %v2148
    %v3807 = vadd.f32 %v3791, %v2148
    %v3808 = vadd.f32 %v3792, %v2148
    %v3809 = vadd.f32 %v3793, %v2148
    %v3810 = vadd.f32 %v3794, %v2148
    %3811 = vst [vmem:[#allocation15] sm:$0xff] %v3795
    %3812 = vst [vmem:[#allocation15 + $0x8] sm:$0xff] %v3796
    %3813 = vst [vmem:[#allocation15 + $0x10] sm:$0xff] %v3797
    %3814 = vst [vmem:[#allocation15 + $0x18] sm:$0xff] %v3798
    %3815 = vst [vmem:[#allocation15 + $0x20] sm:$0xff] %v3799
    %3816 = vst [vmem:[#allocation15 + $0x28] sm:$0xff] %v3800
    %3817 = vst [vmem:[#allocation15 + $0x30] sm:$0xff] %v3801
    %3818 = vst [vmem:[#allocation15 + $0x38] sm:$0xff] %v3802
    %3819 = vst [vmem:[#allocation15 + $0x40] sm:$0xff] %v3803
    %3820 = vst [vmem:[#allocation15 + $0x48] sm:$0xff] %v3804
    %3821 = vst [vmem:[#allocation15 + $0x50] sm:$0xff] %v3805
    %3822 = vst [vmem:[#allocation15 + $0x58] sm:$0xff] %v3806
    %3823 = vst [vmem:[#allocation15 + $0x60] sm:$0xff] %v3807
    %3824 = vst [vmem:[#allocation15 + $0x68] sm:$0xff] %v3808
    %3825 = vst [vmem:[#allocation15 + $0x70] sm:$0xff] %v3809
    %3826 = vst [vmem:[#allocation15 + $0x78] sm:$0xff] %v3810
    %v3827 = vld [vmem:[%s12] sm:$0xff]
    %v3828 = vld [vmem:[%s12 + $0x8] sm:$0xff]
    %v3829 = vld [vmem:[%s12 + $0x10] sm:$0xff]
    %v3830 = vld [vmem:[%s12 + $0x18] sm:$0xff]
    %v3831 = vld [vmem:[%s12 + $0x20] sm:$0xff]
    %v3832 = vld [vmem:[%s12 + $0x28] sm:$0xff]
    %v3833 = vld [vmem:[%s12 + $0x30] sm:$0xff]
    %v3834 = vld [vmem:[%s12 + $0x38] sm:$0xff]
    %v3835 = vld [vmem:[%s12 + $0x40] sm:$0xff]
    %v3836 = vld [vmem:[%s12 + $0x48] sm:$0xff]
    %v3837 = vld [vmem:[%s12 + $0x50] sm:$0xff]
    %v3838 = vld [vmem:[%s12 + $0x58] sm:$0xff]
    %v3839 = vld [vmem:[%s12 + $0x60] sm:$0xff]
    %v3840 = vld [vmem:[%s12 + $0x68] sm:$0xff]
    %v3841 = vld [vmem:[%s12 + $0x70] sm:$0xff]
    %v3842 = vld [vmem:[%s12 + $0x78] sm:$0xff]
    %v3843 = vld [vmem:[%s13] sm:$0x1]
    %v3845 = vlaneseq
    %v3846 = vshrl.u32 %v3845, 7
    %v3847 = vsub.s32 0, %v3846
    %v3848 = vrot.slane %v3843, %v3847
    %3850 = vmatprep.subr.mxu0 0.0
    %3851 = vmatpush1.msra.mxu0 %v3827
    %3852 = vmatprep.subr.mxu0 0.0
    %3853 = vmatpush1.msra.mxu0 %v3828
    %3854 = vmatprep.subr.mxu0 0.0
    %3855 = vmatpush1.msra.mxu0 %v3829
    %3856 = vmatprep.subr.mxu0 0.0
    %3857 = vmatpush1.msra.mxu0 %v3830
    %3858 = vmatprep.subr.mxu0 0.0
    %3859 = vmatpush1.msra.mxu0 %v3831
    %3860 = vmatprep.subr.mxu0 0.0
    %3861 = vmatpush1.msra.mxu0 %v3832
    %3862 = vmatprep.subr.mxu0 0.0
    %3863 = vmatpush1.msra.mxu0 %v3833
    %3864 = vmatprep.subr.mxu0 0.0
    %3865 = vmatpush1.msra.mxu0 %v3834
    %3866 = vmatprep.subr.mxu0 0.0
    %3867 = vmatpush1.msra.mxu0 %v3835
    %3868 = vmatprep.subr.mxu0 0.0
    %3869 = vmatpush1.msra.mxu0 %v3836
    %3870 = vmatprep.subr.mxu0 0.0
    %3871 = vmatpush1.msra.mxu0 %v3837
    %3872 = vmatprep.subr.mxu0 0.0
    %3873 = vmatpush1.msra.mxu0 %v3838
    %3874 = vmatprep.subr.mxu0 0.0
    %3875 = vmatpush1.msra.mxu0 %v3839
    %3876 = vmatprep.subr.mxu0 0.0
    %3877 = vmatpush1.msra.mxu0 %v3840
    %3878 = vmatprep.subr.mxu0 0.0
    %3879 = vmatpush1.msra.mxu0 %v3841
    %3880 = vmatprep.subr.mxu0 0.0
    %3881 = vmatpush1.msra.mxu0 %v3842
    %3882 = vmatprep.subr.mxu0 0.0
    %3883 = vmatpush1.msra.mxu0 0.0
    %3884 = vmatprep.subr.mxu0 0.0
    %3885 = vmatpush1.msra.mxu0 0.0
    %3886 = vmatprep.subr.mxu0 0.0
    %3887 = vmatpush1.msra.mxu0 0.0
    %3888 = vmatprep.subr.mxu0 0.0
    %3889 = vmatpush1.msra.mxu0 0.0
    %3890 = vmatprep.subr.mxu0 0.0
    %3891 = vmatpush1.msra.mxu0 0.0
    %3892 = vmatprep.subr.mxu0 0.0
    %3893 = vmatpush1.msra.mxu0 0.0
    %3894 = vmatprep.subr.mxu0 0.0
    %3895 = vmatpush1.msra.mxu0 0.0
    %3896 = vmatprep.subr.mxu0 0.0
    %3897 = vmatpush1.msra.mxu0 0.0
    %3898 = vmatprep.subr.mxu0 0.0
    %3899 = vmatpush1.msra.mxu0 0.0
    %3900 = vmatprep.subr.mxu0 0.0
    %3901 = vmatpush1.msra.mxu0 0.0
    %3902 = vmatprep.subr.mxu0 0.0
    %3903 = vmatpush1.msra.mxu0 0.0
    %3904 = vmatprep.subr.mxu0 0.0
    %3905 = vmatpush1.msra.mxu0 0.0
    %3906 = vmatprep.subr.mxu0 0.0
    %3907 = vmatpush1.msra.mxu0 0.0
    %3908 = vmatprep.subr.mxu0 0.0
    %3909 = vmatpush1.msra.mxu0 0.0
    %3910 = vmatprep.subr.mxu0 0.0
    %3911 = vmatpush1.msra.mxu0 0.0
    %3912 = vmatprep.subr.mxu0 0.0
    %3913 = vmatpush1.msra.mxu0 0.0
    %3914 = vmatprep.mubr.f32.mxu0 0.0
    %3915 = vmatmul.mubr.f32.gmra.mrb[0].mxu0 %v3795
    %v3916 = vpop.f32.mrb[0].mxu0
    %v3917 = vadd.f32 %v3848, %v3916
    %v3918 = vpop.f32.mrb[0].mxu0
    %3919 = vmatprep.mubr.f32.mxu0 0.0
    %3920 = vmatmul.mubr.f32.gmra.mrb[0].mxu0 %v3796
    %v3921 = vpop.f32.mrb[0].mxu0
    %v3922 = vadd.f32 %v3848, %v3921
    %v3923 = vpop.f32.mrb[0].mxu0
    %3924 = vmatprep.mubr.f32.mxu0 0.0
    %3925 = vmatmul.mubr.f32.gmra.mrb[0].mxu0 %v3797
    %v3926 = vpop.f32.mrb[0].mxu0
    %v3927 = vadd.f32 %v3848, %v3926
    %v3928 = vpop.f32.mrb[0].mxu0
    %3929 = vmatprep.mubr.f32.mxu0 0.0
    %3930 = vmatmul.mubr.f32.gmra.mrb[0].mxu0 %v3798
    %v3931 = vpop.f32.mrb[0].mxu0
    %v3932 = vadd.f32 %v3848, %v3931
    %v3933 = vpop.f32.mrb[0].mxu0
    %3934 = vmatprep.mubr.f32.mxu0 0.0
    %3935 = vmatmul.mubr.f32.gmra.mrb[0].mxu0 %v3799
    %v3936 = vpop.f32.mrb[0].mxu0
    %v3937 = vadd.f32 %v3848, %v3936
    %v3938 = vpop.f32.mrb[0].mxu0
    %3939 = vmatprep.mubr.f32.mxu0 0.0
    %3940 = vmatmul.mubr.f32.gmra.mrb[0].mxu0 %v3800
    %v3941 = vpop.f32.mrb[0].mxu0
    %v3942 = vadd.f32 %v3848, %v3941
    %v3943 = vpop.f32.mrb[0].mxu0
    %3944 = vmatprep.mubr.f32.mxu0 0.0
    %3945 = vmatmul.mubr.f32.gmra.mrb[0].mxu0 %v3801
    %v3946 = vpop.f32.mrb[0].mxu0
    %v3947 = vadd.f32 %v3848, %v3946
    %v3948 = vpop.f32.mrb[0].mxu0
    %3949 = vmatprep.mubr.f32.mxu0 0.0
    %3950 = vmatmul.mubr.f32.gmra.mrb[0].mxu0 %v3802
    %v3951 = vpop.f32.mrb[0].mxu0
    %v3952 = vadd.f32 %v3848, %v3951
    %v3953 = vpop.f32.mrb[0].mxu0
    %3954 = vmatprep.mubr.f32.mxu0 0.0
    %3955 = vmatmul.mubr.f32.gmra.mrb[0].mxu0 %v3803
    %v3956 = vpop.f32.mrb[0].mxu0
    %v3957 = vadd.f32 %v3848, %v3956
    %v3958 = vpop.f32.mrb[0].mxu0
    %3959 = vmatprep.mubr.f32.mxu0 0.0
    %3960 = vmatmul.mubr.f32.gmra.mrb[0].mxu0 %v3804
    %v3961 = vpop.f32.mrb[0].mxu0
    %v3962 = vadd.f32 %v3848, %v3961
    %v3963 = vpop.f32.mrb[0].mxu0
    %3964 = vmatprep.mubr.f32.mxu0 0.0
    %3965 = vmatmul.mubr.f32.gmra.mrb[0].mxu0 %v3805
    %v3966 = vpop.f32.mrb[0].mxu0
    %v3967 = vadd.f32 %v3848, %v3966
    %v3968 = vpop.f32.mrb[0].mxu0
    %3969 = vmatprep.mubr.f32.mxu0 0.0
    %3970 = vmatmul.mubr.f32.gmra.mrb[0].mxu0 %v3806
    %v3971 = vpop.f32.mrb[0].mxu0
    %v3972 = vadd.f32 %v3848, %v3971
    %v3973 = vpop.f32.mrb[0].mxu0
    %3974 = vmatprep.mubr.f32.mxu0 0.0
    %3975 = vmatmul.mubr.f32.gmra.mrb[0].mxu0 %v3807
    %v3976 = vpop.f32.mrb[0].mxu0
    %v3977 = vadd.f32 %v3848, %v3976
    %v3978 = vpop.f32.mrb[0].mxu0
    %3979 = vmatprep.mubr.f32.mxu0 0.0
    %3980 = vmatmul.mubr.f32.gmra.mrb[0].mxu0 %v3808
    %v3981 = vpop.f32.mrb[0].mxu0
    %v3982 = vadd.f32 %v3848, %v3981
    %v3983 = vpop.f32.mrb[0].mxu0
    %3984 = vmatprep.mubr.f32.mxu0 0.0
    %3985 = vmatmul.mubr.f32.gmra.mrb[0].mxu0 %v3809
    %v3986 = vpop.f32.mrb[0].mxu0
    %v3987 = vadd.f32 %v3848, %v3986
    %v3988 = vpop.f32.mrb[0].mxu0
    %3989 = vmatprep.mubr.f32.mxu0 0.0
    %3990 = vmatmul.mubr.f32.gmra.mrb[0].mxu0 %v3810
    %v3991 = vpop.f32.mrb[0].mxu0
    %v3992 = vadd.f32 %v3848, %v3991
    %v3993 = vpop.f32.mrb[0].mxu0
    %3994 = vdwg.mxu0
    %3995 = vst [vmem:[#allocation17] sm:$0xff] %v3917
    %3996 = vst [vmem:[#allocation17 + $0x8] sm:$0xff] %v3922
    %3997 = vst [vmem:[#allocation17 + $0x10] sm:$0xff] %v3927
    %3998 = vst [vmem:[#allocation17 + $0x18] sm:$0xff] %v3932
    %3999 = vst [vmem:[#allocation17 + $0x20] sm:$0xff] %v3937
    %4000 = vst [vmem:[#allocation17 + $0x28] sm:$0xff] %v3942
    %4001 = vst [vmem:[#allocation17 + $0x30] sm:$0xff] %v3947
    %4002 = vst [vmem:[#allocation17 + $0x38] sm:$0xff] %v3952
    %4003 = vst [vmem:[#allocation17 + $0x40] sm:$0xff] %v3957
    %4004 = vst [vmem:[#allocation17 + $0x48] sm:$0xff] %v3962
    %4005 = vst [vmem:[#allocation17 + $0x50] sm:$0xff] %v3967
    %4006 = vst [vmem:[#allocation17 + $0x58] sm:$0xff] %v3972
    %4007 = vst [vmem:[#allocation17 + $0x60] sm:$0xff] %v3977
    %4008 = vst [vmem:[#allocation17 + $0x68] sm:$0xff] %v3982
    %4009 = vst [vmem:[#allocation17 + $0x70] sm:$0xff] %v3987
    %4010 = vst [vmem:[#allocation17 + $0x78] sm:$0xff] %v3992
    // Predicated region
    $region86: #{tpu_custom_call.1} parent=1 // pred_check
      _
    $region87: #{tpu_custom_call.1} parent=1 // pred_check_branch
      %4012 = sbr.rel (0) target = $region89
    $region88: #{tpu_custom_call.1} parent=1 // pred_region
      %s4014 = ssub.s32 2048, 2048
      %4015 = vsyncadd [#allocation4], %s4014
      %s4016 = sshll.u32 [#allocation14], 4
      %s4017 = int_to_ptr.vmem [resolvable:$true] %s4016
      %4022 = dma.vmem_to_hbm [thread:$0]  %s4017, 2048, %s14, [#allocation4], 128, 128, 8
    $region89: #{tpu_custom_call.1} parent=1 // pred_fallthru
      _
    // Predicated region
    $region90: #{tpu_custom_call.1} parent=1 // pred_check
      _
    $region91: #{tpu_custom_call.1} parent=1 // pred_check_branch
      %4024 = sbr.rel (0) target = $region93
    $region92: #{tpu_custom_call.1} parent=1 // pred_region
      %s4026 = ssub.s32 2048, 2048
      %4027 = vsyncadd [#allocation16], %s4026
      %s4028 = sshll.u32 [#allocation15], 4
      %s4029 = int_to_ptr.vmem [resolvable:$true] %s4028
      %4034 = dma.vmem_to_hbm [thread:$0]  %s4029, 2048, %s15, [#allocation16], 128, 128, 8
    $region93: #{tpu_custom_call.1} parent=1 // pred_fallthru
      _
    // Predicated region
    $region94: #{tpu_custom_call.1} parent=1 // pred_check
      _
    $region95: #{tpu_custom_call.1} parent=1 // pred_check_branch
      %4036 = sbr.rel (0) target = $region97
    $region96: #{tpu_custom_call.1} parent=1 // pred_region
      %s4038 = ssub.s32 2048, 2048
      %4039 = vsyncadd [#allocation16], %s4038
      %s4040 = sshll.u32 [#allocation17], 4
      %s4041 = int_to_ptr.vmem [resolvable:$true] %s4040
      %4046 = dma.vmem_to_hbm [thread:$0]  %s4041, 2048, %s16, [#allocation16], 128, 128, 8
    $region97: #{tpu_custom_call.1} parent=1 // pred_fallthru
      _
    // Predicated region
    $region98: #{tpu_custom_call.1} parent=1 // pred_check
      _
    $region99: #{tpu_custom_call.1} parent=1 // pred_check_branch
      %4048 = sbr.rel (0) target = $region101
    $region100: #{tpu_custom_call.1} parent=1 // pred_region
      %4049 = dma.done [#allocation4], 2048
    $region101: #{tpu_custom_call.1} parent=1 // pred_fallthru
      _
    // Predicated region
    $region102: #{tpu_custom_call.1} parent=1 // pred_check
      _
    $region103: #{tpu_custom_call.1} parent=1 // pred_check_branch
      %4051 = sbr.rel (0) target = $region105
    $region104: #{tpu_custom_call.1} parent=1 // pred_region
      %4052 = dma.done [#allocation16], 2048
    $region105: #{tpu_custom_call.1} parent=1 // pred_fallthru
      _
    // Predicated region
    $region106: #{tpu_custom_call.1} parent=1 // pred_check
      _
    $region107: #{tpu_custom_call.1} parent=1 // pred_check_branch
      %4054 = sbr.rel (0) target = $region109
    $region108: #{tpu_custom_call.1} parent=1 // pred_region
      %4055 = dma.done [#allocation16], 2048
    $region109: #{tpu_custom_call.1} parent=1 // pred_fallthru
      _
    %4056 = vsyncpa [#allocation3], 1
    %4057 = vsyncpa [#allocation6], 1
    %4058 = vsyncpa [#allocation9], 1
    %4059 = vsyncpa [#allocation12], 1
    %4060 = vsyncpa [#allocation4], 1
    %4061 = vsyncpa [#allocation16], 1

</llo_original>
